<compile_context>
chip_gen: v6e
topology: v6e:2x2x1
jax: 0.10.0
libtpu: 0.0.40
codegen_flags: <defaults>
</compile_context>

<pallas_src>
import jax
import jax.numpy as jnp
from jax.experimental import pallas as pl
from jax.experimental.pallas import tpu as pltpu


def _pos_emb_kernel(new_ref, grouped_ref, w1r_ref, w1s_ref, w1m_ref,
                    b1_ref, w2_ref, b2_ref, o_ref):
    # new_ref     : (B, P, 3)
    # grouped_ref : (B, P, S, 3)
    # w1r/w1s/w1m : (3, H)    rel / std / mean blocks of the (9, H) weight
    # b1_ref      : (1, H)
    # w2_ref      : (H, C)   b2_ref: (1, C)
    # o_ref       : (B*P*S, C)   lane-dense output slab
    B, P, S, _ = grouped_ref.shape

    new = new_ref[...].astype(jnp.float32)          # (B, P, 3)
    grouped = grouped_ref[...].astype(jnp.float32)  # (B, P, S, 3)

    # relative_position = grouped_xyz - new_xyz.unsqueeze(2)
    rel = grouped - new[:, :, None, :]              # (B, P, S, 3)

    # torch.std_mean(rel, dim=2, keepdim=True): mean + UNBIASED std (ddof=1).
    mean = jnp.mean(rel, axis=2, keepdims=True)     # (B, P, 1, 3)
    cen = rel - mean
    var = jnp.sum(cen * cen, axis=2, keepdims=True) * (1.0 / float(S - 1))
    std = jnp.sqrt(var)                             # (B, P, 1, 3)

    w1r = w1r_ref[...]                              # (3, H)
    w1s = w1s_ref[...]
    w1m = w1m_ref[...]

    # cat([rel, std, mean], -1) @ W1 + b1, computed as 9 VPU broadcast FMAs.
    # std/mean contributions are constant over S -> accumulate at (B, P, 1, H).
    base = b1_ref[...]                              # (1, H)
    for d in range(3):
        base = base + std[..., d:d + 1] * w1s[d:d + 1, :]   # (B, P, 1, H)
        base = base + mean[..., d:d + 1] * w1m[d:d + 1, :]

    h = base                                        # broadcasts over S below
    for d in range(3):
        h = h + rel[..., d:d + 1] * w1r[d:d + 1, :]          # (B, P, S, H)

    # LeakyReLU(negative_slope=0.01)
    h = jnp.maximum(h, 0.01 * h)

    # Single flatten feeding the one MXU matmul: (B*P*S, H) @ (H, C).
    h_flat = h.reshape(B * P * S, h.shape[-1])
    y = jnp.dot(h_flat, w2_ref[...],
                preferred_element_type=jnp.float32) + b2_ref[...]
    o_ref[...] = y.astype(o_ref.dtype)


def positional_embedding_pallas(new_xyz, grouped_xyz, w1, b1, w2, b2):
    """new_xyz: (B,P,3); grouped_xyz: (B,P,S,3); w1: (9,H); b1: (H,);
    w2: (H,C); b2: (C,).  Returns (B, P, S, C)."""
    B, P, S, _ = grouped_xyz.shape
    H = w1.shape[1]
    C = w2.shape[1]

    # Split the cat([rel, std, mean]) weight into its three (3, H) blocks
    # wrapper-side (free in XLA) so the kernel never slices across the
    # 8-sublane tile boundary of a (9, H) block.
    w1_rel, w1_std, w1_mean = w1[0:3], w1[3:6], w1[6:9]

    out_flat = pl.pallas_call(
        _pos_emb_kernel,
        out_shape=jax.ShapeDtypeStruct((B * P * S, C), new_xyz.dtype),
        grid_spec=pltpu.PrefetchScalarGridSpec(
            num_scalar_prefetch=0,
            grid=(1,),                                   # single step: B folded in
            in_specs=[
                pl.BlockSpec((B, P, 3), lambda i: (0, 0, 0)),
                pl.BlockSpec((B, P, S, 3), lambda i: (0, 0, 0, 0)),
                pl.BlockSpec((3, H), lambda i: (0, 0)),
                pl.BlockSpec((3, H), lambda i: (0, 0)),
                pl.BlockSpec((3, H), lambda i: (0, 0)),
                pl.BlockSpec((1, H), lambda i: (0, 0)),
                pl.BlockSpec((H, C), lambda i: (0, 0)),
                pl.BlockSpec((1, C), lambda i: (0, 0)),
            ],
            out_specs=pl.BlockSpec((B * P * S, C), lambda i: (0, 0)),
        ),
        compiler_params=pltpu.CompilerParams(
            dimension_semantics=("arbitrary",)),
    )(new_xyz, grouped_xyz, w1_rel, w1_std, w1_mean,
      b1.reshape(1, H), w2, b2.reshape(1, C))

    return out_flat.reshape(B, P, S, C)


def positional_embedding_reference(new_xyz, grouped_xyz, w1, b1, w2, b2):
    """Pure-JAX reference mirroring the PyTorch forward."""
    rel = grouped_xyz - new_xyz[:, :, None, :]                      # (B,P,S,3)
    mean = jnp.mean(rel, axis=2, keepdims=True)
    var = jnp.sum((rel - mean) ** 2, axis=2, keepdims=True) / (rel.shape[2] - 1)
    std = jnp.sqrt(var)                                             # unbiased
    feat = jnp.concatenate(
        [rel, jnp.broadcast_to(std, rel.shape), jnp.broadcast_to(mean, rel.shape)],
        axis=-1)                                                    # (B,P,S,9)
    h = feat @ w1 + b1
    h = jnp.where(h > 0, h, 0.01 * h)                               # LeakyReLU
    return h @ w2 + b2


if __name__ == "__main__":
    # Module config: channel=128  =>  hidden = max(channel//4, 16) = 32
    CHANNEL = 128
    HIDDEN = max(CHANNEL // 4, 16)
    B, P, S = 2, 16, 8   # batch, n_points, n_samples per group (S >= 2)

    key = jax.random.PRNGKey(0)
    k1, k2, k3, k4, k5, k6 = jax.random.split(key, 6)

    new_xyz = jax.random.normal(k1, (B, P, 3), dtype=jnp.float32)
    grouped_xyz = jax.random.normal(k2, (B, P, S, 3), dtype=jnp.float32)

    # Deterministic synthetic parameters (torch.nn.Linear-like scale),
    # stored transposed so y = x @ W + b inside the kernel.
    w1 = jax.random.uniform(k3, (9, HIDDEN), dtype=jnp.float32,
                            minval=-9 ** -0.5, maxval=9 ** -0.5)
    b1 = jax.random.uniform(k4, (HIDDEN,), dtype=jnp.float32,
                            minval=-9 ** -0.5, maxval=9 ** -0.5)
    w2 = jax.random.uniform(k5, (HIDDEN, CHANNEL), dtype=jnp.float32,
                            minval=-HIDDEN ** -0.5, maxval=HIDDEN ** -0.5)
    b2 = jax.random.uniform(k6, (CHANNEL,), dtype=jnp.float32,
                            minval=-HIDDEN ** -0.5, maxval=HIDDEN ** -0.5)

    y = positional_embedding_pallas(new_xyz, grouped_xyz, w1, b1, w2, b2)
    y = jax.block_until_ready(y)

    y_ref = positional_embedding_reference(new_xyz, grouped_xyz, w1, b1, w2, b2)
    assert y.shape == (B, P, S, CHANNEL)
    assert jnp.allclose(y, y_ref, rtol=1e-4, atol=1e-4), \
        float(jnp.max(jnp.abs(y - y_ref)))

    print("KERNEL_OK")
</pallas_src>

<mosaic_0001>
module attributes {stable_mosaic.version = 11 : i64} {
  func.func @_pos_emb_kernel(%arg0: i32, %arg1: memref<2x16x3xf32, #tpu.memory_space<vmem>>, %arg2: memref<2x16x8x3xf32, #tpu.memory_space<vmem>>, %arg3: memref<3x32xf32, #tpu.memory_space<vmem>>, %arg4: memref<3x32xf32, #tpu.memory_space<vmem>>, %arg5: memref<3x32xf32, #tpu.memory_space<vmem>>, %arg6: memref<1x32xf32, #tpu.memory_space<vmem>>, %arg7: memref<32x128xf32, #tpu.memory_space<vmem>>, %arg8: memref<1x128xf32, #tpu.memory_space<vmem>>, %arg9: memref<256x128xf32, #tpu.memory_space<vmem>>) attributes {dimension_semantics = [#tpu.dimension_semantics<arbitrary>], iteration_bounds = array<i64: 1>, scalar_prefetch = 0 : i64, scratch_operands = 0 : i64, tpu.core_type = #tpu.core_type<tc>, window_params = [{pipeline_mode = #tpu.pipeline_mode<synchronous>, transform_indices = @transform_0, window_bounds = array<i64: 2, 16, 3>}, {pipeline_mode = #tpu.pipeline_mode<synchronous>, transform_indices = @transform_1, window_bounds = array<i64: 2, 16, 8, 3>}, {pipeline_mode = #tpu.pipeline_mode<synchronous>, transform_indices = @transform_2, window_bounds = array<i64: 3, 32>}, {pipeline_mode = #tpu.pipeline_mode<synchronous>, transform_indices = @transform_3, window_bounds = array<i64: 3, 32>}, {pipeline_mode = #tpu.pipeline_mode<synchronous>, transform_indices = @transform_4, window_bounds = array<i64: 3, 32>}, {pipeline_mode = #tpu.pipeline_mode<synchronous>, transform_indices = @transform_5, window_bounds = array<i64: 1, 32>}, {pipeline_mode = #tpu.pipeline_mode<synchronous>, transform_indices = @transform_6, window_bounds = array<i64: 32, 128>}, {pipeline_mode = #tpu.pipeline_mode<synchronous>, transform_indices = @transform_7, window_bounds = array<i64: 1, 128>}, {pipeline_mode = #tpu.pipeline_mode<synchronous>, transform_indices = @transform_8, window_bounds = array<i64: 256, 128>}]} {
    %c0 = arith.constant 0 : index
    %c0_0 = arith.constant 0 : index
    %c0_1 = arith.constant 0 : index
    %0 = vector.load %arg1[%c0, %c0_0, %c0_1] : memref<2x16x3xf32, #tpu.memory_space<vmem>>, vector<2x16x3xf32>
    %c0_2 = arith.constant 0 : index
    %c0_3 = arith.constant 0 : index
    %c0_4 = arith.constant 0 : index
    %c0_5 = arith.constant 0 : index
    %1 = vector.load %arg2[%c0_2, %c0_3, %c0_4, %c0_5] : memref<2x16x8x3xf32, #tpu.memory_space<vmem>>, vector<2x16x8x3xf32>
    %2 = vector.shape_cast %0 : vector<2x16x3xf32> to vector<2x16x1x3xf32>
    %3 = vector.broadcast %2 : vector<2x16x1x3xf32> to vector<2x16x8x3xf32>
    %4 = arith.subf %1, %3 : vector<2x16x8x3xf32>
    %cst = arith.constant dense<0.000000e+00> : vector<2x16x3xf32>
    %5 = vector.multi_reduction <add>, %4, %cst [2] : vector<2x16x8x3xf32> to vector<2x16x3xf32>
    %6 = vector.shape_cast %5 : vector<2x16x3xf32> to vector<2x16x1x3xf32>
    %cst_6 = arith.constant 8.000000e+00 : f32
    %7 = vector.broadcast %cst_6 : f32 to vector<2x16x1x3xf32>
    %8 = arith.divf %6, %7 : vector<2x16x1x3xf32>
    %9 = vector.broadcast %8 : vector<2x16x1x3xf32> to vector<2x16x8x3xf32>
    %10 = arith.subf %4, %9 : vector<2x16x8x3xf32>
    %11 = arith.mulf %10, %10 : vector<2x16x8x3xf32>
    %cst_7 = arith.constant dense<0.000000e+00> : vector<2x16x3xf32>
    %12 = vector.multi_reduction <add>, %11, %cst_7 [2] : vector<2x16x8x3xf32> to vector<2x16x3xf32>
    %13 = vector.shape_cast %12 : vector<2x16x3xf32> to vector<2x16x1x3xf32>
    %cst_8 = arith.constant 0.142857149 : f32
    %14 = vector.broadcast %cst_8 : f32 to vector<2x16x1x3xf32>
    %15 = arith.mulf %13, %14 : vector<2x16x1x3xf32>
    %16 = math.sqrt %15 : vector<2x16x1x3xf32>
    %c0_9 = arith.constant 0 : index
    %c0_10 = arith.constant 0 : index
    %17 = vector.load %arg3[%c0_9, %c0_10] : memref<3x32xf32, #tpu.memory_space<vmem>>, vector<3x32xf32>
    %c0_11 = arith.constant 0 : index
    %c0_12 = arith.constant 0 : index
    %18 = vector.load %arg4[%c0_11, %c0_12] : memref<3x32xf32, #tpu.memory_space<vmem>>, vector<3x32xf32>
    %c0_13 = arith.constant 0 : index
    %c0_14 = arith.constant 0 : index
    %19 = vector.load %arg5[%c0_13, %c0_14] : memref<3x32xf32, #tpu.memory_space<vmem>>, vector<3x32xf32>
    %c0_15 = arith.constant 0 : index
    %c0_16 = arith.constant 0 : index
    %20 = vector.load %arg6[%c0_15, %c0_16] : memref<1x32xf32, #tpu.memory_space<vmem>>, vector<1x32xf32>
    %21 = vector.extract_strided_slice %16 {offsets = [0, 0, 0, 0], sizes = [2, 16, 1, 1], strides = [1, 1, 1, 1]} : vector<2x16x1x3xf32> to vector<2x16x1x1xf32>
    %22 = vector.extract_strided_slice %18 {offsets = [0, 0], sizes = [1, 32], strides = [1, 1]} : vector<3x32xf32> to vector<1x32xf32>
    %23 = vector.shape_cast %22 : vector<1x32xf32> to vector<1x1x1x32xf32>
    %24 = vector.broadcast %21 : vector<2x16x1x1xf32> to vector<2x16x1x32xf32>
    %25 = vector.broadcast %23 : vector<1x1x1x32xf32> to vector<2x16x1x32xf32>
    %26 = arith.mulf %24, %25 : vector<2x16x1x32xf32>
    %27 = vector.shape_cast %20 : vector<1x32xf32> to vector<1x1x1x32xf32>
    %28 = vector.broadcast %27 : vector<1x1x1x32xf32> to vector<2x16x1x32xf32>
    %29 = arith.addf %28, %26 : vector<2x16x1x32xf32>
    %30 = vector.extract_strided_slice %8 {offsets = [0, 0, 0, 0], sizes = [2, 16, 1, 1], strides = [1, 1, 1, 1]} : vector<2x16x1x3xf32> to vector<2x16x1x1xf32>
    %31 = vector.extract_strided_slice %19 {offsets = [0, 0], sizes = [1, 32], strides = [1, 1]} : vector<3x32xf32> to vector<1x32xf32>
    %32 = vector.shape_cast %31 : vector<1x32xf32> to vector<1x1x1x32xf32>
    %33 = vector.broadcast %30 : vector<2x16x1x1xf32> to vector<2x16x1x32xf32>
    %34 = vector.broadcast %32 : vector<1x1x1x32xf32> to vector<2x16x1x32xf32>
    %35 = arith.mulf %33, %34 : vector<2x16x1x32xf32>
    %36 = arith.addf %29, %35 : vector<2x16x1x32xf32>
    %37 = vector.extract_strided_slice %16 {offsets = [0, 0, 0, 1], sizes = [2, 16, 1, 1], strides = [1, 1, 1, 1]} : vector<2x16x1x3xf32> to vector<2x16x1x1xf32>
    %38 = vector.extract_strided_slice %18 {offsets = [1, 0], sizes = [1, 32], strides = [1, 1]} : vector<3x32xf32> to vector<1x32xf32>
    %39 = vector.shape_cast %38 : vector<1x32xf32> to vector<1x1x1x32xf32>
    %40 = vector.broadcast %37 : vector<2x16x1x1xf32> to vector<2x16x1x32xf32>
    %41 = vector.broadcast %39 : vector<1x1x1x32xf32> to vector<2x16x1x32xf32>
    %42 = arith.mulf %40, %41 : vector<2x16x1x32xf32>
    %43 = arith.addf %36, %42 : vector<2x16x1x32xf32>
    %44 = vector.extract_strided_slice %8 {offsets = [0, 0, 0, 1], sizes = [2, 16, 1, 1], strides = [1, 1, 1, 1]} : vector<2x16x1x3xf32> to vector<2x16x1x1xf32>
    %45 = vector.extract_strided_slice %19 {offsets = [1, 0], sizes = [1, 32], strides = [1, 1]} : vector<3x32xf32> to vector<1x32xf32>
    %46 = vector.shape_cast %45 : vector<1x32xf32> to vector<1x1x1x32xf32>
    %47 = vector.broadcast %44 : vector<2x16x1x1xf32> to vector<2x16x1x32xf32>
    %48 = vector.broadcast %46 : vector<1x1x1x32xf32> to vector<2x16x1x32xf32>
    %49 = arith.mulf %47, %48 : vector<2x16x1x32xf32>
    %50 = arith.addf %43, %49 : vector<2x16x1x32xf32>
    %51 = vector.extract_strided_slice %16 {offsets = [0, 0, 0, 2], sizes = [2, 16, 1, 1], strides = [1, 1, 1, 1]} : vector<2x16x1x3xf32> to vector<2x16x1x1xf32>
    %52 = vector.extract_strided_slice %18 {offsets = [2, 0], sizes = [1, 32], strides = [1, 1]} : vector<3x32xf32> to vector<1x32xf32>
    %53 = vector.shape_cast %52 : vector<1x32xf32> to vector<1x1x1x32xf32>
    %54 = vector.broadcast %51 : vector<2x16x1x1xf32> to vector<2x16x1x32xf32>
    %55 = vector.broadcast %53 : vector<1x1x1x32xf32> to vector<2x16x1x32xf32>
    %56 = arith.mulf %54, %55 : vector<2x16x1x32xf32>
    %57 = arith.addf %50, %56 : vector<2x16x1x32xf32>
    %58 = vector.extract_strided_slice %8 {offsets = [0, 0, 0, 2], sizes = [2, 16, 1, 1], strides = [1, 1, 1, 1]} : vector<2x16x1x3xf32> to vector<2x16x1x1xf32>
    %59 = vector.extract_strided_slice %19 {offsets = [2, 0], sizes = [1, 32], strides = [1, 1]} : vector<3x32xf32> to vector<1x32xf32>
    %60 = vector.shape_cast %59 : vector<1x32xf32> to vector<1x1x1x32xf32>
    %61 = vector.broadcast %58 : vector<2x16x1x1xf32> to vector<2x16x1x32xf32>
    %62 = vector.broadcast %60 : vector<1x1x1x32xf32> to vector<2x16x1x32xf32>
    %63 = arith.mulf %61, %62 : vector<2x16x1x32xf32>
    %64 = arith.addf %57, %63 : vector<2x16x1x32xf32>
    %65 = vector.extract_strided_slice %4 {offsets = [0, 0, 0, 0], sizes = [2, 16, 8, 1], strides = [1, 1, 1, 1]} : vector<2x16x8x3xf32> to vector<2x16x8x1xf32>
    %66 = vector.extract_strided_slice %17 {offsets = [0, 0], sizes = [1, 32], strides = [1, 1]} : vector<3x32xf32> to vector<1x32xf32>
    %67 = vector.shape_cast %66 : vector<1x32xf32> to vector<1x1x1x32xf32>
    %68 = vector.broadcast %65 : vector<2x16x8x1xf32> to vector<2x16x8x32xf32>
    %69 = vector.broadcast %67 : vector<1x1x1x32xf32> to vector<2x16x8x32xf32>
    %70 = arith.mulf %68, %69 : vector<2x16x8x32xf32>
    %71 = vector.broadcast %64 : vector<2x16x1x32xf32> to vector<2x16x8x32xf32>
    %72 = arith.addf %71, %70 : vector<2x16x8x32xf32>
    %73 = vector.extract_strided_slice %4 {offsets = [0, 0, 0, 1], sizes = [2, 16, 8, 1], strides = [1, 1, 1, 1]} : vector<2x16x8x3xf32> to vector<2x16x8x1xf32>
    %74 = vector.extract_strided_slice %17 {offsets = [1, 0], sizes = [1, 32], strides = [1, 1]} : vector<3x32xf32> to vector<1x32xf32>
    %75 = vector.shape_cast %74 : vector<1x32xf32> to vector<1x1x1x32xf32>
    %76 = vector.broadcast %73 : vector<2x16x8x1xf32> to vector<2x16x8x32xf32>
    %77 = vector.broadcast %75 : vector<1x1x1x32xf32> to vector<2x16x8x32xf32>
    %78 = arith.mulf %76, %77 : vector<2x16x8x32xf32>
    %79 = arith.addf %72, %78 : vector<2x16x8x32xf32>
    %80 = vector.extract_strided_slice %4 {offsets = [0, 0, 0, 2], sizes = [2, 16, 8, 1], strides = [1, 1, 1, 1]} : vector<2x16x8x3xf32> to vector<2x16x8x1xf32>
    %81 = vector.extract_strided_slice %17 {offsets = [2, 0], sizes = [1, 32], strides = [1, 1]} : vector<3x32xf32> to vector<1x32xf32>
    %82 = vector.shape_cast %81 : vector<1x32xf32> to vector<1x1x1x32xf32>
    %83 = vector.broadcast %80 : vector<2x16x8x1xf32> to vector<2x16x8x32xf32>
    %84 = vector.broadcast %82 : vector<1x1x1x32xf32> to vector<2x16x8x32xf32>
    %85 = arith.mulf %83, %84 : vector<2x16x8x32xf32>
    %86 = arith.addf %79, %85 : vector<2x16x8x32xf32>
    %cst_17 = arith.constant 0.00999999977 : f32
    %87 = vector.broadcast %cst_17 : f32 to vector<2x16x8x32xf32>
    %88 = arith.mulf %87, %86 : vector<2x16x8x32xf32>
    %89 = arith.maximumf %86, %88 : vector<2x16x8x32xf32>
    %90 = vector.shape_cast %89 : vector<2x16x8x32xf32> to vector<256x32xf32>
    %c0_18 = arith.constant 0 : index
    %c0_19 = arith.constant 0 : index
    %91 = vector.load %arg7[%c0_18, %c0_19] : memref<32x128xf32, #tpu.memory_space<vmem>>, vector<32x128xf32>
    %cst_20 = arith.constant dense<0.000000e+00> : vector<256x128xf32>
    %92 = tpu.matmul %90, %91, %cst_20 {dimension_numbers = #tpu.dot_dimension_numbers<[1], [0], [0], [1], [0, 0, 1, 1], [], []>} : vector<256x32xf32>, vector<32x128xf32>, vector<256x128xf32> -> vector<256x128xf32>
    %c0_21 = arith.constant 0 : index
    %c0_22 = arith.constant 0 : index
    %93 = vector.load %arg8[%c0_21, %c0_22] : memref<1x128xf32, #tpu.memory_space<vmem>>, vector<1x128xf32>
    %94 = vector.broadcast %93 : vector<1x128xf32> to vector<256x128xf32>
    %95 = arith.addf %92, %94 : vector<256x128xf32>
    %c0_23 = arith.constant 0 : index
    %c0_24 = arith.constant 0 : index
    %96 = vector.load %arg9[%c0_23, %c0_24] : memref<256x128xf32, #tpu.memory_space<vmem>>, vector<256x128xf32>
    tpu.vector_store %arg9[%c0_23, %c0_24], %95 {strides = array<i32>} : memref<256x128xf32, #tpu.memory_space<vmem>>, vector<256x128xf32>,
    return
  }
  func.func @transform_0(%arg0: i32) -> (i32, i32, i32) {
    %c0_i32 = arith.constant 0 : i32
    %c0_i32_0 = arith.constant 0 : i32
    %c0_i32_1 = arith.constant 0 : i32
    %c0_i32_2 = arith.constant 0 : i32
    return %c0_i32, %c0_i32_0, %c0_i32_1 : i32, i32, i32
  }
  func.func @transform_1(%arg0: i32) -> (i32, i32, i32, i32) {
    %c0_i32 = arith.constant 0 : i32
    %c0_i32_0 = arith.constant 0 : i32
    %c0_i32_1 = arith.constant 0 : i32
    %c0_i32_2 = arith.constant 0 : i32
    %c0_i32_3 = arith.constant 0 : i32
    return %c0_i32, %c0_i32_0, %c0_i32_1, %c0_i32_2 : i32, i32, i32, i32
  }
  func.func @transform_2(%arg0: i32) -> (i32, i32) {
    %c0_i32 = arith.constant 0 : i32
    %c0_i32_0 = arith.constant 0 : i32
    %c0_i32_1 = arith.constant 0 : i32
    return %c0_i32, %c0_i32_0 : i32, i32
  }
  func.func @transform_3(%arg0: i32) -> (i32, i32) {
    %c0_i32 = arith.constant 0 : i32
    %c0_i32_0 = arith.constant 0 : i32
    %c0_i32_1 = arith.constant 0 : i32
    return %c0_i32, %c0_i32_0 : i32, i32
  }
  func.func @transform_4(%arg0: i32) -> (i32, i32) {
    %c0_i32 = arith.constant 0 : i32
    %c0_i32_0 = arith.constant 0 : i32
    %c0_i32_1 = arith.constant 0 : i32
    return %c0_i32, %c0_i32_0 : i32, i32
  }
  func.func @transform_5(%arg0: i32) -> (i32, i32) {
    %c0_i32 = arith.constant 0 : i32
    %c0_i32_0 = arith.constant 0 : i32
    %c0_i32_1 = arith.constant 0 : i32
    return %c0_i32, %c0_i32_0 : i32, i32
  }
  func.func @transform_6(%arg0: i32) -> (i32, i32) {
    %c0_i32 = arith.constant 0 : i32
    %c0_i32_0 = arith.constant 0 : i32
    %c0_i32_1 = arith.constant 0 : i32
    return %c0_i32, %c0_i32_0 : i32, i32
  }
  func.func @transform_7(%arg0: i32) -> (i32, i32) {
    %c0_i32 = arith.constant 0 : i32
    %c0_i32_0 = arith.constant 0 : i32
    %c0_i32_1 = arith.constant 0 : i32
    return %c0_i32, %c0_i32_0 : i32, i32
  }
  func.func @transform_8(%arg0: i32) -> (i32, i32) {
    %c0_i32 = arith.constant 0 : i32
    %c0_i32_0 = arith.constant 0 : i32
    %c0_i32_1 = arith.constant 0 : i32
    return %c0_i32, %c0_i32_0 : i32, i32
  }
}

</mosaic_0001>

<llo_original>
// kernel: tpu_custom_call.1
$region0: #{tpu_custom_call.1}
  #allocation0 [shape = 'u32[]', space=smem, size = 0x4, offset = 0x4, fixed_abs, tag = 'smem constant byte address 0x4 - core index']
  #allocation1 [shape = 'u32[144,128]{1,0:T(1,128)}', space=vmem, size = 0x12000, scoped, tag = 'internal scratch']
  %s0 = inlined_call_operand.vmem [shape: f32[2,16,3], index: 0, kind: input, shape index: {}]
  %s1 = inlined_call_operand.vmem [shape: f32[2,16,8,3], index: 1, kind: input, shape index: {}]
  %s2 = inlined_call_operand.vmem [shape: f32[3,32], index: 2, kind: input, shape index: {}]
  %s3 = inlined_call_operand.vmem [shape: f32[3,32], index: 3, kind: input, shape index: {}]
  %s4 = inlined_call_operand.vmem [shape: f32[3,32], index: 4, kind: input, shape index: {}]
  %s5 = inlined_call_operand.vmem [shape: f32[1,32], index: 5, kind: input, shape index: {}]
  %s6 = inlined_call_operand.vmem [shape: f32[32,128], index: 6, kind: input, shape index: {}]
  %s7 = inlined_call_operand.vmem [shape: f32[1,128], index: 7, kind: input, shape index: {}]
  %s8 = inlined_call_operand.hbm [shape: f32[256,128], index: 8, kind: output, shape index: {}]
  %s9 = sld [smem:[#allocation0]]
  $region42: #{tpu_custom_call.1} parent=0
    _
  %s11 = ssub.s32 1, %s9
  %s12 = scalar_select 0, %s11, %s9
  $region1: #{tpu_custom_call.1} parent=0
    #allocation2 [shape = 'u8[131072]{0}', space=vmem, size = 0x20000, scoped, tag = 'output window, operand 0, single buffered']
    #allocation3 [shape = 's32[1]{0}', space=sflag, size = 0x4, scoped, tag = 'scoped memory for tpu_custom_call.1']
    %13 = vsyncpa [#allocation3], 0
    // Predicated region
    $region2: #{tpu_custom_call.1} parent=1 // pred_check
      _
    $region3: #{tpu_custom_call.1} parent=1 // pred_check_branch
      %15 = sbr.rel (0) target = $region5
    $region4: #{tpu_custom_call.1} parent=1 // pred_region
      _
    $region5: #{tpu_custom_call.1} parent=1 // pred_fallthru
      _
    // Predicated region
    $region6: #{tpu_custom_call.1} parent=1 // pred_check
      _
    $region7: #{tpu_custom_call.1} parent=1 // pred_check_branch
      %17 = sbr.rel (0) target = $region9
    $region8: #{tpu_custom_call.1} parent=1 // pred_region
      _
    $region9: #{tpu_custom_call.1} parent=1 // pred_fallthru
      _
    // Predicated region
    $region10: #{tpu_custom_call.1} parent=1 // pred_check
      _
    $region11: #{tpu_custom_call.1} parent=1 // pred_check_branch
      %19 = sbr.rel (0) target = $region13
    $region12: #{tpu_custom_call.1} parent=1 // pred_region
      _
    $region13: #{tpu_custom_call.1} parent=1 // pred_fallthru
      _
    // Predicated region
    $region14: #{tpu_custom_call.1} parent=1 // pred_check
      _
    $region15: #{tpu_custom_call.1} parent=1 // pred_check_branch
      %21 = sbr.rel (0) target = $region17
    $region16: #{tpu_custom_call.1} parent=1 // pred_region
      _
    $region17: #{tpu_custom_call.1} parent=1 // pred_fallthru
      _
    // Predicated region
    $region18: #{tpu_custom_call.1} parent=1 // pred_check
      _
    $region19: #{tpu_custom_call.1} parent=1 // pred_check_branch
      %23 = sbr.rel (0) target = $region21
    $region20: #{tpu_custom_call.1} parent=1 // pred_region
      _
    $region21: #{tpu_custom_call.1} parent=1 // pred_fallthru
      _
    // Predicated region
    $region22: #{tpu_custom_call.1} parent=1 // pred_check
      _
    $region23: #{tpu_custom_call.1} parent=1 // pred_check_branch
      %25 = sbr.rel (0) target = $region25
    $region24: #{tpu_custom_call.1} parent=1 // pred_region
      _
    $region25: #{tpu_custom_call.1} parent=1 // pred_fallthru
      _
    // Predicated region
    $region26: #{tpu_custom_call.1} parent=1 // pred_check
      _
    $region27: #{tpu_custom_call.1} parent=1 // pred_check_branch
      %27 = sbr.rel (0) target = $region29
    $region28: #{tpu_custom_call.1} parent=1 // pred_region
      _
    $region29: #{tpu_custom_call.1} parent=1 // pred_fallthru
      _
    // Predicated region
    $region30: #{tpu_custom_call.1} parent=1 // pred_check
      _
    $region31: #{tpu_custom_call.1} parent=1 // pred_check_branch
      %29 = sbr.rel (0) target = $region33
    $region32: #{tpu_custom_call.1} parent=1 // pred_region
      _
    $region33: #{tpu_custom_call.1} parent=1 // pred_fallthru
      _
    %v30 = vld [vmem:[%s0] sm:$0xff]
    %v31 = vld [vmem:[%s0 + $0x8] sm:$0xff]
    %v32 = vld [vmem:[%s0 + $0x10] sm:$0xff]
    %v33 = vld [vmem:[%s0 + $0x18] sm:$0xff]
    %v34 = vld [vmem:[%s1] sm:$0xff]
    %v35 = vld [vmem:[%s1 + $0x8] sm:$0xff]
    %v36 = vld [vmem:[%s1 + $0x10] sm:$0xff]
    %v37 = vld [vmem:[%s1 + $0x18] sm:$0xff]
    %v38 = vld [vmem:[%s1 + $0x20] sm:$0xff]
    %v39 = vld [vmem:[%s1 + $0x28] sm:$0xff]
    %v40 = vld [vmem:[%s1 + $0x30] sm:$0xff]
    %v41 = vld [vmem:[%s1 + $0x38] sm:$0xff]
    %v42 = vld [vmem:[%s1 + $0x40] sm:$0xff]
    %v43 = vld [vmem:[%s1 + $0x48] sm:$0xff]
    %v44 = vld [vmem:[%s1 + $0x50] sm:$0xff]
    %v45 = vld [vmem:[%s1 + $0x58] sm:$0xff]
    %v46 = vld [vmem:[%s1 + $0x60] sm:$0xff]
    %v47 = vld [vmem:[%s1 + $0x68] sm:$0xff]
    %v48 = vld [vmem:[%s1 + $0x70] sm:$0xff]
    %v49 = vld [vmem:[%s1 + $0x78] sm:$0xff]
    %v50 = vld [vmem:[%s1 + $0x80] sm:$0xff]
    %v51 = vld [vmem:[%s1 + $0x88] sm:$0xff]
    %v52 = vld [vmem:[%s1 + $0x90] sm:$0xff]
    %v53 = vld [vmem:[%s1 + $0x98] sm:$0xff]
    %v54 = vld [vmem:[%s1 + $0xa0] sm:$0xff]
    %v55 = vld [vmem:[%s1 + $0xa8] sm:$0xff]
    %v56 = vld [vmem:[%s1 + $0xb0] sm:$0xff]
    %v57 = vld [vmem:[%s1 + $0xb8] sm:$0xff]
    %v58 = vld [vmem:[%s1 + $0xc0] sm:$0xff]
    %v59 = vld [vmem:[%s1 + $0xc8] sm:$0xff]
    %v60 = vld [vmem:[%s1 + $0xd0] sm:$0xff]
    %v61 = vld [vmem:[%s1 + $0xd8] sm:$0xff]
    %v62 = vld [vmem:[%s1 + $0xe0] sm:$0xff]
    %v63 = vld [vmem:[%s1 + $0xe8] sm:$0xff]
    %v64 = vld [vmem:[%s1 + $0xf0] sm:$0xff]
    %v65 = vld [vmem:[%s1 + $0xf8] sm:$0xff]
    %v70 = vcombine.high %v30, %v30
    %v72 = vunpack.c.l.s4 1966171168
    %v73 = vunpack.c.0.s8 %v72
    %v74 = vlaneseq
    %v75 = vshrl.u32 %v74, 7
    %v76 = vsub.s32 %v73, %v75
    %v77 = vrot.slane %v30, %v76
    %v79 = vunpack.c.l.s4 1966171168
    %v80 = vunpack.c.0.s8 %v79
    %v81 = vlaneseq
    %v82 = vshrl.u32 %v81, 7
    %v83 = vsub.s32 %v80, %v82
    %v84 = vrot.slane %v70, %v83
    %v85 = vcombine.high %v77, %v77
    %v86 = vcombine.high %v84, %v84
    %v88 = vunpack.c.l.s4 1966171168
    %v89 = vunpack.c.0.s8 %v88
    %v90 = vlaneseq
    %v91 = vshrl.u32 %v90, 7
    %v92 = vsub.s32 %v89, %v91
    %v93 = vrot.slane %v77, %v92
    %v95 = vunpack.c.l.s4 1966171168
    %v96 = vunpack.c.0.s8 %v95
    %v97 = vlaneseq
    %v98 = vshrl.u32 %v97, 7
    %v99 = vsub.s32 %v96, %v98
    %v100 = vrot.slane %v84, %v99
    %v102 = vunpack.c.l.s4 1966171168
    %v103 = vunpack.c.0.s8 %v102
    %v104 = vlaneseq
    %v105 = vshrl.u32 %v104, 7
    %v106 = vsub.s32 %v103, %v105
    %v107 = vrot.slane %v85, %v106
    %v109 = vunpack.c.l.s4 1966171168
    %v110 = vunpack.c.0.s8 %v109
    %v111 = vlaneseq
    %v112 = vshrl.u32 %v111, 7
    %v113 = vsub.s32 %v110, %v112
    %v114 = vrot.slane %v86, %v113
    %v115 = vcombine.high %v93, %v93
    %v116 = vcombine.high %v100, %v100
    %v117 = vcombine.high %v107, %v107
    %v118 = vcombine.high %v114, %v114
    %v119 = vcombine.high %v31, %v31
    %v121 = vunpack.c.l.s4 1966171168
    %v122 = vunpack.c.0.s8 %v121
    %v123 = vlaneseq
    %v124 = vshrl.u32 %v123, 7
    %v125 = vsub.s32 %v122, %v124
    %v126 = vrot.slane %v31, %v125
    %v128 = vunpack.c.l.s4 1966171168
    %v129 = vunpack.c.0.s8 %v128
    %v130 = vlaneseq
    %v131 = vshrl.u32 %v130, 7
    %v132 = vsub.s32 %v129, %v131
    %v133 = vrot.slane %v119, %v132
    %v134 = vcombine.high %v126, %v126
    %v135 = vcombine.high %v133, %v133
    %v137 = vunpack.c.l.s4 1966171168
    %v138 = vunpack.c.0.s8 %v137
    %v139 = vlaneseq
    %v140 = vshrl.u32 %v139, 7
    %v141 = vsub.s32 %v138, %v140
    %v142 = vrot.slane %v126, %v141
    %v144 = vunpack.c.l.s4 1966171168
    %v145 = vunpack.c.0.s8 %v144
    %v146 = vlaneseq
    %v147 = vshrl.u32 %v146, 7
    %v148 = vsub.s32 %v145, %v147
    %v149 = vrot.slane %v133, %v148
    %v151 = vunpack.c.l.s4 1966171168
    %v152 = vunpack.c.0.s8 %v151
    %v153 = vlaneseq
    %v154 = vshrl.u32 %v153, 7
    %v155 = vsub.s32 %v152, %v154
    %v156 = vrot.slane %v134, %v155
    %v158 = vunpack.c.l.s4 1966171168
    %v159 = vunpack.c.0.s8 %v158
    %v160 = vlaneseq
    %v161 = vshrl.u32 %v160, 7
    %v162 = vsub.s32 %v159, %v161
    %v163 = vrot.slane %v135, %v162
    %v164 = vcombine.high %v142, %v142
    %v165 = vcombine.high %v149, %v149
    %v166 = vcombine.high %v156, %v156
    %v167 = vcombine.high %v163, %v163
    %v168 = vcombine.high %v32, %v32
    %v170 = vunpack.c.l.s4 1966171168
    %v171 = vunpack.c.0.s8 %v170
    %v172 = vlaneseq
    %v173 = vshrl.u32 %v172, 7
    %v174 = vsub.s32 %v171, %v173
    %v175 = vrot.slane %v32, %v174
    %v177 = vunpack.c.l.s4 1966171168
    %v178 = vunpack.c.0.s8 %v177
    %v179 = vlaneseq
    %v180 = vshrl.u32 %v179, 7
    %v181 = vsub.s32 %v178, %v180
    %v182 = vrot.slane %v168, %v181
    %v183 = vcombine.high %v175, %v175
    %v184 = vcombine.high %v182, %v182
    %v186 = vunpack.c.l.s4 1966171168
    %v187 = vunpack.c.0.s8 %v186
    %v188 = vlaneseq
    %v189 = vshrl.u32 %v188, 7
    %v190 = vsub.s32 %v187, %v189
    %v191 = vrot.slane %v175, %v190
    %v193 = vunpack.c.l.s4 1966171168
    %v194 = vunpack.c.0.s8 %v193
    %v195 = vlaneseq
    %v196 = vshrl.u32 %v195, 7
    %v197 = vsub.s32 %v194, %v196
    %v198 = vrot.slane %v182, %v197
    %v200 = vunpack.c.l.s4 1966171168
    %v201 = vunpack.c.0.s8 %v200
    %v202 = vlaneseq
    %v203 = vshrl.u32 %v202, 7
    %v204 = vsub.s32 %v201, %v203
    %v205 = vrot.slane %v183, %v204
    %v207 = vunpack.c.l.s4 1966171168
    %v208 = vunpack.c.0.s8 %v207
    %v209 = vlaneseq
    %v210 = vshrl.u32 %v209, 7
    %v211 = vsub.s32 %v208, %v210
    %v212 = vrot.slane %v184, %v211
    %v213 = vcombine.high %v191, %v191
    %v214 = vcombine.high %v198, %v198
    %v215 = vcombine.high %v205, %v205
    %v216 = vcombine.high %v212, %v212
    %v217 = vcombine.high %v33, %v33
    %v219 = vunpack.c.l.s4 1966171168
    %v220 = vunpack.c.0.s8 %v219
    %v221 = vlaneseq
    %v222 = vshrl.u32 %v221, 7
    %v223 = vsub.s32 %v220, %v222
    %v224 = vrot.slane %v33, %v223
    %v226 = vunpack.c.l.s4 1966171168
    %v227 = vunpack.c.0.s8 %v226
    %v228 = vlaneseq
    %v229 = vshrl.u32 %v228, 7
    %v230 = vsub.s32 %v227, %v229
    %v231 = vrot.slane %v217, %v230
    %v232 = vcombine.high %v224, %v224
    %v233 = vcombine.high %v231, %v231
    %v235 = vunpack.c.l.s4 1966171168
    %v236 = vunpack.c.0.s8 %v235
    %v237 = vlaneseq
    %v238 = vshrl.u32 %v237, 7
    %v239 = vsub.s32 %v236, %v238
    %v240 = vrot.slane %v224, %v239
    %v242 = vunpack.c.l.s4 1966171168
    %v243 = vunpack.c.0.s8 %v242
    %v244 = vlaneseq
    %v245 = vshrl.u32 %v244, 7
    %v246 = vsub.s32 %v243, %v245
    %v247 = vrot.slane %v231, %v246
    %v249 = vunpack.c.l.s4 1966171168
    %v250 = vunpack.c.0.s8 %v249
    %v251 = vlaneseq
    %v252 = vshrl.u32 %v251, 7
    %v253 = vsub.s32 %v250, %v252
    %v254 = vrot.slane %v232, %v253
    %v256 = vunpack.c.l.s4 1966171168
    %v257 = vunpack.c.0.s8 %v256
    %v258 = vlaneseq
    %v259 = vshrl.u32 %v258, 7
    %v260 = vsub.s32 %v257, %v259
    %v261 = vrot.slane %v233, %v260
    %v262 = vcombine.high %v240, %v240
    %v263 = vcombine.high %v247, %v247
    %v264 = vcombine.high %v254, %v254
    %v265 = vcombine.high %v261, %v261
    %v266 = vlaneseq
    %v267 = vshrl.u32 %v266, 7
    %v268 = vsub.s32 0, %v267
    %v269 = vrot.slane %v93, %v268
    %v270 = vlaneseq
    %v271 = vshrl.u32 %v270, 7
    %v272 = vsub.s32 0, %v271
    %v273 = vrot.slane %v107, %v272
    %v274 = vlaneseq
    %v275 = vshrl.u32 %v274, 7
    %v276 = vsub.s32 0, %v275
    %v277 = vrot.slane %v115, %v276
    %v278 = vlaneseq
    %v279 = vshrl.u32 %v278, 7
    %v280 = vsub.s32 0, %v279
    %v281 = vrot.slane %v117, %v280
    %v282 = vlaneseq
    %v283 = vshrl.u32 %v282, 7
    %v284 = vsub.s32 0, %v283
    %v285 = vrot.slane %v100, %v284
    %v286 = vlaneseq
    %v287 = vshrl.u32 %v286, 7
    %v288 = vsub.s32 0, %v287
    %v289 = vrot.slane %v114, %v288
    %v290 = vlaneseq
    %v291 = vshrl.u32 %v290, 7
    %v292 = vsub.s32 0, %v291
    %v293 = vrot.slane %v116, %v292
    %v294 = vlaneseq
    %v295 = vshrl.u32 %v294, 7
    %v296 = vsub.s32 0, %v295
    %v297 = vrot.slane %v118, %v296
    %v298 = vlaneseq
    %v299 = vshrl.u32 %v298, 7
    %v300 = vsub.s32 0, %v299
    %v301 = vrot.slane %v142, %v300
    %v302 = vlaneseq
    %v303 = vshrl.u32 %v302, 7
    %v304 = vsub.s32 0, %v303
    %v305 = vrot.slane %v156, %v304
    %v306 = vlaneseq
    %v307 = vshrl.u32 %v306, 7
    %v308 = vsub.s32 0, %v307
    %v309 = vrot.slane %v164, %v308
    %v310 = vlaneseq
    %v311 = vshrl.u32 %v310, 7
    %v312 = vsub.s32 0, %v311
    %v313 = vrot.slane %v166, %v312
    %v314 = vlaneseq
    %v315 = vshrl.u32 %v314, 7
    %v316 = vsub.s32 0, %v315
    %v317 = vrot.slane %v149, %v316
    %v318 = vlaneseq
    %v319 = vshrl.u32 %v318, 7
    %v320 = vsub.s32 0, %v319
    %v321 = vrot.slane %v163, %v320
    %v322 = vlaneseq
    %v323 = vshrl.u32 %v322, 7
    %v324 = vsub.s32 0, %v323
    %v325 = vrot.slane %v165, %v324
    %v326 = vlaneseq
    %v327 = vshrl.u32 %v326, 7
    %v328 = vsub.s32 0, %v327
    %v329 = vrot.slane %v167, %v328
    %v330 = vlaneseq
    %v331 = vshrl.u32 %v330, 7
    %v332 = vsub.s32 0, %v331
    %v333 = vrot.slane %v191, %v332
    %v334 = vlaneseq
    %v335 = vshrl.u32 %v334, 7
    %v336 = vsub.s32 0, %v335
    %v337 = vrot.slane %v205, %v336
    %v338 = vlaneseq
    %v339 = vshrl.u32 %v338, 7
    %v340 = vsub.s32 0, %v339
    %v341 = vrot.slane %v213, %v340
    %v342 = vlaneseq
    %v343 = vshrl.u32 %v342, 7
    %v344 = vsub.s32 0, %v343
    %v345 = vrot.slane %v215, %v344
    %v346 = vlaneseq
    %v347 = vshrl.u32 %v346, 7
    %v348 = vsub.s32 0, %v347
    %v349 = vrot.slane %v198, %v348
    %v350 = vlaneseq
    %v351 = vshrl.u32 %v350, 7
    %v352 = vsub.s32 0, %v351
    %v353 = vrot.slane %v212, %v352
    %v354 = vlaneseq
    %v355 = vshrl.u32 %v354, 7
    %v356 = vsub.s32 0, %v355
    %v357 = vrot.slane %v214, %v356
    %v358 = vlaneseq
    %v359 = vshrl.u32 %v358, 7
    %v360 = vsub.s32 0, %v359
    %v361 = vrot.slane %v216, %v360
    %v362 = vlaneseq
    %v363 = vshrl.u32 %v362, 7
    %v364 = vsub.s32 0, %v363
    %v365 = vrot.slane %v240, %v364
    %v366 = vlaneseq
    %v367 = vshrl.u32 %v366, 7
    %v368 = vsub.s32 0, %v367
    %v369 = vrot.slane %v254, %v368
    %v370 = vlaneseq
    %v371 = vshrl.u32 %v370, 7
    %v372 = vsub.s32 0, %v371
    %v373 = vrot.slane %v262, %v372
    %v374 = vlaneseq
    %v375 = vshrl.u32 %v374, 7
    %v376 = vsub.s32 0, %v375
    %v377 = vrot.slane %v264, %v376
    %v378 = vlaneseq
    %v379 = vshrl.u32 %v378, 7
    %v380 = vsub.s32 0, %v379
    %v381 = vrot.slane %v247, %v380
    %v382 = vlaneseq
    %v383 = vshrl.u32 %v382, 7
    %v384 = vsub.s32 0, %v383
    %v385 = vrot.slane %v261, %v384
    %v386 = vlaneseq
    %v387 = vshrl.u32 %v386, 7
    %v388 = vsub.s32 0, %v387
    %v389 = vrot.slane %v263, %v388
    %v390 = vlaneseq
    %v391 = vshrl.u32 %v390, 7
    %v392 = vsub.s32 0, %v391
    %v393 = vrot.slane %v265, %v392
    %v426 = vsub.f32 %v34, %v269
    %v427 = vsub.f32 %v35, %v273
    %v428 = vsub.f32 %v36, %v277
    %v429 = vsub.f32 %v37, %v281
    %v430 = vsub.f32 %v38, %v285
    %v431 = vsub.f32 %v39, %v289
    %v432 = vsub.f32 %v40, %v293
    %v433 = vsub.f32 %v41, %v297
    %v434 = vsub.f32 %v42, %v301
    %v435 = vsub.f32 %v43, %v305
    %v436 = vsub.f32 %v44, %v309
    %v437 = vsub.f32 %v45, %v313
    %v438 = vsub.f32 %v46, %v317
    %v439 = vsub.f32 %v47, %v321
    %v440 = vsub.f32 %v48, %v325
    %v441 = vsub.f32 %v49, %v329
    %v442 = vsub.f32 %v50, %v333
    %v443 = vsub.f32 %v51, %v337
    %v444 = vsub.f32 %v52, %v341
    %v445 = vsub.f32 %v53, %v345
    %v446 = vsub.f32 %v54, %v349
    %v447 = vsub.f32 %v55, %v353
    %v448 = vsub.f32 %v56, %v357
    %v449 = vsub.f32 %v57, %v361
    %v450 = vsub.f32 %v58, %v365
    %v451 = vsub.f32 %v59, %v369
    %v452 = vsub.f32 %v60, %v373
    %v453 = vsub.f32 %v61, %v377
    %v454 = vsub.f32 %v62, %v381
    %v455 = vsub.f32 %v63, %v385
    %v456 = vsub.f32 %v64, %v389
    %v457 = vsub.f32 %v65, %v393
    %vm458 = vcmask 23552
    %v459 = vsel %vm458, %v426, 0.0
    %v460 = vrot.slane %v459, 4
    %v461 = vadd.f32 %v459, %v460
    %v462 = vrot.slane %v461, 2
    %v463 = vadd.f32 %v461, %v462
    %v464 = vrot.slane %v463, 1
    %v465 = vadd.f32 %v463, %v464
    %v466 = vsel %vm458, %v427, 0.0
    %v467 = vrot.slane %v466, 4
    %v468 = vadd.f32 %v466, %v467
    %v469 = vrot.slane %v468, 2
    %v470 = vadd.f32 %v468, %v469
    %v471 = vrot.slane %v470, 1
    %v472 = vadd.f32 %v470, %v471
    %v473 = vsel %vm458, %v428, 0.0
    %v474 = vrot.slane %v473, 4
    %v475 = vadd.f32 %v473, %v474
    %v476 = vrot.slane %v475, 2
    %v477 = vadd.f32 %v475, %v476
    %v478 = vrot.slane %v477, 1
    %v479 = vadd.f32 %v477, %v478
    %v480 = vsel %vm458, %v429, 0.0
    %v481 = vrot.slane %v480, 4
    %v482 = vadd.f32 %v480, %v481
    %v483 = vrot.slane %v482, 2
    %v484 = vadd.f32 %v482, %v483
    %v485 = vrot.slane %v484, 1
    %v486 = vadd.f32 %v484, %v485
    %v487 = vsel %vm458, %v430, 0.0
    %v488 = vrot.slane %v487, 4
    %v489 = vadd.f32 %v487, %v488
    %v490 = vrot.slane %v489, 2
    %v491 = vadd.f32 %v489, %v490
    %v492 = vrot.slane %v491, 1
    %v493 = vadd.f32 %v491, %v492
    %v494 = vsel %vm458, %v431, 0.0
    %v495 = vrot.slane %v494, 4
    %v496 = vadd.f32 %v494, %v495
    %v497 = vrot.slane %v496, 2
    %v498 = vadd.f32 %v496, %v497
    %v499 = vrot.slane %v498, 1
    %v500 = vadd.f32 %v498, %v499
    %v501 = vsel %vm458, %v432, 0.0
    %v502 = vrot.slane %v501, 4
    %v503 = vadd.f32 %v501, %v502
    %v504 = vrot.slane %v503, 2
    %v505 = vadd.f32 %v503, %v504
    %v506 = vrot.slane %v505, 1
    %v507 = vadd.f32 %v505, %v506
    %v508 = vsel %vm458, %v433, 0.0
    %v509 = vrot.slane %v508, 4
    %v510 = vadd.f32 %v508, %v509
    %v511 = vrot.slane %v510, 2
    %v512 = vadd.f32 %v510, %v511
    %v513 = vrot.slane %v512, 1
    %v514 = vadd.f32 %v512, %v513
    %v515 = vsel %vm458, %v434, 0.0
    %v516 = vrot.slane %v515, 4
    %v517 = vadd.f32 %v515, %v516
    %v518 = vrot.slane %v517, 2
    %v519 = vadd.f32 %v517, %v518
    %v520 = vrot.slane %v519, 1
    %v521 = vadd.f32 %v519, %v520
    %v522 = vsel %vm458, %v435, 0.0
    %v523 = vrot.slane %v522, 4
    %v524 = vadd.f32 %v522, %v523
    %v525 = vrot.slane %v524, 2
    %v526 = vadd.f32 %v524, %v525
    %v527 = vrot.slane %v526, 1
    %v528 = vadd.f32 %v526, %v527
    %v529 = vsel %vm458, %v436, 0.0
    %v530 = vrot.slane %v529, 4
    %v531 = vadd.f32 %v529, %v530
    %v532 = vrot.slane %v531, 2
    %v533 = vadd.f32 %v531, %v532
    %v534 = vrot.slane %v533, 1
    %v535 = vadd.f32 %v533, %v534
    %v536 = vsel %vm458, %v437, 0.0
    %v537 = vrot.slane %v536, 4
    %v538 = vadd.f32 %v536, %v537
    %v539 = vrot.slane %v538, 2
    %v540 = vadd.f32 %v538, %v539
    %v541 = vrot.slane %v540, 1
    %v542 = vadd.f32 %v540, %v541
    %v543 = vsel %vm458, %v438, 0.0
    %v544 = vrot.slane %v543, 4
    %v545 = vadd.f32 %v543, %v544
    %v546 = vrot.slane %v545, 2
    %v547 = vadd.f32 %v545, %v546
    %v548 = vrot.slane %v547, 1
    %v549 = vadd.f32 %v547, %v548
    %v550 = vsel %vm458, %v439, 0.0
    %v551 = vrot.slane %v550, 4
    %v552 = vadd.f32 %v550, %v551
    %v553 = vrot.slane %v552, 2
    %v554 = vadd.f32 %v552, %v553
    %v555 = vrot.slane %v554, 1
    %v556 = vadd.f32 %v554, %v555
    %v557 = vsel %vm458, %v440, 0.0
    %v558 = vrot.slane %v557, 4
    %v559 = vadd.f32 %v557, %v558
    %v560 = vrot.slane %v559, 2
    %v561 = vadd.f32 %v559, %v560
    %v562 = vrot.slane %v561, 1
    %v563 = vadd.f32 %v561, %v562
    %v564 = vsel %vm458, %v441, 0.0
    %v565 = vrot.slane %v564, 4
    %v566 = vadd.f32 %v564, %v565
    %v567 = vrot.slane %v566, 2
    %v568 = vadd.f32 %v566, %v567
    %v569 = vrot.slane %v568, 1
    %v570 = vadd.f32 %v568, %v569
    %v571 = vsel %vm458, %v442, 0.0
    %v572 = vrot.slane %v571, 4
    %v573 = vadd.f32 %v571, %v572
    %v574 = vrot.slane %v573, 2
    %v575 = vadd.f32 %v573, %v574
    %v576 = vrot.slane %v575, 1
    %v577 = vadd.f32 %v575, %v576
    %v578 = vsel %vm458, %v443, 0.0
    %v579 = vrot.slane %v578, 4
    %v580 = vadd.f32 %v578, %v579
    %v581 = vrot.slane %v580, 2
    %v582 = vadd.f32 %v580, %v581
    %v583 = vrot.slane %v582, 1
    %v584 = vadd.f32 %v582, %v583
    %v585 = vsel %vm458, %v444, 0.0
    %v586 = vrot.slane %v585, 4
    %v587 = vadd.f32 %v585, %v586
    %v588 = vrot.slane %v587, 2
    %v589 = vadd.f32 %v587, %v588
    %v590 = vrot.slane %v589, 1
    %v591 = vadd.f32 %v589, %v590
    %v592 = vsel %vm458, %v445, 0.0
    %v593 = vrot.slane %v592, 4
    %v594 = vadd.f32 %v592, %v593
    %v595 = vrot.slane %v594, 2
    %v596 = vadd.f32 %v594, %v595
    %v597 = vrot.slane %v596, 1
    %v598 = vadd.f32 %v596, %v597
    %v599 = vsel %vm458, %v446, 0.0
    %v600 = vrot.slane %v599, 4
    %v601 = vadd.f32 %v599, %v600
    %v602 = vrot.slane %v601, 2
    %v603 = vadd.f32 %v601, %v602
    %v604 = vrot.slane %v603, 1
    %v605 = vadd.f32 %v603, %v604
    %v606 = vsel %vm458, %v447, 0.0
    %v607 = vrot.slane %v606, 4
    %v608 = vadd.f32 %v606, %v607
    %v609 = vrot.slane %v608, 2
    %v610 = vadd.f32 %v608, %v609
    %v611 = vrot.slane %v610, 1
    %v612 = vadd.f32 %v610, %v611
    %v613 = vsel %vm458, %v448, 0.0
    %v614 = vrot.slane %v613, 4
    %v615 = vadd.f32 %v613, %v614
    %v616 = vrot.slane %v615, 2
    %v617 = vadd.f32 %v615, %v616
    %v618 = vrot.slane %v617, 1
    %v619 = vadd.f32 %v617, %v618
    %v620 = vsel %vm458, %v449, 0.0
    %v621 = vrot.slane %v620, 4
    %v622 = vadd.f32 %v620, %v621
    %v623 = vrot.slane %v622, 2
    %v624 = vadd.f32 %v622, %v623
    %v625 = vrot.slane %v624, 1
    %v626 = vadd.f32 %v624, %v625
    %v627 = vsel %vm458, %v450, 0.0
    %v628 = vrot.slane %v627, 4
    %v629 = vadd.f32 %v627, %v628
    %v630 = vrot.slane %v629, 2
    %v631 = vadd.f32 %v629, %v630
    %v632 = vrot.slane %v631, 1
    %v633 = vadd.f32 %v631, %v632
    %v634 = vsel %vm458, %v451, 0.0
    %v635 = vrot.slane %v634, 4
    %v636 = vadd.f32 %v634, %v635
    %v637 = vrot.slane %v636, 2
    %v638 = vadd.f32 %v636, %v637
    %v639 = vrot.slane %v638, 1
    %v640 = vadd.f32 %v638, %v639
    %v641 = vsel %vm458, %v452, 0.0
    %v642 = vrot.slane %v641, 4
    %v643 = vadd.f32 %v641, %v642
    %v644 = vrot.slane %v643, 2
    %v645 = vadd.f32 %v643, %v644
    %v646 = vrot.slane %v645, 1
    %v647 = vadd.f32 %v645, %v646
    %v648 = vsel %vm458, %v453, 0.0
    %v649 = vrot.slane %v648, 4
    %v650 = vadd.f32 %v648, %v649
    %v651 = vrot.slane %v650, 2
    %v652 = vadd.f32 %v650, %v651
    %v653 = vrot.slane %v652, 1
    %v654 = vadd.f32 %v652, %v653
    %v655 = vsel %vm458, %v454, 0.0
    %v656 = vrot.slane %v655, 4
    %v657 = vadd.f32 %v655, %v656
    %v658 = vrot.slane %v657, 2
    %v659 = vadd.f32 %v657, %v658
    %v660 = vrot.slane %v659, 1
    %v661 = vadd.f32 %v659, %v660
    %v662 = vsel %vm458, %v455, 0.0
    %v663 = vrot.slane %v662, 4
    %v664 = vadd.f32 %v662, %v663
    %v665 = vrot.slane %v664, 2
    %v666 = vadd.f32 %v664, %v665
    %v667 = vrot.slane %v666, 1
    %v668 = vadd.f32 %v666, %v667
    %v669 = vsel %vm458, %v456, 0.0
    %v670 = vrot.slane %v669, 4
    %v671 = vadd.f32 %v669, %v670
    %v672 = vrot.slane %v671, 2
    %v673 = vadd.f32 %v671, %v672
    %v674 = vrot.slane %v673, 1
    %v675 = vadd.f32 %v673, %v674
    %v676 = vsel %vm458, %v457, 0.0
    %v677 = vrot.slane %v676, 4
    %v678 = vadd.f32 %v676, %v677
    %v679 = vrot.slane %v678, 2
    %v680 = vadd.f32 %v678, %v679
    %v681 = vrot.slane %v680, 1
    %v682 = vadd.f32 %v680, %v681
    %v683 = vrcp.pop 8.0
    %v684 = vmul.f32 %v465, %v683
    %v685 = vmul.f32 %v472, %v683
    %v686 = vmul.f32 %v479, %v683
    %v687 = vmul.f32 %v486, %v683
    %v688 = vmul.f32 %v493, %v683
    %v689 = vmul.f32 %v500, %v683
    %v690 = vmul.f32 %v507, %v683
    %v691 = vmul.f32 %v514, %v683
    %v692 = vmul.f32 %v521, %v683
    %v693 = vmul.f32 %v528, %v683
    %v694 = vmul.f32 %v535, %v683
    %v695 = vmul.f32 %v542, %v683
    %v696 = vmul.f32 %v549, %v683
    %v697 = vmul.f32 %v556, %v683
    %v698 = vmul.f32 %v563, %v683
    %v699 = vmul.f32 %v570, %v683
    %v700 = vmul.f32 %v577, %v683
    %v701 = vmul.f32 %v584, %v683
    %v702 = vmul.f32 %v591, %v683
    %v703 = vmul.f32 %v598, %v683
    %v704 = vmul.f32 %v605, %v683
    %v705 = vmul.f32 %v612, %v683
    %v706 = vmul.f32 %v619, %v683
    %v707 = vmul.f32 %v626, %v683
    %v708 = vmul.f32 %v633, %v683
    %v709 = vmul.f32 %v640, %v683
    %v710 = vmul.f32 %v647, %v683
    %v711 = vmul.f32 %v654, %v683
    %v712 = vmul.f32 %v661, %v683
    %v713 = vmul.f32 %v668, %v683
    %v714 = vmul.f32 %v675, %v683
    %v715 = vmul.f32 %v682, %v683
    %v716 = vsub.f32 %v426, %v684
    %v717 = vsub.f32 %v427, %v685
    %v718 = vsub.f32 %v428, %v686
    %v719 = vsub.f32 %v429, %v687
    %v720 = vsub.f32 %v430, %v688
    %v721 = vsub.f32 %v431, %v689
    %v722 = vsub.f32 %v432, %v690
    %v723 = vsub.f32 %v433, %v691
    %v724 = vsub.f32 %v434, %v692
    %v725 = vsub.f32 %v435, %v693
    %v726 = vsub.f32 %v436, %v694
    %v727 = vsub.f32 %v437, %v695
    %v728 = vsub.f32 %v438, %v696
    %v729 = vsub.f32 %v439, %v697
    %v730 = vsub.f32 %v440, %v698
    %v731 = vsub.f32 %v441, %v699
    %v732 = vsub.f32 %v442, %v700
    %v733 = vsub.f32 %v443, %v701
    %v734 = vsub.f32 %v444, %v702
    %v735 = vsub.f32 %v445, %v703
    %v736 = vsub.f32 %v446, %v704
    %v737 = vsub.f32 %v447, %v705
    %v738 = vsub.f32 %v448, %v706
    %v739 = vsub.f32 %v449, %v707
    %v740 = vsub.f32 %v450, %v708
    %v741 = vsub.f32 %v451, %v709
    %v742 = vsub.f32 %v452, %v710
    %v743 = vsub.f32 %v453, %v711
    %v744 = vsub.f32 %v454, %v712
    %v745 = vsub.f32 %v455, %v713
    %v746 = vsub.f32 %v456, %v714
    %v747 = vsub.f32 %v457, %v715
    %v748 = vmul.f32 %v716, %v716
    %v749 = vmul.f32 %v717, %v717
    %v750 = vmul.f32 %v718, %v718
    %v751 = vmul.f32 %v719, %v719
    %v752 = vmul.f32 %v720, %v720
    %v753 = vmul.f32 %v721, %v721
    %v754 = vmul.f32 %v722, %v722
    %v755 = vmul.f32 %v723, %v723
    %v756 = vmul.f32 %v724, %v724
    %v757 = vmul.f32 %v725, %v725
    %v758 = vmul.f32 %v726, %v726
    %v759 = vmul.f32 %v727, %v727
    %v760 = vmul.f32 %v728, %v728
    %v761 = vmul.f32 %v729, %v729
    %v762 = vmul.f32 %v730, %v730
    %v763 = vmul.f32 %v731, %v731
    %v764 = vmul.f32 %v732, %v732
    %v765 = vmul.f32 %v733, %v733
    %v766 = vmul.f32 %v734, %v734
    %v767 = vmul.f32 %v735, %v735
    %v768 = vmul.f32 %v736, %v736
    %v769 = vmul.f32 %v737, %v737
    %v770 = vmul.f32 %v738, %v738
    %v771 = vmul.f32 %v739, %v739
    %v772 = vmul.f32 %v740, %v740
    %v773 = vmul.f32 %v741, %v741
    %v774 = vmul.f32 %v742, %v742
    %v775 = vmul.f32 %v743, %v743
    %v776 = vmul.f32 %v744, %v744
    %v777 = vmul.f32 %v745, %v745
    %v778 = vmul.f32 %v746, %v746
    %v779 = vmul.f32 %v747, %v747
    %v780 = vsel %vm458, %v748, 0.0
    %v781 = vrot.slane %v780, 4
    %v782 = vadd.f32 %v780, %v781
    %v783 = vrot.slane %v782, 2
    %v784 = vadd.f32 %v782, %v783
    %v785 = vrot.slane %v784, 1
    %v786 = vadd.f32 %v784, %v785
    %v787 = vsel %vm458, %v749, 0.0
    %v788 = vrot.slane %v787, 4
    %v789 = vadd.f32 %v787, %v788
    %v790 = vrot.slane %v789, 2
    %v791 = vadd.f32 %v789, %v790
    %v792 = vrot.slane %v791, 1
    %v793 = vadd.f32 %v791, %v792
    %v794 = vsel %vm458, %v750, 0.0
    %v795 = vrot.slane %v794, 4
    %v796 = vadd.f32 %v794, %v795
    %v797 = vrot.slane %v796, 2
    %v798 = vadd.f32 %v796, %v797
    %v799 = vrot.slane %v798, 1
    %v800 = vadd.f32 %v798, %v799
    %v801 = vsel %vm458, %v751, 0.0
    %v802 = vrot.slane %v801, 4
    %v803 = vadd.f32 %v801, %v802
    %v804 = vrot.slane %v803, 2
    %v805 = vadd.f32 %v803, %v804
    %v806 = vrot.slane %v805, 1
    %v807 = vadd.f32 %v805, %v806
    %v808 = vsel %vm458, %v752, 0.0
    %v809 = vrot.slane %v808, 4
    %v810 = vadd.f32 %v808, %v809
    %v811 = vrot.slane %v810, 2
    %v812 = vadd.f32 %v810, %v811
    %v813 = vrot.slane %v812, 1
    %v814 = vadd.f32 %v812, %v813
    %v815 = vsel %vm458, %v753, 0.0
    %v816 = vrot.slane %v815, 4
    %v817 = vadd.f32 %v815, %v816
    %v818 = vrot.slane %v817, 2
    %v819 = vadd.f32 %v817, %v818
    %v820 = vrot.slane %v819, 1
    %v821 = vadd.f32 %v819, %v820
    %v822 = vsel %vm458, %v754, 0.0
    %v823 = vrot.slane %v822, 4
    %v824 = vadd.f32 %v822, %v823
    %v825 = vrot.slane %v824, 2
    %v826 = vadd.f32 %v824, %v825
    %v827 = vrot.slane %v826, 1
    %v828 = vadd.f32 %v826, %v827
    %v829 = vsel %vm458, %v755, 0.0
    %v830 = vrot.slane %v829, 4
    %v831 = vadd.f32 %v829, %v830
    %v832 = vrot.slane %v831, 2
    %v833 = vadd.f32 %v831, %v832
    %v834 = vrot.slane %v833, 1
    %v835 = vadd.f32 %v833, %v834
    %v836 = vsel %vm458, %v756, 0.0
    %v837 = vrot.slane %v836, 4
    %v838 = vadd.f32 %v836, %v837
    %v839 = vrot.slane %v838, 2
    %v840 = vadd.f32 %v838, %v839
    %v841 = vrot.slane %v840, 1
    %v842 = vadd.f32 %v840, %v841
    %v843 = vsel %vm458, %v757, 0.0
    %v844 = vrot.slane %v843, 4
    %v845 = vadd.f32 %v843, %v844
    %v846 = vrot.slane %v845, 2
    %v847 = vadd.f32 %v845, %v846
    %v848 = vrot.slane %v847, 1
    %v849 = vadd.f32 %v847, %v848
    %v850 = vsel %vm458, %v758, 0.0
    %v851 = vrot.slane %v850, 4
    %v852 = vadd.f32 %v850, %v851
    %v853 = vrot.slane %v852, 2
    %v854 = vadd.f32 %v852, %v853
    %v855 = vrot.slane %v854, 1
    %v856 = vadd.f32 %v854, %v855
    %v857 = vsel %vm458, %v759, 0.0
    %v858 = vrot.slane %v857, 4
    %v859 = vadd.f32 %v857, %v858
    %v860 = vrot.slane %v859, 2
    %v861 = vadd.f32 %v859, %v860
    %v862 = vrot.slane %v861, 1
    %v863 = vadd.f32 %v861, %v862
    %v864 = vsel %vm458, %v760, 0.0
    %v865 = vrot.slane %v864, 4
    %v866 = vadd.f32 %v864, %v865
    %v867 = vrot.slane %v866, 2
    %v868 = vadd.f32 %v866, %v867
    %v869 = vrot.slane %v868, 1
    %v870 = vadd.f32 %v868, %v869
    %v871 = vsel %vm458, %v761, 0.0
    %v872 = vrot.slane %v871, 4
    %v873 = vadd.f32 %v871, %v872
    %v874 = vrot.slane %v873, 2
    %v875 = vadd.f32 %v873, %v874
    %v876 = vrot.slane %v875, 1
    %v877 = vadd.f32 %v875, %v876
    %v878 = vsel %vm458, %v762, 0.0
    %v879 = vrot.slane %v878, 4
    %v880 = vadd.f32 %v878, %v879
    %v881 = vrot.slane %v880, 2
    %v882 = vadd.f32 %v880, %v881
    %v883 = vrot.slane %v882, 1
    %v884 = vadd.f32 %v882, %v883
    %v885 = vsel %vm458, %v763, 0.0
    %v886 = vrot.slane %v885, 4
    %v887 = vadd.f32 %v885, %v886
    %v888 = vrot.slane %v887, 2
    %v889 = vadd.f32 %v887, %v888
    %v890 = vrot.slane %v889, 1
    %v891 = vadd.f32 %v889, %v890
    %v892 = vsel %vm458, %v764, 0.0
    %v893 = vrot.slane %v892, 4
    %v894 = vadd.f32 %v892, %v893
    %v895 = vrot.slane %v894, 2
    %v896 = vadd.f32 %v894, %v895
    %v897 = vrot.slane %v896, 1
    %v898 = vadd.f32 %v896, %v897
    %v899 = vsel %vm458, %v765, 0.0
    %v900 = vrot.slane %v899, 4
    %v901 = vadd.f32 %v899, %v900
    %v902 = vrot.slane %v901, 2
    %v903 = vadd.f32 %v901, %v902
    %v904 = vrot.slane %v903, 1
    %v905 = vadd.f32 %v903, %v904
    %v906 = vsel %vm458, %v766, 0.0
    %v907 = vrot.slane %v906, 4
    %v908 = vadd.f32 %v906, %v907
    %v909 = vrot.slane %v908, 2
    %v910 = vadd.f32 %v908, %v909
    %v911 = vrot.slane %v910, 1
    %v912 = vadd.f32 %v910, %v911
    %v913 = vsel %vm458, %v767, 0.0
    %v914 = vrot.slane %v913, 4
    %v915 = vadd.f32 %v913, %v914
    %v916 = vrot.slane %v915, 2
    %v917 = vadd.f32 %v915, %v916
    %v918 = vrot.slane %v917, 1
    %v919 = vadd.f32 %v917, %v918
    %v920 = vsel %vm458, %v768, 0.0
    %v921 = vrot.slane %v920, 4
    %v922 = vadd.f32 %v920, %v921
    %v923 = vrot.slane %v922, 2
    %v924 = vadd.f32 %v922, %v923
    %v925 = vrot.slane %v924, 1
    %v926 = vadd.f32 %v924, %v925
    %v927 = vsel %vm458, %v769, 0.0
    %v928 = vrot.slane %v927, 4
    %v929 = vadd.f32 %v927, %v928
    %v930 = vrot.slane %v929, 2
    %v931 = vadd.f32 %v929, %v930
    %v932 = vrot.slane %v931, 1
    %v933 = vadd.f32 %v931, %v932
    %v934 = vsel %vm458, %v770, 0.0
    %v935 = vrot.slane %v934, 4
    %v936 = vadd.f32 %v934, %v935
    %v937 = vrot.slane %v936, 2
    %v938 = vadd.f32 %v936, %v937
    %v939 = vrot.slane %v938, 1
    %v940 = vadd.f32 %v938, %v939
    %v941 = vsel %vm458, %v771, 0.0
    %v942 = vrot.slane %v941, 4
    %v943 = vadd.f32 %v941, %v942
    %v944 = vrot.slane %v943, 2
    %v945 = vadd.f32 %v943, %v944
    %v946 = vrot.slane %v945, 1
    %v947 = vadd.f32 %v945, %v946
    %v948 = vsel %vm458, %v772, 0.0
    %v949 = vrot.slane %v948, 4
    %v950 = vadd.f32 %v948, %v949
    %v951 = vrot.slane %v950, 2
    %v952 = vadd.f32 %v950, %v951
    %v953 = vrot.slane %v952, 1
    %v954 = vadd.f32 %v952, %v953
    %v955 = vsel %vm458, %v773, 0.0
    %v956 = vrot.slane %v955, 4
    %v957 = vadd.f32 %v955, %v956
    %v958 = vrot.slane %v957, 2
    %v959 = vadd.f32 %v957, %v958
    %v960 = vrot.slane %v959, 1
    %v961 = vadd.f32 %v959, %v960
    %v962 = vsel %vm458, %v774, 0.0
    %v963 = vrot.slane %v962, 4
    %v964 = vadd.f32 %v962, %v963
    %v965 = vrot.slane %v964, 2
    %v966 = vadd.f32 %v964, %v965
    %v967 = vrot.slane %v966, 1
    %v968 = vadd.f32 %v966, %v967
    %v969 = vsel %vm458, %v775, 0.0
    %v970 = vrot.slane %v969, 4
    %v971 = vadd.f32 %v969, %v970
    %v972 = vrot.slane %v971, 2
    %v973 = vadd.f32 %v971, %v972
    %v974 = vrot.slane %v973, 1
    %v975 = vadd.f32 %v973, %v974
    %v976 = vsel %vm458, %v776, 0.0
    %v977 = vrot.slane %v976, 4
    %v978 = vadd.f32 %v976, %v977
    %v979 = vrot.slane %v978, 2
    %v980 = vadd.f32 %v978, %v979
    %v981 = vrot.slane %v980, 1
    %v982 = vadd.f32 %v980, %v981
    %v983 = vsel %vm458, %v777, 0.0
    %v984 = vrot.slane %v983, 4
    %v985 = vadd.f32 %v983, %v984
    %v986 = vrot.slane %v985, 2
    %v987 = vadd.f32 %v985, %v986
    %v988 = vrot.slane %v987, 1
    %v989 = vadd.f32 %v987, %v988
    %v990 = vsel %vm458, %v778, 0.0
    %v991 = vrot.slane %v990, 4
    %v992 = vadd.f32 %v990, %v991
    %v993 = vrot.slane %v992, 2
    %v994 = vadd.f32 %v992, %v993
    %v995 = vrot.slane %v994, 1
    %v996 = vadd.f32 %v994, %v995
    %v997 = vsel %vm458, %v779, 0.0
    %v998 = vrot.slane %v997, 4
    %v999 = vadd.f32 %v997, %v998
    %v1000 = vrot.slane %v999, 2
    %v1001 = vadd.f32 %v999, %v1000
    %v1002 = vrot.slane %v1001, 1
    %v1003 = vadd.f32 %v1001, %v1002
    %v1004 = vmul.f32 %v786, 0.14285715
    %v1005 = vmul.f32 %v793, 0.14285715
    %v1006 = vmul.f32 %v800, 0.14285715
    %v1007 = vmul.f32 %v807, 0.14285715
    %v1008 = vmul.f32 %v814, 0.14285715
    %v1009 = vmul.f32 %v821, 0.14285715
    %v1010 = vmul.f32 %v828, 0.14285715
    %v1011 = vmul.f32 %v835, 0.14285715
    %v1012 = vmul.f32 %v842, 0.14285715
    %v1013 = vmul.f32 %v849, 0.14285715
    %v1014 = vmul.f32 %v856, 0.14285715
    %v1015 = vmul.f32 %v863, 0.14285715
    %v1016 = vmul.f32 %v870, 0.14285715
    %v1017 = vmul.f32 %v877, 0.14285715
    %v1018 = vmul.f32 %v884, 0.14285715
    %v1019 = vmul.f32 %v891, 0.14285715
    %v1020 = vmul.f32 %v898, 0.14285715
    %v1021 = vmul.f32 %v905, 0.14285715
    %v1022 = vmul.f32 %v912, 0.14285715
    %v1023 = vmul.f32 %v919, 0.14285715
    %v1024 = vmul.f32 %v926, 0.14285715
    %v1025 = vmul.f32 %v933, 0.14285715
    %v1026 = vmul.f32 %v940, 0.14285715
    %v1027 = vmul.f32 %v947, 0.14285715
    %v1028 = vmul.f32 %v954, 0.14285715
    %v1029 = vmul.f32 %v961, 0.14285715
    %v1030 = vmul.f32 %v968, 0.14285715
    %v1031 = vmul.f32 %v975, 0.14285715
    %v1032 = vmul.f32 %v982, 0.14285715
    %v1033 = vmul.f32 %v989, 0.14285715
    %v1034 = vmul.f32 %v996, 0.14285715
    %v1035 = vmul.f32 %v1003, 0.14285715
    %v1036 = vrsqrt.pop %v1004
    %v1037 = vmul.f32 %v1004, %v1036
    %vm1038 = vcmp.eq.f32.partialorder %v1004, inf
    %v1039 = vsel %vm1038, %v1004, %v1037
    %vm1040 = vcmp.eq.f32.partialorder %v1004, 0.0
    %v1041 = vand.u32 %v1004, 2147483648
    %v1042 = vsel %vm1040, %v1041, %v1039
    %v1043 = vrsqrt.pop %v1005
    %v1044 = vmul.f32 %v1005, %v1043
    %vm1045 = vcmp.eq.f32.partialorder %v1005, inf
    %v1046 = vsel %vm1045, %v1005, %v1044
    %vm1047 = vcmp.eq.f32.partialorder %v1005, 0.0
    %v1048 = vand.u32 %v1005, 2147483648
    %v1049 = vsel %vm1047, %v1048, %v1046
    %v1050 = vrsqrt.pop %v1006
    %v1051 = vmul.f32 %v1006, %v1050
    %vm1052 = vcmp.eq.f32.partialorder %v1006, inf
    %v1053 = vsel %vm1052, %v1006, %v1051
    %vm1054 = vcmp.eq.f32.partialorder %v1006, 0.0
    %v1055 = vand.u32 %v1006, 2147483648
    %v1056 = vsel %vm1054, %v1055, %v1053
    %v1057 = vrsqrt.pop %v1007
    %v1058 = vmul.f32 %v1007, %v1057
    %vm1059 = vcmp.eq.f32.partialorder %v1007, inf
    %v1060 = vsel %vm1059, %v1007, %v1058
    %vm1061 = vcmp.eq.f32.partialorder %v1007, 0.0
    %v1062 = vand.u32 %v1007, 2147483648
    %v1063 = vsel %vm1061, %v1062, %v1060
    %v1064 = vrsqrt.pop %v1008
    %v1065 = vmul.f32 %v1008, %v1064
    %vm1066 = vcmp.eq.f32.partialorder %v1008, inf
    %v1067 = vsel %vm1066, %v1008, %v1065
    %vm1068 = vcmp.eq.f32.partialorder %v1008, 0.0
    %v1069 = vand.u32 %v1008, 2147483648
    %v1070 = vsel %vm1068, %v1069, %v1067
    %v1071 = vrsqrt.pop %v1009
    %v1072 = vmul.f32 %v1009, %v1071
    %vm1073 = vcmp.eq.f32.partialorder %v1009, inf
    %v1074 = vsel %vm1073, %v1009, %v1072
    %vm1075 = vcmp.eq.f32.partialorder %v1009, 0.0
    %v1076 = vand.u32 %v1009, 2147483648
    %v1077 = vsel %vm1075, %v1076, %v1074
    %v1078 = vrsqrt.pop %v1010
    %v1079 = vmul.f32 %v1010, %v1078
    %vm1080 = vcmp.eq.f32.partialorder %v1010, inf
    %v1081 = vsel %vm1080, %v1010, %v1079
    %vm1082 = vcmp.eq.f32.partialorder %v1010, 0.0
    %v1083 = vand.u32 %v1010, 2147483648
    %v1084 = vsel %vm1082, %v1083, %v1081
    %v1085 = vrsqrt.pop %v1011
    %v1086 = vmul.f32 %v1011, %v1085
    %vm1087 = vcmp.eq.f32.partialorder %v1011, inf
    %v1088 = vsel %vm1087, %v1011, %v1086
    %vm1089 = vcmp.eq.f32.partialorder %v1011, 0.0
    %v1090 = vand.u32 %v1011, 2147483648
    %v1091 = vsel %vm1089, %v1090, %v1088
    %v1092 = vrsqrt.pop %v1012
    %v1093 = vmul.f32 %v1012, %v1092
    %vm1094 = vcmp.eq.f32.partialorder %v1012, inf
    %v1095 = vsel %vm1094, %v1012, %v1093
    %vm1096 = vcmp.eq.f32.partialorder %v1012, 0.0
    %v1097 = vand.u32 %v1012, 2147483648
    %v1098 = vsel %vm1096, %v1097, %v1095
    %v1099 = vrsqrt.pop %v1013
    %v1100 = vmul.f32 %v1013, %v1099
    %vm1101 = vcmp.eq.f32.partialorder %v1013, inf
    %v1102 = vsel %vm1101, %v1013, %v1100
    %vm1103 = vcmp.eq.f32.partialorder %v1013, 0.0
    %v1104 = vand.u32 %v1013, 2147483648
    %v1105 = vsel %vm1103, %v1104, %v1102
    %v1106 = vrsqrt.pop %v1014
    %v1107 = vmul.f32 %v1014, %v1106
    %vm1108 = vcmp.eq.f32.partialorder %v1014, inf
    %v1109 = vsel %vm1108, %v1014, %v1107
    %vm1110 = vcmp.eq.f32.partialorder %v1014, 0.0
    %v1111 = vand.u32 %v1014, 2147483648
    %v1112 = vsel %vm1110, %v1111, %v1109
    %v1113 = vrsqrt.pop %v1015
    %v1114 = vmul.f32 %v1015, %v1113
    %vm1115 = vcmp.eq.f32.partialorder %v1015, inf
    %v1116 = vsel %vm1115, %v1015, %v1114
    %vm1117 = vcmp.eq.f32.partialorder %v1015, 0.0
    %v1118 = vand.u32 %v1015, 2147483648
    %v1119 = vsel %vm1117, %v1118, %v1116
    %v1120 = vrsqrt.pop %v1016
    %v1121 = vmul.f32 %v1016, %v1120
    %vm1122 = vcmp.eq.f32.partialorder %v1016, inf
    %v1123 = vsel %vm1122, %v1016, %v1121
    %vm1124 = vcmp.eq.f32.partialorder %v1016, 0.0
    %v1125 = vand.u32 %v1016, 2147483648
    %v1126 = vsel %vm1124, %v1125, %v1123
    %v1127 = vrsqrt.pop %v1017
    %v1128 = vmul.f32 %v1017, %v1127
    %vm1129 = vcmp.eq.f32.partialorder %v1017, inf
    %v1130 = vsel %vm1129, %v1017, %v1128
    %vm1131 = vcmp.eq.f32.partialorder %v1017, 0.0
    %v1132 = vand.u32 %v1017, 2147483648
    %v1133 = vsel %vm1131, %v1132, %v1130
    %v1134 = vrsqrt.pop %v1018
    %v1135 = vmul.f32 %v1018, %v1134
    %vm1136 = vcmp.eq.f32.partialorder %v1018, inf
    %v1137 = vsel %vm1136, %v1018, %v1135
    %vm1138 = vcmp.eq.f32.partialorder %v1018, 0.0
    %v1139 = vand.u32 %v1018, 2147483648
    %v1140 = vsel %vm1138, %v1139, %v1137
    %v1141 = vrsqrt.pop %v1019
    %v1142 = vmul.f32 %v1019, %v1141
    %vm1143 = vcmp.eq.f32.partialorder %v1019, inf
    %v1144 = vsel %vm1143, %v1019, %v1142
    %vm1145 = vcmp.eq.f32.partialorder %v1019, 0.0
    %v1146 = vand.u32 %v1019, 2147483648
    %v1147 = vsel %vm1145, %v1146, %v1144
    %v1148 = vrsqrt.pop %v1020
    %v1149 = vmul.f32 %v1020, %v1148
    %vm1150 = vcmp.eq.f32.partialorder %v1020, inf
    %v1151 = vsel %vm1150, %v1020, %v1149
    %vm1152 = vcmp.eq.f32.partialorder %v1020, 0.0
    %v1153 = vand.u32 %v1020, 2147483648
    %v1154 = vsel %vm1152, %v1153, %v1151
    %v1155 = vrsqrt.pop %v1021
    %v1156 = vmul.f32 %v1021, %v1155
    %vm1157 = vcmp.eq.f32.partialorder %v1021, inf
    %v1158 = vsel %vm1157, %v1021, %v1156
    %vm1159 = vcmp.eq.f32.partialorder %v1021, 0.0
    %v1160 = vand.u32 %v1021, 2147483648
    %v1161 = vsel %vm1159, %v1160, %v1158
    %v1162 = vrsqrt.pop %v1022
    %v1163 = vmul.f32 %v1022, %v1162
    %vm1164 = vcmp.eq.f32.partialorder %v1022, inf
    %v1165 = vsel %vm1164, %v1022, %v1163
    %vm1166 = vcmp.eq.f32.partialorder %v1022, 0.0
    %v1167 = vand.u32 %v1022, 2147483648
    %v1168 = vsel %vm1166, %v1167, %v1165
    %v1169 = vrsqrt.pop %v1023
    %v1170 = vmul.f32 %v1023, %v1169
    %vm1171 = vcmp.eq.f32.partialorder %v1023, inf
    %v1172 = vsel %vm1171, %v1023, %v1170
    %vm1173 = vcmp.eq.f32.partialorder %v1023, 0.0
    %v1174 = vand.u32 %v1023, 2147483648
    %v1175 = vsel %vm1173, %v1174, %v1172
    %v1176 = vrsqrt.pop %v1024
    %v1177 = vmul.f32 %v1024, %v1176
    %vm1178 = vcmp.eq.f32.partialorder %v1024, inf
    %v1179 = vsel %vm1178, %v1024, %v1177
    %vm1180 = vcmp.eq.f32.partialorder %v1024, 0.0
    %v1181 = vand.u32 %v1024, 2147483648
    %v1182 = vsel %vm1180, %v1181, %v1179
    %v1183 = vrsqrt.pop %v1025
    %v1184 = vmul.f32 %v1025, %v1183
    %vm1185 = vcmp.eq.f32.partialorder %v1025, inf
    %v1186 = vsel %vm1185, %v1025, %v1184
    %vm1187 = vcmp.eq.f32.partialorder %v1025, 0.0
    %v1188 = vand.u32 %v1025, 2147483648
    %v1189 = vsel %vm1187, %v1188, %v1186
    %v1190 = vrsqrt.pop %v1026
    %v1191 = vmul.f32 %v1026, %v1190
    %vm1192 = vcmp.eq.f32.partialorder %v1026, inf
    %v1193 = vsel %vm1192, %v1026, %v1191
    %vm1194 = vcmp.eq.f32.partialorder %v1026, 0.0
    %v1195 = vand.u32 %v1026, 2147483648
    %v1196 = vsel %vm1194, %v1195, %v1193
    %v1197 = vrsqrt.pop %v1027
    %v1198 = vmul.f32 %v1027, %v1197
    %vm1199 = vcmp.eq.f32.partialorder %v1027, inf
    %v1200 = vsel %vm1199, %v1027, %v1198
    %vm1201 = vcmp.eq.f32.partialorder %v1027, 0.0
    %v1202 = vand.u32 %v1027, 2147483648
    %v1203 = vsel %vm1201, %v1202, %v1200
    %v1204 = vrsqrt.pop %v1028
    %v1205 = vmul.f32 %v1028, %v1204
    %vm1206 = vcmp.eq.f32.partialorder %v1028, inf
    %v1207 = vsel %vm1206, %v1028, %v1205
    %vm1208 = vcmp.eq.f32.partialorder %v1028, 0.0
    %v1209 = vand.u32 %v1028, 2147483648
    %v1210 = vsel %vm1208, %v1209, %v1207
    %v1211 = vrsqrt.pop %v1029
    %v1212 = vmul.f32 %v1029, %v1211
    %vm1213 = vcmp.eq.f32.partialorder %v1029, inf
    %v1214 = vsel %vm1213, %v1029, %v1212
    %vm1215 = vcmp.eq.f32.partialorder %v1029, 0.0
    %v1216 = vand.u32 %v1029, 2147483648
    %v1217 = vsel %vm1215, %v1216, %v1214
    %v1218 = vrsqrt.pop %v1030
    %v1219 = vmul.f32 %v1030, %v1218
    %vm1220 = vcmp.eq.f32.partialorder %v1030, inf
    %v1221 = vsel %vm1220, %v1030, %v1219
    %vm1222 = vcmp.eq.f32.partialorder %v1030, 0.0
    %v1223 = vand.u32 %v1030, 2147483648
    %v1224 = vsel %vm1222, %v1223, %v1221
    %v1225 = vrsqrt.pop %v1031
    %v1226 = vmul.f32 %v1031, %v1225
    %vm1227 = vcmp.eq.f32.partialorder %v1031, inf
    %v1228 = vsel %vm1227, %v1031, %v1226
    %vm1229 = vcmp.eq.f32.partialorder %v1031, 0.0
    %v1230 = vand.u32 %v1031, 2147483648
    %v1231 = vsel %vm1229, %v1230, %v1228
    %v1232 = vrsqrt.pop %v1032
    %v1233 = vmul.f32 %v1032, %v1232
    %vm1234 = vcmp.eq.f32.partialorder %v1032, inf
    %v1235 = vsel %vm1234, %v1032, %v1233
    %vm1236 = vcmp.eq.f32.partialorder %v1032, 0.0
    %v1237 = vand.u32 %v1032, 2147483648
    %v1238 = vsel %vm1236, %v1237, %v1235
    %v1239 = vrsqrt.pop %v1033
    %v1240 = vmul.f32 %v1033, %v1239
    %vm1241 = vcmp.eq.f32.partialorder %v1033, inf
    %v1242 = vsel %vm1241, %v1033, %v1240
    %vm1243 = vcmp.eq.f32.partialorder %v1033, 0.0
    %v1244 = vand.u32 %v1033, 2147483648
    %v1245 = vsel %vm1243, %v1244, %v1242
    %v1246 = vrsqrt.pop %v1034
    %v1247 = vmul.f32 %v1034, %v1246
    %vm1248 = vcmp.eq.f32.partialorder %v1034, inf
    %v1249 = vsel %vm1248, %v1034, %v1247
    %vm1250 = vcmp.eq.f32.partialorder %v1034, 0.0
    %v1251 = vand.u32 %v1034, 2147483648
    %v1252 = vsel %vm1250, %v1251, %v1249
    %v1253 = vrsqrt.pop %v1035
    %v1254 = vmul.f32 %v1035, %v1253
    %vm1255 = vcmp.eq.f32.partialorder %v1035, inf
    %v1256 = vsel %vm1255, %v1035, %v1254
    %vm1257 = vcmp.eq.f32.partialorder %v1035, 0.0
    %v1258 = vand.u32 %v1035, 2147483648
    %v1259 = vsel %vm1257, %v1258, %v1256
    %v1260 = vld [vmem:[%s2] sm:$0x7]
    %v1261 = vld [vmem:[%s3] sm:$0x7]
    %v1262 = vld [vmem:[%s4] sm:$0x7]
    %v1263 = vld [vmem:[%s5] sm:$0x1]
    %1265 = vset.pattern.permute.xlu0 0
    %1266 = vperm.xlu0 %1265, %v1042
    %v1267 = vpop.permute.xlu0 %1266
    %1270 = vset.pattern.permute.xlu0 0
    %1271 = vperm.xlu0 %1270, %v1049
    %v1272 = vpop.permute.xlu0 %1271
    %1275 = vset.pattern.permute.xlu0 0
    %1276 = vperm.xlu0 %1275, %v1056
    %v1277 = vpop.permute.xlu0 %1276
    %1280 = vset.pattern.permute.xlu0 0
    %1281 = vperm.xlu0 %1280, %v1063
    %v1282 = vpop.permute.xlu0 %1281
    %1285 = vset.pattern.permute.xlu0 0
    %1286 = vperm.xlu0 %1285, %v1070
    %v1287 = vpop.permute.xlu0 %1286
    %1290 = vset.pattern.permute.xlu0 0
    %1291 = vperm.xlu0 %1290, %v1077
    %v1292 = vpop.permute.xlu0 %1291
    %1295 = vset.pattern.permute.xlu0 0
    %1296 = vperm.xlu0 %1295, %v1084
    %v1297 = vpop.permute.xlu0 %1296
    %1300 = vset.pattern.permute.xlu0 0
    %1301 = vperm.xlu0 %1300, %v1091
    %v1302 = vpop.permute.xlu0 %1301
    %1305 = vset.pattern.permute.xlu0 0
    %1306 = vperm.xlu0 %1305, %v1098
    %v1307 = vpop.permute.xlu0 %1306
    %1310 = vset.pattern.permute.xlu0 0
    %1311 = vperm.xlu0 %1310, %v1105
    %v1312 = vpop.permute.xlu0 %1311
    %1315 = vset.pattern.permute.xlu0 0
    %1316 = vperm.xlu0 %1315, %v1112
    %v1317 = vpop.permute.xlu0 %1316
    %1320 = vset.pattern.permute.xlu0 0
    %1321 = vperm.xlu0 %1320, %v1119
    %v1322 = vpop.permute.xlu0 %1321
    %1325 = vset.pattern.permute.xlu0 0
    %1326 = vperm.xlu0 %1325, %v1126
    %v1327 = vpop.permute.xlu0 %1326
    %1330 = vset.pattern.permute.xlu0 0
    %1331 = vperm.xlu0 %1330, %v1133
    %v1332 = vpop.permute.xlu0 %1331
    %1335 = vset.pattern.permute.xlu0 0
    %1336 = vperm.xlu0 %1335, %v1140
    %v1337 = vpop.permute.xlu0 %1336
    %1340 = vset.pattern.permute.xlu0 0
    %1341 = vperm.xlu0 %1340, %v1147
    %v1342 = vpop.permute.xlu0 %1341
    %1345 = vset.pattern.permute.xlu0 0
    %1346 = vperm.xlu0 %1345, %v1154
    %v1347 = vpop.permute.xlu0 %1346
    %1350 = vset.pattern.permute.xlu0 0
    %1351 = vperm.xlu0 %1350, %v1161
    %v1352 = vpop.permute.xlu0 %1351
    %1355 = vset.pattern.permute.xlu0 0
    %1356 = vperm.xlu0 %1355, %v1168
    %v1357 = vpop.permute.xlu0 %1356
    %1360 = vset.pattern.permute.xlu0 0
    %1361 = vperm.xlu0 %1360, %v1175
    %v1362 = vpop.permute.xlu0 %1361
    %1365 = vset.pattern.permute.xlu0 0
    %1366 = vperm.xlu0 %1365, %v1182
    %v1367 = vpop.permute.xlu0 %1366
    %1370 = vset.pattern.permute.xlu0 0
    %1371 = vperm.xlu0 %1370, %v1189
    %v1372 = vpop.permute.xlu0 %1371
    %1375 = vset.pattern.permute.xlu0 0
    %1376 = vperm.xlu0 %1375, %v1196
    %v1377 = vpop.permute.xlu0 %1376
    %1380 = vset.pattern.permute.xlu0 0
    %1381 = vperm.xlu0 %1380, %v1203
    %v1382 = vpop.permute.xlu0 %1381
    %1385 = vset.pattern.permute.xlu0 0
    %1386 = vperm.xlu0 %1385, %v1210
    %v1387 = vpop.permute.xlu0 %1386
    %1390 = vset.pattern.permute.xlu0 0
    %1391 = vperm.xlu0 %1390, %v1217
    %v1392 = vpop.permute.xlu0 %1391
    %1395 = vset.pattern.permute.xlu0 0
    %1396 = vperm.xlu0 %1395, %v1224
    %v1397 = vpop.permute.xlu0 %1396
    %1400 = vset.pattern.permute.xlu0 0
    %1401 = vperm.xlu0 %1400, %v1231
    %v1402 = vpop.permute.xlu0 %1401
    %1405 = vset.pattern.permute.xlu0 0
    %1406 = vperm.xlu0 %1405, %v1238
    %v1407 = vpop.permute.xlu0 %1406
    %1410 = vset.pattern.permute.xlu0 0
    %1411 = vperm.xlu0 %1410, %v1245
    %v1412 = vpop.permute.xlu0 %1411
    %1415 = vset.pattern.permute.xlu0 0
    %1416 = vperm.xlu0 %1415, %v1252
    %v1417 = vpop.permute.xlu0 %1416
    %1420 = vset.pattern.permute.xlu0 0
    %1421 = vperm.xlu0 %1420, %v1259
    %v1422 = vpop.permute.xlu0 %1421
    %v1424 = vmul.f32 %v1267, %v1261
    %v1425 = vmul.f32 %v1272, %v1261
    %v1426 = vmul.f32 %v1277, %v1261
    %v1427 = vmul.f32 %v1282, %v1261
    %v1428 = vmul.f32 %v1287, %v1261
    %v1429 = vmul.f32 %v1292, %v1261
    %v1430 = vmul.f32 %v1297, %v1261
    %v1431 = vmul.f32 %v1302, %v1261
    %v1432 = vmul.f32 %v1307, %v1261
    %v1433 = vmul.f32 %v1312, %v1261
    %v1434 = vmul.f32 %v1317, %v1261
    %v1435 = vmul.f32 %v1322, %v1261
    %v1436 = vmul.f32 %v1327, %v1261
    %v1437 = vmul.f32 %v1332, %v1261
    %v1438 = vmul.f32 %v1337, %v1261
    %v1439 = vmul.f32 %v1342, %v1261
    %v1440 = vmul.f32 %v1347, %v1261
    %v1441 = vmul.f32 %v1352, %v1261
    %v1442 = vmul.f32 %v1357, %v1261
    %v1443 = vmul.f32 %v1362, %v1261
    %v1444 = vmul.f32 %v1367, %v1261
    %v1445 = vmul.f32 %v1372, %v1261
    %v1446 = vmul.f32 %v1377, %v1261
    %v1447 = vmul.f32 %v1382, %v1261
    %v1448 = vmul.f32 %v1387, %v1261
    %v1449 = vmul.f32 %v1392, %v1261
    %v1450 = vmul.f32 %v1397, %v1261
    %v1451 = vmul.f32 %v1402, %v1261
    %v1452 = vmul.f32 %v1407, %v1261
    %v1453 = vmul.f32 %v1412, %v1261
    %v1454 = vmul.f32 %v1417, %v1261
    %v1455 = vmul.f32 %v1422, %v1261
    %v1456 = vadd.f32 %v1263, %v1424
    %v1457 = vadd.f32 %v1263, %v1425
    %v1458 = vadd.f32 %v1263, %v1426
    %v1459 = vadd.f32 %v1263, %v1427
    %v1460 = vadd.f32 %v1263, %v1428
    %v1461 = vadd.f32 %v1263, %v1429
    %v1462 = vadd.f32 %v1263, %v1430
    %v1463 = vadd.f32 %v1263, %v1431
    %v1464 = vadd.f32 %v1263, %v1432
    %v1465 = vadd.f32 %v1263, %v1433
    %v1466 = vadd.f32 %v1263, %v1434
    %v1467 = vadd.f32 %v1263, %v1435
    %v1468 = vadd.f32 %v1263, %v1436
    %v1469 = vadd.f32 %v1263, %v1437
    %v1470 = vadd.f32 %v1263, %v1438
    %v1471 = vadd.f32 %v1263, %v1439
    %v1472 = vadd.f32 %v1263, %v1440
    %v1473 = vadd.f32 %v1263, %v1441
    %v1474 = vadd.f32 %v1263, %v1442
    %v1475 = vadd.f32 %v1263, %v1443
    %v1476 = vadd.f32 %v1263, %v1444
    %v1477 = vadd.f32 %v1263, %v1445
    %v1478 = vadd.f32 %v1263, %v1446
    %v1479 = vadd.f32 %v1263, %v1447
    %v1480 = vadd.f32 %v1263, %v1448
    %v1481 = vadd.f32 %v1263, %v1449
    %v1482 = vadd.f32 %v1263, %v1450
    %v1483 = vadd.f32 %v1263, %v1451
    %v1484 = vadd.f32 %v1263, %v1452
    %v1485 = vadd.f32 %v1263, %v1453
    %v1486 = vadd.f32 %v1263, %v1454
    %v1487 = vadd.f32 %v1263, %v1455
    %1489 = vset.pattern.permute.xlu0 0
    %1490 = vperm.xlu0 %1489, %v684
    %v1491 = vpop.permute.xlu0 %1490
    %1494 = vset.pattern.permute.xlu0 0
    %1495 = vperm.xlu0 %1494, %v685
    %v1496 = vpop.permute.xlu0 %1495
    %1499 = vset.pattern.permute.xlu0 0
    %1500 = vperm.xlu0 %1499, %v686
    %v1501 = vpop.permute.xlu0 %1500
    %1504 = vset.pattern.permute.xlu0 0
    %1505 = vperm.xlu0 %1504, %v687
    %v1506 = vpop.permute.xlu0 %1505
    %1509 = vset.pattern.permute.xlu0 0
    %1510 = vperm.xlu0 %1509, %v688
    %v1511 = vpop.permute.xlu0 %1510
    %1514 = vset.pattern.permute.xlu0 0
    %1515 = vperm.xlu0 %1514, %v689
    %v1516 = vpop.permute.xlu0 %1515
    %1519 = vset.pattern.permute.xlu0 0
    %1520 = vperm.xlu0 %1519, %v690
    %v1521 = vpop.permute.xlu0 %1520
    %1524 = vset.pattern.permute.xlu0 0
    %1525 = vperm.xlu0 %1524, %v691
    %v1526 = vpop.permute.xlu0 %1525
    %1529 = vset.pattern.permute.xlu0 0
    %1530 = vperm.xlu0 %1529, %v692
    %v1531 = vpop.permute.xlu0 %1530
    %1534 = vset.pattern.permute.xlu0 0
    %1535 = vperm.xlu0 %1534, %v693
    %v1536 = vpop.permute.xlu0 %1535
    %1539 = vset.pattern.permute.xlu0 0
    %1540 = vperm.xlu0 %1539, %v694
    %v1541 = vpop.permute.xlu0 %1540
    %1544 = vset.pattern.permute.xlu0 0
    %1545 = vperm.xlu0 %1544, %v695
    %v1546 = vpop.permute.xlu0 %1545
    %1549 = vset.pattern.permute.xlu0 0
    %1550 = vperm.xlu0 %1549, %v696
    %v1551 = vpop.permute.xlu0 %1550
    %1554 = vset.pattern.permute.xlu0 0
    %1555 = vperm.xlu0 %1554, %v697
    %v1556 = vpop.permute.xlu0 %1555
    %1559 = vset.pattern.permute.xlu0 0
    %1560 = vperm.xlu0 %1559, %v698
    %v1561 = vpop.permute.xlu0 %1560
    %1564 = vset.pattern.permute.xlu0 0
    %1565 = vperm.xlu0 %1564, %v699
    %v1566 = vpop.permute.xlu0 %1565
    %1569 = vset.pattern.permute.xlu0 0
    %1570 = vperm.xlu0 %1569, %v700
    %v1571 = vpop.permute.xlu0 %1570
    %1574 = vset.pattern.permute.xlu0 0
    %1575 = vperm.xlu0 %1574, %v701
    %v1576 = vpop.permute.xlu0 %1575
    %1579 = vset.pattern.permute.xlu0 0
    %1580 = vperm.xlu0 %1579, %v702
    %v1581 = vpop.permute.xlu0 %1580
    %1584 = vset.pattern.permute.xlu0 0
    %1585 = vperm.xlu0 %1584, %v703
    %v1586 = vpop.permute.xlu0 %1585
    %1589 = vset.pattern.permute.xlu0 0
    %1590 = vperm.xlu0 %1589, %v704
    %v1591 = vpop.permute.xlu0 %1590
    %1594 = vset.pattern.permute.xlu0 0
    %1595 = vperm.xlu0 %1594, %v705
    %v1596 = vpop.permute.xlu0 %1595
    %1599 = vset.pattern.permute.xlu0 0
    %1600 = vperm.xlu0 %1599, %v706
    %v1601 = vpop.permute.xlu0 %1600
    %1604 = vset.pattern.permute.xlu0 0
    %1605 = vperm.xlu0 %1604, %v707
    %v1606 = vpop.permute.xlu0 %1605
    %1609 = vset.pattern.permute.xlu0 0
    %1610 = vperm.xlu0 %1609, %v708
    %v1611 = vpop.permute.xlu0 %1610
    %1614 = vset.pattern.permute.xlu0 0
    %1615 = vperm.xlu0 %1614, %v709
    %v1616 = vpop.permute.xlu0 %1615
    %1619 = vset.pattern.permute.xlu0 0
    %1620 = vperm.xlu0 %1619, %v710
    %v1621 = vpop.permute.xlu0 %1620
    %1624 = vset.pattern.permute.xlu0 0
    %1625 = vperm.xlu0 %1624, %v711
    %v1626 = vpop.permute.xlu0 %1625
    %1629 = vset.pattern.permute.xlu0 0
    %1630 = vperm.xlu0 %1629, %v712
    %v1631 = vpop.permute.xlu0 %1630
    %1634 = vset.pattern.permute.xlu0 0
    %1635 = vperm.xlu0 %1634, %v713
    %v1636 = vpop.permute.xlu0 %1635
    %1639 = vset.pattern.permute.xlu0 0
    %1640 = vperm.xlu0 %1639, %v714
    %v1641 = vpop.permute.xlu0 %1640
    %1644 = vset.pattern.permute.xlu0 0
    %1645 = vperm.xlu0 %1644, %v715
    %v1646 = vpop.permute.xlu0 %1645
    %v1648 = vmul.f32 %v1491, %v1262
    %v1649 = vmul.f32 %v1496, %v1262
    %v1650 = vmul.f32 %v1501, %v1262
    %v1651 = vmul.f32 %v1506, %v1262
    %v1652 = vmul.f32 %v1511, %v1262
    %v1653 = vmul.f32 %v1516, %v1262
    %v1654 = vmul.f32 %v1521, %v1262
    %v1655 = vmul.f32 %v1526, %v1262
    %v1656 = vmul.f32 %v1531, %v1262
    %v1657 = vmul.f32 %v1536, %v1262
    %v1658 = vmul.f32 %v1541, %v1262
    %v1659 = vmul.f32 %v1546, %v1262
    %v1660 = vmul.f32 %v1551, %v1262
    %v1661 = vmul.f32 %v1556, %v1262
    %v1662 = vmul.f32 %v1561, %v1262
    %v1663 = vmul.f32 %v1566, %v1262
    %v1664 = vmul.f32 %v1571, %v1262
    %v1665 = vmul.f32 %v1576, %v1262
    %v1666 = vmul.f32 %v1581, %v1262
    %v1667 = vmul.f32 %v1586, %v1262
    %v1668 = vmul.f32 %v1591, %v1262
    %v1669 = vmul.f32 %v1596, %v1262
    %v1670 = vmul.f32 %v1601, %v1262
    %v1671 = vmul.f32 %v1606, %v1262
    %v1672 = vmul.f32 %v1611, %v1262
    %v1673 = vmul.f32 %v1616, %v1262
    %v1674 = vmul.f32 %v1621, %v1262
    %v1675 = vmul.f32 %v1626, %v1262
    %v1676 = vmul.f32 %v1631, %v1262
    %v1677 = vmul.f32 %v1636, %v1262
    %v1678 = vmul.f32 %v1641, %v1262
    %v1679 = vmul.f32 %v1646, %v1262
    %v1680 = vadd.f32 %v1456, %v1648
    %v1681 = vadd.f32 %v1457, %v1649
    %v1682 = vadd.f32 %v1458, %v1650
    %v1683 = vadd.f32 %v1459, %v1651
    %v1684 = vadd.f32 %v1460, %v1652
    %v1685 = vadd.f32 %v1461, %v1653
    %v1686 = vadd.f32 %v1462, %v1654
    %v1687 = vadd.f32 %v1463, %v1655
    %v1688 = vadd.f32 %v1464, %v1656
    %v1689 = vadd.f32 %v1465, %v1657
    %v1690 = vadd.f32 %v1466, %v1658
    %v1691 = vadd.f32 %v1467, %v1659
    %v1692 = vadd.f32 %v1468, %v1660
    %v1693 = vadd.f32 %v1469, %v1661
    %v1694 = vadd.f32 %v1470, %v1662
    %v1695 = vadd.f32 %v1471, %v1663
    %v1696 = vadd.f32 %v1472, %v1664
    %v1697 = vadd.f32 %v1473, %v1665
    %v1698 = vadd.f32 %v1474, %v1666
    %v1699 = vadd.f32 %v1475, %v1667
    %v1700 = vadd.f32 %v1476, %v1668
    %v1701 = vadd.f32 %v1477, %v1669
    %v1702 = vadd.f32 %v1478, %v1670
    %v1703 = vadd.f32 %v1479, %v1671
    %v1704 = vadd.f32 %v1480, %v1672
    %v1705 = vadd.f32 %v1481, %v1673
    %v1706 = vadd.f32 %v1482, %v1674
    %v1707 = vadd.f32 %v1483, %v1675
    %v1708 = vadd.f32 %v1484, %v1676
    %v1709 = vadd.f32 %v1485, %v1677
    %v1710 = vadd.f32 %v1486, %v1678
    %v1711 = vadd.f32 %v1487, %v1679
    %1712 = vset.pattern.permute.xlu0 1
    %1713 = vperm.xlu0 %1712, %v1042
    %v1714 = vpop.permute.xlu0 %1713
    %1716 = vset.pattern.permute.xlu0 1
    %1717 = vperm.xlu0 %1716, %v1049
    %v1718 = vpop.permute.xlu0 %1717
    %1720 = vset.pattern.permute.xlu0 1
    %1721 = vperm.xlu0 %1720, %v1056
    %v1722 = vpop.permute.xlu0 %1721
    %1724 = vset.pattern.permute.xlu0 1
    %1725 = vperm.xlu0 %1724, %v1063
    %v1726 = vpop.permute.xlu0 %1725
    %1728 = vset.pattern.permute.xlu0 1
    %1729 = vperm.xlu0 %1728, %v1070
    %v1730 = vpop.permute.xlu0 %1729
    %1732 = vset.pattern.permute.xlu0 1
    %1733 = vperm.xlu0 %1732, %v1077
    %v1734 = vpop.permute.xlu0 %1733
    %1736 = vset.pattern.permute.xlu0 1
    %1737 = vperm.xlu0 %1736, %v1084
    %v1738 = vpop.permute.xlu0 %1737
    %1740 = vset.pattern.permute.xlu0 1
    %1741 = vperm.xlu0 %1740, %v1091
    %v1742 = vpop.permute.xlu0 %1741
    %1744 = vset.pattern.permute.xlu0 1
    %1745 = vperm.xlu0 %1744, %v1098
    %v1746 = vpop.permute.xlu0 %1745
    %1748 = vset.pattern.permute.xlu0 1
    %1749 = vperm.xlu0 %1748, %v1105
    %v1750 = vpop.permute.xlu0 %1749
    %1752 = vset.pattern.permute.xlu0 1
    %1753 = vperm.xlu0 %1752, %v1112
    %v1754 = vpop.permute.xlu0 %1753
    %1756 = vset.pattern.permute.xlu0 1
    %1757 = vperm.xlu0 %1756, %v1119
    %v1758 = vpop.permute.xlu0 %1757
    %1760 = vset.pattern.permute.xlu0 1
    %1761 = vperm.xlu0 %1760, %v1126
    %v1762 = vpop.permute.xlu0 %1761
    %1764 = vset.pattern.permute.xlu0 1
    %1765 = vperm.xlu0 %1764, %v1133
    %v1766 = vpop.permute.xlu0 %1765
    %1768 = vset.pattern.permute.xlu0 1
    %1769 = vperm.xlu0 %1768, %v1140
    %v1770 = vpop.permute.xlu0 %1769
    %1772 = vset.pattern.permute.xlu0 1
    %1773 = vperm.xlu0 %1772, %v1147
    %v1774 = vpop.permute.xlu0 %1773
    %1776 = vset.pattern.permute.xlu0 1
    %1777 = vperm.xlu0 %1776, %v1154
    %v1778 = vpop.permute.xlu0 %1777
    %1780 = vset.pattern.permute.xlu0 1
    %1781 = vperm.xlu0 %1780, %v1161
    %v1782 = vpop.permute.xlu0 %1781
    %1784 = vset.pattern.permute.xlu0 1
    %1785 = vperm.xlu0 %1784, %v1168
    %v1786 = vpop.permute.xlu0 %1785
    %1788 = vset.pattern.permute.xlu0 1
    %1789 = vperm.xlu0 %1788, %v1175
    %v1790 = vpop.permute.xlu0 %1789
    %1792 = vset.pattern.permute.xlu0 1
    %1793 = vperm.xlu0 %1792, %v1182
    %v1794 = vpop.permute.xlu0 %1793
    %1796 = vset.pattern.permute.xlu0 1
    %1797 = vperm.xlu0 %1796, %v1189
    %v1798 = vpop.permute.xlu0 %1797
    %1800 = vset.pattern.permute.xlu0 1
    %1801 = vperm.xlu0 %1800, %v1196
    %v1802 = vpop.permute.xlu0 %1801
    %1804 = vset.pattern.permute.xlu0 1
    %1805 = vperm.xlu0 %1804, %v1203
    %v1806 = vpop.permute.xlu0 %1805
    %1808 = vset.pattern.permute.xlu0 1
    %1809 = vperm.xlu0 %1808, %v1210
    %v1810 = vpop.permute.xlu0 %1809
    %1812 = vset.pattern.permute.xlu0 1
    %1813 = vperm.xlu0 %1812, %v1217
    %v1814 = vpop.permute.xlu0 %1813
    %1816 = vset.pattern.permute.xlu0 1
    %1817 = vperm.xlu0 %1816, %v1224
    %v1818 = vpop.permute.xlu0 %1817
    %1820 = vset.pattern.permute.xlu0 1
    %1821 = vperm.xlu0 %1820, %v1231
    %v1822 = vpop.permute.xlu0 %1821
    %1824 = vset.pattern.permute.xlu0 1
    %1825 = vperm.xlu0 %1824, %v1238
    %v1826 = vpop.permute.xlu0 %1825
    %1828 = vset.pattern.permute.xlu0 1
    %1829 = vperm.xlu0 %1828, %v1245
    %v1830 = vpop.permute.xlu0 %1829
    %1832 = vset.pattern.permute.xlu0 1
    %1833 = vperm.xlu0 %1832, %v1252
    %v1834 = vpop.permute.xlu0 %1833
    %1836 = vset.pattern.permute.xlu0 1
    %1837 = vperm.xlu0 %1836, %v1259
    %v1838 = vpop.permute.xlu0 %1837
    %v1840 = vmul.f32 %v1714, %v1261
    %v1841 = vmul.f32 %v1718, %v1261
    %v1842 = vmul.f32 %v1722, %v1261
    %v1843 = vmul.f32 %v1726, %v1261
    %v1844 = vmul.f32 %v1730, %v1261
    %v1845 = vmul.f32 %v1734, %v1261
    %v1846 = vmul.f32 %v1738, %v1261
    %v1847 = vmul.f32 %v1742, %v1261
    %v1848 = vmul.f32 %v1746, %v1261
    %v1849 = vmul.f32 %v1750, %v1261
    %v1850 = vmul.f32 %v1754, %v1261
    %v1851 = vmul.f32 %v1758, %v1261
    %v1852 = vmul.f32 %v1762, %v1261
    %v1853 = vmul.f32 %v1766, %v1261
    %v1854 = vmul.f32 %v1770, %v1261
    %v1855 = vmul.f32 %v1774, %v1261
    %v1856 = vmul.f32 %v1778, %v1261
    %v1857 = vmul.f32 %v1782, %v1261
    %v1858 = vmul.f32 %v1786, %v1261
    %v1859 = vmul.f32 %v1790, %v1261
    %v1860 = vmul.f32 %v1794, %v1261
    %v1861 = vmul.f32 %v1798, %v1261
    %v1862 = vmul.f32 %v1802, %v1261
    %v1863 = vmul.f32 %v1806, %v1261
    %v1864 = vmul.f32 %v1810, %v1261
    %v1865 = vmul.f32 %v1814, %v1261
    %v1866 = vmul.f32 %v1818, %v1261
    %v1867 = vmul.f32 %v1822, %v1261
    %v1868 = vmul.f32 %v1826, %v1261
    %v1869 = vmul.f32 %v1830, %v1261
    %v1870 = vmul.f32 %v1834, %v1261
    %v1871 = vmul.f32 %v1838, %v1261
    %v1905 = vunpack.c.l.s4 1966171168
    %v1906 = vunpack.c.0.s8 %v1905
    %v1907 = vlaneseq
    %v1908 = vshrl.u32 %v1907, 7
    %v1909 = vsub.s32 %v1906, %v1908
    %v1910 = vrot.slane %v1840, %v1909
    %v1911 = vcombine.high %v1910, %v1910
    %v1913 = vunpack.c.l.s4 1966171168
    %v1914 = vunpack.c.0.s8 %v1913
    %v1915 = vlaneseq
    %v1916 = vshrl.u32 %v1915, 7
    %v1917 = vsub.s32 %v1914, %v1916
    %v1918 = vrot.slane %v1911, %v1917
    %v1920 = vunpack.c.l.s4 1966171168
    %v1921 = vunpack.c.0.s8 %v1920
    %v1922 = vlaneseq
    %v1923 = vshrl.u32 %v1922, 7
    %v1924 = vsub.s32 %v1921, %v1923
    %v1925 = vrot.slane %v1841, %v1924
    %v1926 = vcombine.high %v1925, %v1925
    %v1928 = vunpack.c.l.s4 1966171168
    %v1929 = vunpack.c.0.s8 %v1928
    %v1930 = vlaneseq
    %v1931 = vshrl.u32 %v1930, 7
    %v1932 = vsub.s32 %v1929, %v1931
    %v1933 = vrot.slane %v1926, %v1932
    %v1935 = vunpack.c.l.s4 1966171168
    %v1936 = vunpack.c.0.s8 %v1935
    %v1937 = vlaneseq
    %v1938 = vshrl.u32 %v1937, 7
    %v1939 = vsub.s32 %v1936, %v1938
    %v1940 = vrot.slane %v1842, %v1939
    %v1941 = vcombine.high %v1940, %v1940
    %v1943 = vunpack.c.l.s4 1966171168
    %v1944 = vunpack.c.0.s8 %v1943
    %v1945 = vlaneseq
    %v1946 = vshrl.u32 %v1945, 7
    %v1947 = vsub.s32 %v1944, %v1946
    %v1948 = vrot.slane %v1941, %v1947
    %v1950 = vunpack.c.l.s4 1966171168
    %v1951 = vunpack.c.0.s8 %v1950
    %v1952 = vlaneseq
    %v1953 = vshrl.u32 %v1952, 7
    %v1954 = vsub.s32 %v1951, %v1953
    %v1955 = vrot.slane %v1843, %v1954
    %v1956 = vcombine.high %v1955, %v1955
    %v1958 = vunpack.c.l.s4 1966171168
    %v1959 = vunpack.c.0.s8 %v1958
    %v1960 = vlaneseq
    %v1961 = vshrl.u32 %v1960, 7
    %v1962 = vsub.s32 %v1959, %v1961
    %v1963 = vrot.slane %v1956, %v1962
    %v1965 = vunpack.c.l.s4 1966171168
    %v1966 = vunpack.c.0.s8 %v1965
    %v1967 = vlaneseq
    %v1968 = vshrl.u32 %v1967, 7
    %v1969 = vsub.s32 %v1966, %v1968
    %v1970 = vrot.slane %v1844, %v1969
    %v1971 = vcombine.high %v1970, %v1970
    %v1973 = vunpack.c.l.s4 1966171168
    %v1974 = vunpack.c.0.s8 %v1973
    %v1975 = vlaneseq
    %v1976 = vshrl.u32 %v1975, 7
    %v1977 = vsub.s32 %v1974, %v1976
    %v1978 = vrot.slane %v1971, %v1977
    %v1980 = vunpack.c.l.s4 1966171168
    %v1981 = vunpack.c.0.s8 %v1980
    %v1982 = vlaneseq
    %v1983 = vshrl.u32 %v1982, 7
    %v1984 = vsub.s32 %v1981, %v1983
    %v1985 = vrot.slane %v1845, %v1984
    %v1986 = vcombine.high %v1985, %v1985
    %v1988 = vunpack.c.l.s4 1966171168
    %v1989 = vunpack.c.0.s8 %v1988
    %v1990 = vlaneseq
    %v1991 = vshrl.u32 %v1990, 7
    %v1992 = vsub.s32 %v1989, %v1991
    %v1993 = vrot.slane %v1986, %v1992
    %v1995 = vunpack.c.l.s4 1966171168
    %v1996 = vunpack.c.0.s8 %v1995
    %v1997 = vlaneseq
    %v1998 = vshrl.u32 %v1997, 7
    %v1999 = vsub.s32 %v1996, %v1998
    %v2000 = vrot.slane %v1846, %v1999
    %v2001 = vcombine.high %v2000, %v2000
    %v2003 = vunpack.c.l.s4 1966171168
    %v2004 = vunpack.c.0.s8 %v2003
    %v2005 = vlaneseq
    %v2006 = vshrl.u32 %v2005, 7
    %v2007 = vsub.s32 %v2004, %v2006
    %v2008 = vrot.slane %v2001, %v2007
    %v2010 = vunpack.c.l.s4 1966171168
    %v2011 = vunpack.c.0.s8 %v2010
    %v2012 = vlaneseq
    %v2013 = vshrl.u32 %v2012, 7
    %v2014 = vsub.s32 %v2011, %v2013
    %v2015 = vrot.slane %v1847, %v2014
    %v2016 = vcombine.high %v2015, %v2015
    %v2018 = vunpack.c.l.s4 1966171168
    %v2019 = vunpack.c.0.s8 %v2018
    %v2020 = vlaneseq
    %v2021 = vshrl.u32 %v2020, 7
    %v2022 = vsub.s32 %v2019, %v2021
    %v2023 = vrot.slane %v2016, %v2022
    %v2025 = vunpack.c.l.s4 1966171168
    %v2026 = vunpack.c.0.s8 %v2025
    %v2027 = vlaneseq
    %v2028 = vshrl.u32 %v2027, 7
    %v2029 = vsub.s32 %v2026, %v2028
    %v2030 = vrot.slane %v1848, %v2029
    %v2031 = vcombine.high %v2030, %v2030
    %v2033 = vunpack.c.l.s4 1966171168
    %v2034 = vunpack.c.0.s8 %v2033
    %v2035 = vlaneseq
    %v2036 = vshrl.u32 %v2035, 7
    %v2037 = vsub.s32 %v2034, %v2036
    %v2038 = vrot.slane %v2031, %v2037
    %v2040 = vunpack.c.l.s4 1966171168
    %v2041 = vunpack.c.0.s8 %v2040
    %v2042 = vlaneseq
    %v2043 = vshrl.u32 %v2042, 7
    %v2044 = vsub.s32 %v2041, %v2043
    %v2045 = vrot.slane %v1849, %v2044
    %v2046 = vcombine.high %v2045, %v2045
    %v2048 = vunpack.c.l.s4 1966171168
    %v2049 = vunpack.c.0.s8 %v2048
    %v2050 = vlaneseq
    %v2051 = vshrl.u32 %v2050, 7
    %v2052 = vsub.s32 %v2049, %v2051
    %v2053 = vrot.slane %v2046, %v2052
    %v2055 = vunpack.c.l.s4 1966171168
    %v2056 = vunpack.c.0.s8 %v2055
    %v2057 = vlaneseq
    %v2058 = vshrl.u32 %v2057, 7
    %v2059 = vsub.s32 %v2056, %v2058
    %v2060 = vrot.slane %v1850, %v2059
    %v2061 = vcombine.high %v2060, %v2060
    %v2063 = vunpack.c.l.s4 1966171168
    %v2064 = vunpack.c.0.s8 %v2063
    %v2065 = vlaneseq
    %v2066 = vshrl.u32 %v2065, 7
    %v2067 = vsub.s32 %v2064, %v2066
    %v2068 = vrot.slane %v2061, %v2067
    %v2070 = vunpack.c.l.s4 1966171168
    %v2071 = vunpack.c.0.s8 %v2070
    %v2072 = vlaneseq
    %v2073 = vshrl.u32 %v2072, 7
    %v2074 = vsub.s32 %v2071, %v2073
    %v2075 = vrot.slane %v1851, %v2074
    %v2076 = vcombine.high %v2075, %v2075
    %v2078 = vunpack.c.l.s4 1966171168
    %v2079 = vunpack.c.0.s8 %v2078
    %v2080 = vlaneseq
    %v2081 = vshrl.u32 %v2080, 7
    %v2082 = vsub.s32 %v2079, %v2081
    %v2083 = vrot.slane %v2076, %v2082
    %v2085 = vunpack.c.l.s4 1966171168
    %v2086 = vunpack.c.0.s8 %v2085
    %v2087 = vlaneseq
    %v2088 = vshrl.u32 %v2087, 7
    %v2089 = vsub.s32 %v2086, %v2088
    %v2090 = vrot.slane %v1852, %v2089
    %v2091 = vcombine.high %v2090, %v2090
    %v2093 = vunpack.c.l.s4 1966171168
    %v2094 = vunpack.c.0.s8 %v2093
    %v2095 = vlaneseq
    %v2096 = vshrl.u32 %v2095, 7
    %v2097 = vsub.s32 %v2094, %v2096
    %v2098 = vrot.slane %v2091, %v2097
    %v2100 = vunpack.c.l.s4 1966171168
    %v2101 = vunpack.c.0.s8 %v2100
    %v2102 = vlaneseq
    %v2103 = vshrl.u32 %v2102, 7
    %v2104 = vsub.s32 %v2101, %v2103
    %v2105 = vrot.slane %v1853, %v2104
    %v2106 = vcombine.high %v2105, %v2105
    %v2108 = vunpack.c.l.s4 1966171168
    %v2109 = vunpack.c.0.s8 %v2108
    %v2110 = vlaneseq
    %v2111 = vshrl.u32 %v2110, 7
    %v2112 = vsub.s32 %v2109, %v2111
    %v2113 = vrot.slane %v2106, %v2112
    %v2115 = vunpack.c.l.s4 1966171168
    %v2116 = vunpack.c.0.s8 %v2115
    %v2117 = vlaneseq
    %v2118 = vshrl.u32 %v2117, 7
    %v2119 = vsub.s32 %v2116, %v2118
    %v2120 = vrot.slane %v1854, %v2119
    %v2121 = vcombine.high %v2120, %v2120
    %v2123 = vunpack.c.l.s4 1966171168
    %v2124 = vunpack.c.0.s8 %v2123
    %v2125 = vlaneseq
    %v2126 = vshrl.u32 %v2125, 7
    %v2127 = vsub.s32 %v2124, %v2126
    %v2128 = vrot.slane %v2121, %v2127
    %v2130 = vunpack.c.l.s4 1966171168
    %v2131 = vunpack.c.0.s8 %v2130
    %v2132 = vlaneseq
    %v2133 = vshrl.u32 %v2132, 7
    %v2134 = vsub.s32 %v2131, %v2133
    %v2135 = vrot.slane %v1855, %v2134
    %v2136 = vcombine.high %v2135, %v2135
    %v2138 = vunpack.c.l.s4 1966171168
    %v2139 = vunpack.c.0.s8 %v2138
    %v2140 = vlaneseq
    %v2141 = vshrl.u32 %v2140, 7
    %v2142 = vsub.s32 %v2139, %v2141
    %v2143 = vrot.slane %v2136, %v2142
    %v2145 = vunpack.c.l.s4 1966171168
    %v2146 = vunpack.c.0.s8 %v2145
    %v2147 = vlaneseq
    %v2148 = vshrl.u32 %v2147, 7
    %v2149 = vsub.s32 %v2146, %v2148
    %v2150 = vrot.slane %v1856, %v2149
    %v2151 = vcombine.high %v2150, %v2150
    %v2153 = vunpack.c.l.s4 1966171168
    %v2154 = vunpack.c.0.s8 %v2153
    %v2155 = vlaneseq
    %v2156 = vshrl.u32 %v2155, 7
    %v2157 = vsub.s32 %v2154, %v2156
    %v2158 = vrot.slane %v2151, %v2157
    %v2160 = vunpack.c.l.s4 1966171168
    %v2161 = vunpack.c.0.s8 %v2160
    %v2162 = vlaneseq
    %v2163 = vshrl.u32 %v2162, 7
    %v2164 = vsub.s32 %v2161, %v2163
    %v2165 = vrot.slane %v1857, %v2164
    %v2166 = vcombine.high %v2165, %v2165
    %v2168 = vunpack.c.l.s4 1966171168
    %v2169 = vunpack.c.0.s8 %v2168
    %v2170 = vlaneseq
    %v2171 = vshrl.u32 %v2170, 7
    %v2172 = vsub.s32 %v2169, %v2171
    %v2173 = vrot.slane %v2166, %v2172
    %v2175 = vunpack.c.l.s4 1966171168
    %v2176 = vunpack.c.0.s8 %v2175
    %v2177 = vlaneseq
    %v2178 = vshrl.u32 %v2177, 7
    %v2179 = vsub.s32 %v2176, %v2178
    %v2180 = vrot.slane %v1858, %v2179
    %v2181 = vcombine.high %v2180, %v2180
    %v2183 = vunpack.c.l.s4 1966171168
    %v2184 = vunpack.c.0.s8 %v2183
    %v2185 = vlaneseq
    %v2186 = vshrl.u32 %v2185, 7
    %v2187 = vsub.s32 %v2184, %v2186
    %v2188 = vrot.slane %v2181, %v2187
    %v2190 = vunpack.c.l.s4 1966171168
    %v2191 = vunpack.c.0.s8 %v2190
    %v2192 = vlaneseq
    %v2193 = vshrl.u32 %v2192, 7
    %v2194 = vsub.s32 %v2191, %v2193
    %v2195 = vrot.slane %v1859, %v2194
    %v2196 = vcombine.high %v2195, %v2195
    %v2198 = vunpack.c.l.s4 1966171168
    %v2199 = vunpack.c.0.s8 %v2198
    %v2200 = vlaneseq
    %v2201 = vshrl.u32 %v2200, 7
    %v2202 = vsub.s32 %v2199, %v2201
    %v2203 = vrot.slane %v2196, %v2202
    %v2205 = vunpack.c.l.s4 1966171168
    %v2206 = vunpack.c.0.s8 %v2205
    %v2207 = vlaneseq
    %v2208 = vshrl.u32 %v2207, 7
    %v2209 = vsub.s32 %v2206, %v2208
    %v2210 = vrot.slane %v1860, %v2209
    %v2211 = vcombine.high %v2210, %v2210
    %v2213 = vunpack.c.l.s4 1966171168
    %v2214 = vunpack.c.0.s8 %v2213
    %v2215 = vlaneseq
    %v2216 = vshrl.u32 %v2215, 7
    %v2217 = vsub.s32 %v2214, %v2216
    %v2218 = vrot.slane %v2211, %v2217
    %v2220 = vunpack.c.l.s4 1966171168
    %v2221 = vunpack.c.0.s8 %v2220
    %v2222 = vlaneseq
    %v2223 = vshrl.u32 %v2222, 7
    %v2224 = vsub.s32 %v2221, %v2223
    %v2225 = vrot.slane %v1861, %v2224
    %v2226 = vcombine.high %v2225, %v2225
    %v2228 = vunpack.c.l.s4 1966171168
    %v2229 = vunpack.c.0.s8 %v2228
    %v2230 = vlaneseq
    %v2231 = vshrl.u32 %v2230, 7
    %v2232 = vsub.s32 %v2229, %v2231
    %v2233 = vrot.slane %v2226, %v2232
    %v2235 = vunpack.c.l.s4 1966171168
    %v2236 = vunpack.c.0.s8 %v2235
    %v2237 = vlaneseq
    %v2238 = vshrl.u32 %v2237, 7
    %v2239 = vsub.s32 %v2236, %v2238
    %v2240 = vrot.slane %v1862, %v2239
    %v2241 = vcombine.high %v2240, %v2240
    %v2243 = vunpack.c.l.s4 1966171168
    %v2244 = vunpack.c.0.s8 %v2243
    %v2245 = vlaneseq
    %v2246 = vshrl.u32 %v2245, 7
    %v2247 = vsub.s32 %v2244, %v2246
    %v2248 = vrot.slane %v2241, %v2247
    %v2250 = vunpack.c.l.s4 1966171168
    %v2251 = vunpack.c.0.s8 %v2250
    %v2252 = vlaneseq
    %v2253 = vshrl.u32 %v2252, 7
    %v2254 = vsub.s32 %v2251, %v2253
    %v2255 = vrot.slane %v1863, %v2254
    %v2256 = vcombine.high %v2255, %v2255
    %v2258 = vunpack.c.l.s4 1966171168
    %v2259 = vunpack.c.0.s8 %v2258
    %v2260 = vlaneseq
    %v2261 = vshrl.u32 %v2260, 7
    %v2262 = vsub.s32 %v2259, %v2261
    %v2263 = vrot.slane %v2256, %v2262
    %v2265 = vunpack.c.l.s4 1966171168
    %v2266 = vunpack.c.0.s8 %v2265
    %v2267 = vlaneseq
    %v2268 = vshrl.u32 %v2267, 7
    %v2269 = vsub.s32 %v2266, %v2268
    %v2270 = vrot.slane %v1864, %v2269
    %v2271 = vcombine.high %v2270, %v2270
    %v2273 = vunpack.c.l.s4 1966171168
    %v2274 = vunpack.c.0.s8 %v2273
    %v2275 = vlaneseq
    %v2276 = vshrl.u32 %v2275, 7
    %v2277 = vsub.s32 %v2274, %v2276
    %v2278 = vrot.slane %v2271, %v2277
    %v2280 = vunpack.c.l.s4 1966171168
    %v2281 = vunpack.c.0.s8 %v2280
    %v2282 = vlaneseq
    %v2283 = vshrl.u32 %v2282, 7
    %v2284 = vsub.s32 %v2281, %v2283
    %v2285 = vrot.slane %v1865, %v2284
    %v2286 = vcombine.high %v2285, %v2285
    %v2288 = vunpack.c.l.s4 1966171168
    %v2289 = vunpack.c.0.s8 %v2288
    %v2290 = vlaneseq
    %v2291 = vshrl.u32 %v2290, 7
    %v2292 = vsub.s32 %v2289, %v2291
    %v2293 = vrot.slane %v2286, %v2292
    %v2295 = vunpack.c.l.s4 1966171168
    %v2296 = vunpack.c.0.s8 %v2295
    %v2297 = vlaneseq
    %v2298 = vshrl.u32 %v2297, 7
    %v2299 = vsub.s32 %v2296, %v2298
    %v2300 = vrot.slane %v1866, %v2299
    %v2301 = vcombine.high %v2300, %v2300
    %v2303 = vunpack.c.l.s4 1966171168
    %v2304 = vunpack.c.0.s8 %v2303
    %v2305 = vlaneseq
    %v2306 = vshrl.u32 %v2305, 7
    %v2307 = vsub.s32 %v2304, %v2306
    %v2308 = vrot.slane %v2301, %v2307
    %v2310 = vunpack.c.l.s4 1966171168
    %v2311 = vunpack.c.0.s8 %v2310
    %v2312 = vlaneseq
    %v2313 = vshrl.u32 %v2312, 7
    %v2314 = vsub.s32 %v2311, %v2313
    %v2315 = vrot.slane %v1867, %v2314
    %v2316 = vcombine.high %v2315, %v2315
    %v2318 = vunpack.c.l.s4 1966171168
    %v2319 = vunpack.c.0.s8 %v2318
    %v2320 = vlaneseq
    %v2321 = vshrl.u32 %v2320, 7
    %v2322 = vsub.s32 %v2319, %v2321
    %v2323 = vrot.slane %v2316, %v2322
    %v2325 = vunpack.c.l.s4 1966171168
    %v2326 = vunpack.c.0.s8 %v2325
    %v2327 = vlaneseq
    %v2328 = vshrl.u32 %v2327, 7
    %v2329 = vsub.s32 %v2326, %v2328
    %v2330 = vrot.slane %v1868, %v2329
    %v2331 = vcombine.high %v2330, %v2330
    %v2333 = vunpack.c.l.s4 1966171168
    %v2334 = vunpack.c.0.s8 %v2333
    %v2335 = vlaneseq
    %v2336 = vshrl.u32 %v2335, 7
    %v2337 = vsub.s32 %v2334, %v2336
    %v2338 = vrot.slane %v2331, %v2337
    %v2340 = vunpack.c.l.s4 1966171168
    %v2341 = vunpack.c.0.s8 %v2340
    %v2342 = vlaneseq
    %v2343 = vshrl.u32 %v2342, 7
    %v2344 = vsub.s32 %v2341, %v2343
    %v2345 = vrot.slane %v1869, %v2344
    %v2346 = vcombine.high %v2345, %v2345
    %v2348 = vunpack.c.l.s4 1966171168
    %v2349 = vunpack.c.0.s8 %v2348
    %v2350 = vlaneseq
    %v2351 = vshrl.u32 %v2350, 7
    %v2352 = vsub.s32 %v2349, %v2351
    %v2353 = vrot.slane %v2346, %v2352
    %v2355 = vunpack.c.l.s4 1966171168
    %v2356 = vunpack.c.0.s8 %v2355
    %v2357 = vlaneseq
    %v2358 = vshrl.u32 %v2357, 7
    %v2359 = vsub.s32 %v2356, %v2358
    %v2360 = vrot.slane %v1870, %v2359
    %v2361 = vcombine.high %v2360, %v2360
    %v2363 = vunpack.c.l.s4 1966171168
    %v2364 = vunpack.c.0.s8 %v2363
    %v2365 = vlaneseq
    %v2366 = vshrl.u32 %v2365, 7
    %v2367 = vsub.s32 %v2364, %v2366
    %v2368 = vrot.slane %v2361, %v2367
    %v2370 = vunpack.c.l.s4 1966171168
    %v2371 = vunpack.c.0.s8 %v2370
    %v2372 = vlaneseq
    %v2373 = vshrl.u32 %v2372, 7
    %v2374 = vsub.s32 %v2371, %v2373
    %v2375 = vrot.slane %v1871, %v2374
    %v2376 = vcombine.high %v2375, %v2375
    %v2378 = vunpack.c.l.s4 1966171168
    %v2379 = vunpack.c.0.s8 %v2378
    %v2380 = vlaneseq
    %v2381 = vshrl.u32 %v2380, 7
    %v2382 = vsub.s32 %v2379, %v2381
    %v2383 = vrot.slane %v2376, %v2382
    %v2416 = vadd.f32 %v1680, %v1918
    %v2417 = vadd.f32 %v1681, %v1933
    %v2418 = vadd.f32 %v1682, %v1948
    %v2419 = vadd.f32 %v1683, %v1963
    %v2420 = vadd.f32 %v1684, %v1978
    %v2421 = vadd.f32 %v1685, %v1993
    %v2422 = vadd.f32 %v1686, %v2008
    %v2423 = vadd.f32 %v1687, %v2023
    %v2424 = vadd.f32 %v1688, %v2038
    %v2425 = vadd.f32 %v1689, %v2053
    %v2426 = vadd.f32 %v1690, %v2068
    %v2427 = vadd.f32 %v1691, %v2083
    %v2428 = vadd.f32 %v1692, %v2098
    %v2429 = vadd.f32 %v1693, %v2113
    %v2430 = vadd.f32 %v1694, %v2128
    %v2431 = vadd.f32 %v1695, %v2143
    %v2432 = vadd.f32 %v1696, %v2158
    %v2433 = vadd.f32 %v1697, %v2173
    %v2434 = vadd.f32 %v1698, %v2188
    %v2435 = vadd.f32 %v1699, %v2203
    %v2436 = vadd.f32 %v1700, %v2218
    %v2437 = vadd.f32 %v1701, %v2233
    %v2438 = vadd.f32 %v1702, %v2248
    %v2439 = vadd.f32 %v1703, %v2263
    %v2440 = vadd.f32 %v1704, %v2278
    %v2441 = vadd.f32 %v1705, %v2293
    %v2442 = vadd.f32 %v1706, %v2308
    %v2443 = vadd.f32 %v1707, %v2323
    %v2444 = vadd.f32 %v1708, %v2338
    %v2445 = vadd.f32 %v1709, %v2353
    %v2446 = vadd.f32 %v1710, %v2368
    %v2447 = vadd.f32 %v1711, %v2383
    %2448 = vset.pattern.permute.xlu0 1
    %2449 = vperm.xlu0 %2448, %v684
    %v2450 = vpop.permute.xlu0 %2449
    %2452 = vset.pattern.permute.xlu0 1
    %2453 = vperm.xlu0 %2452, %v685
    %v2454 = vpop.permute.xlu0 %2453
    %2456 = vset.pattern.permute.xlu0 1
    %2457 = vperm.xlu0 %2456, %v686
    %v2458 = vpop.permute.xlu0 %2457
    %2460 = vset.pattern.permute.xlu0 1
    %2461 = vperm.xlu0 %2460, %v687
    %v2462 = vpop.permute.xlu0 %2461
    %2464 = vset.pattern.permute.xlu0 1
    %2465 = vperm.xlu0 %2464, %v688
    %v2466 = vpop.permute.xlu0 %2465
    %2468 = vset.pattern.permute.xlu0 1
    %2469 = vperm.xlu0 %2468, %v689
    %v2470 = vpop.permute.xlu0 %2469
    %2472 = vset.pattern.permute.xlu0 1
    %2473 = vperm.xlu0 %2472, %v690
    %v2474 = vpop.permute.xlu0 %2473
    %2476 = vset.pattern.permute.xlu0 1
    %2477 = vperm.xlu0 %2476, %v691
    %v2478 = vpop.permute.xlu0 %2477
    %2480 = vset.pattern.permute.xlu0 1
    %2481 = vperm.xlu0 %2480, %v692
    %v2482 = vpop.permute.xlu0 %2481
    %2484 = vset.pattern.permute.xlu0 1
    %2485 = vperm.xlu0 %2484, %v693
    %v2486 = vpop.permute.xlu0 %2485
    %2488 = vset.pattern.permute.xlu0 1
    %2489 = vperm.xlu0 %2488, %v694
    %v2490 = vpop.permute.xlu0 %2489
    %2492 = vset.pattern.permute.xlu0 1
    %2493 = vperm.xlu0 %2492, %v695
    %v2494 = vpop.permute.xlu0 %2493
    %2496 = vset.pattern.permute.xlu0 1
    %2497 = vperm.xlu0 %2496, %v696
    %v2498 = vpop.permute.xlu0 %2497
    %2500 = vset.pattern.permute.xlu0 1
    %2501 = vperm.xlu0 %2500, %v697
    %v2502 = vpop.permute.xlu0 %2501
    %2504 = vset.pattern.permute.xlu0 1
    %2505 = vperm.xlu0 %2504, %v698
    %v2506 = vpop.permute.xlu0 %2505
    %2508 = vset.pattern.permute.xlu0 1
    %2509 = vperm.xlu0 %2508, %v699
    %v2510 = vpop.permute.xlu0 %2509
    %2512 = vset.pattern.permute.xlu0 1
    %2513 = vperm.xlu0 %2512, %v700
    %v2514 = vpop.permute.xlu0 %2513
    %2516 = vset.pattern.permute.xlu0 1
    %2517 = vperm.xlu0 %2516, %v701
    %v2518 = vpop.permute.xlu0 %2517
    %2520 = vset.pattern.permute.xlu0 1
    %2521 = vperm.xlu0 %2520, %v702
    %v2522 = vpop.permute.xlu0 %2521
    %2524 = vset.pattern.permute.xlu0 1
    %2525 = vperm.xlu0 %2524, %v703
    %v2526 = vpop.permute.xlu0 %2525
    %2528 = vset.pattern.permute.xlu0 1
    %2529 = vperm.xlu0 %2528, %v704
    %v2530 = vpop.permute.xlu0 %2529
    %2532 = vset.pattern.permute.xlu0 1
    %2533 = vperm.xlu0 %2532, %v705
    %v2534 = vpop.permute.xlu0 %2533
    %2536 = vset.pattern.permute.xlu0 1
    %2537 = vperm.xlu0 %2536, %v706
    %v2538 = vpop.permute.xlu0 %2537
    %2540 = vset.pattern.permute.xlu0 1
    %2541 = vperm.xlu0 %2540, %v707
    %v2542 = vpop.permute.xlu0 %2541
    %2544 = vset.pattern.permute.xlu0 1
    %2545 = vperm.xlu0 %2544, %v708
    %v2546 = vpop.permute.xlu0 %2545
    %2548 = vset.pattern.permute.xlu0 1
    %2549 = vperm.xlu0 %2548, %v709
    %v2550 = vpop.permute.xlu0 %2549
    %2552 = vset.pattern.permute.xlu0 1
    %2553 = vperm.xlu0 %2552, %v710
    %v2554 = vpop.permute.xlu0 %2553
    %2556 = vset.pattern.permute.xlu0 1
    %2557 = vperm.xlu0 %2556, %v711
    %v2558 = vpop.permute.xlu0 %2557
    %2560 = vset.pattern.permute.xlu0 1
    %2561 = vperm.xlu0 %2560, %v712
    %v2562 = vpop.permute.xlu0 %2561
    %2564 = vset.pattern.permute.xlu0 1
    %2565 = vperm.xlu0 %2564, %v713
    %v2566 = vpop.permute.xlu0 %2565
    %2568 = vset.pattern.permute.xlu0 1
    %2569 = vperm.xlu0 %2568, %v714
    %v2570 = vpop.permute.xlu0 %2569
    %2572 = vset.pattern.permute.xlu0 1
    %2573 = vperm.xlu0 %2572, %v715
    %v2574 = vpop.permute.xlu0 %2573
    %v2576 = vmul.f32 %v2450, %v1262
    %v2577 = vmul.f32 %v2454, %v1262
    %v2578 = vmul.f32 %v2458, %v1262
    %v2579 = vmul.f32 %v2462, %v1262
    %v2580 = vmul.f32 %v2466, %v1262
    %v2581 = vmul.f32 %v2470, %v1262
    %v2582 = vmul.f32 %v2474, %v1262
    %v2583 = vmul.f32 %v2478, %v1262
    %v2584 = vmul.f32 %v2482, %v1262
    %v2585 = vmul.f32 %v2486, %v1262
    %v2586 = vmul.f32 %v2490, %v1262
    %v2587 = vmul.f32 %v2494, %v1262
    %v2588 = vmul.f32 %v2498, %v1262
    %v2589 = vmul.f32 %v2502, %v1262
    %v2590 = vmul.f32 %v2506, %v1262
    %v2591 = vmul.f32 %v2510, %v1262
    %v2592 = vmul.f32 %v2514, %v1262
    %v2593 = vmul.f32 %v2518, %v1262
    %v2594 = vmul.f32 %v2522, %v1262
    %v2595 = vmul.f32 %v2526, %v1262
    %v2596 = vmul.f32 %v2530, %v1262
    %v2597 = vmul.f32 %v2534, %v1262
    %v2598 = vmul.f32 %v2538, %v1262
    %v2599 = vmul.f32 %v2542, %v1262
    %v2600 = vmul.f32 %v2546, %v1262
    %v2601 = vmul.f32 %v2550, %v1262
    %v2602 = vmul.f32 %v2554, %v1262
    %v2603 = vmul.f32 %v2558, %v1262
    %v2604 = vmul.f32 %v2562, %v1262
    %v2605 = vmul.f32 %v2566, %v1262
    %v2606 = vmul.f32 %v2570, %v1262
    %v2607 = vmul.f32 %v2574, %v1262
    %v2641 = vunpack.c.l.s4 1966171168
    %v2642 = vunpack.c.0.s8 %v2641
    %v2643 = vlaneseq
    %v2644 = vshrl.u32 %v2643, 7
    %v2645 = vsub.s32 %v2642, %v2644
    %v2646 = vrot.slane %v2576, %v2645
    %v2647 = vcombine.high %v2646, %v2646
    %v2649 = vunpack.c.l.s4 1966171168
    %v2650 = vunpack.c.0.s8 %v2649
    %v2651 = vlaneseq
    %v2652 = vshrl.u32 %v2651, 7
    %v2653 = vsub.s32 %v2650, %v2652
    %v2654 = vrot.slane %v2647, %v2653
    %v2656 = vunpack.c.l.s4 1966171168
    %v2657 = vunpack.c.0.s8 %v2656
    %v2658 = vlaneseq
    %v2659 = vshrl.u32 %v2658, 7
    %v2660 = vsub.s32 %v2657, %v2659
    %v2661 = vrot.slane %v2577, %v2660
    %v2662 = vcombine.high %v2661, %v2661
    %v2664 = vunpack.c.l.s4 1966171168
    %v2665 = vunpack.c.0.s8 %v2664
    %v2666 = vlaneseq
    %v2667 = vshrl.u32 %v2666, 7
    %v2668 = vsub.s32 %v2665, %v2667
    %v2669 = vrot.slane %v2662, %v2668
    %v2671 = vunpack.c.l.s4 1966171168
    %v2672 = vunpack.c.0.s8 %v2671
    %v2673 = vlaneseq
    %v2674 = vshrl.u32 %v2673, 7
    %v2675 = vsub.s32 %v2672, %v2674
    %v2676 = vrot.slane %v2578, %v2675
    %v2677 = vcombine.high %v2676, %v2676
    %v2679 = vunpack.c.l.s4 1966171168
    %v2680 = vunpack.c.0.s8 %v2679
    %v2681 = vlaneseq
    %v2682 = vshrl.u32 %v2681, 7
    %v2683 = vsub.s32 %v2680, %v2682
    %v2684 = vrot.slane %v2677, %v2683
    %v2686 = vunpack.c.l.s4 1966171168
    %v2687 = vunpack.c.0.s8 %v2686
    %v2688 = vlaneseq
    %v2689 = vshrl.u32 %v2688, 7
    %v2690 = vsub.s32 %v2687, %v2689
    %v2691 = vrot.slane %v2579, %v2690
    %v2692 = vcombine.high %v2691, %v2691
    %v2694 = vunpack.c.l.s4 1966171168
    %v2695 = vunpack.c.0.s8 %v2694
    %v2696 = vlaneseq
    %v2697 = vshrl.u32 %v2696, 7
    %v2698 = vsub.s32 %v2695, %v2697
    %v2699 = vrot.slane %v2692, %v2698
    %v2701 = vunpack.c.l.s4 1966171168
    %v2702 = vunpack.c.0.s8 %v2701
    %v2703 = vlaneseq
    %v2704 = vshrl.u32 %v2703, 7
    %v2705 = vsub.s32 %v2702, %v2704
    %v2706 = vrot.slane %v2580, %v2705
    %v2707 = vcombine.high %v2706, %v2706
    %v2709 = vunpack.c.l.s4 1966171168
    %v2710 = vunpack.c.0.s8 %v2709
    %v2711 = vlaneseq
    %v2712 = vshrl.u32 %v2711, 7
    %v2713 = vsub.s32 %v2710, %v2712
    %v2714 = vrot.slane %v2707, %v2713
    %v2716 = vunpack.c.l.s4 1966171168
    %v2717 = vunpack.c.0.s8 %v2716
    %v2718 = vlaneseq
    %v2719 = vshrl.u32 %v2718, 7
    %v2720 = vsub.s32 %v2717, %v2719
    %v2721 = vrot.slane %v2581, %v2720
    %v2722 = vcombine.high %v2721, %v2721
    %v2724 = vunpack.c.l.s4 1966171168
    %v2725 = vunpack.c.0.s8 %v2724
    %v2726 = vlaneseq
    %v2727 = vshrl.u32 %v2726, 7
    %v2728 = vsub.s32 %v2725, %v2727
    %v2729 = vrot.slane %v2722, %v2728
    %v2731 = vunpack.c.l.s4 1966171168
    %v2732 = vunpack.c.0.s8 %v2731
    %v2733 = vlaneseq
    %v2734 = vshrl.u32 %v2733, 7
    %v2735 = vsub.s32 %v2732, %v2734
    %v2736 = vrot.slane %v2582, %v2735
    %v2737 = vcombine.high %v2736, %v2736
    %v2739 = vunpack.c.l.s4 1966171168
    %v2740 = vunpack.c.0.s8 %v2739
    %v2741 = vlaneseq
    %v2742 = vshrl.u32 %v2741, 7
    %v2743 = vsub.s32 %v2740, %v2742
    %v2744 = vrot.slane %v2737, %v2743
    %v2746 = vunpack.c.l.s4 1966171168
    %v2747 = vunpack.c.0.s8 %v2746
    %v2748 = vlaneseq
    %v2749 = vshrl.u32 %v2748, 7
    %v2750 = vsub.s32 %v2747, %v2749
    %v2751 = vrot.slane %v2583, %v2750
    %v2752 = vcombine.high %v2751, %v2751
    %v2754 = vunpack.c.l.s4 1966171168
    %v2755 = vunpack.c.0.s8 %v2754
    %v2756 = vlaneseq
    %v2757 = vshrl.u32 %v2756, 7
    %v2758 = vsub.s32 %v2755, %v2757
    %v2759 = vrot.slane %v2752, %v2758
    %v2761 = vunpack.c.l.s4 1966171168
    %v2762 = vunpack.c.0.s8 %v2761
    %v2763 = vlaneseq
    %v2764 = vshrl.u32 %v2763, 7
    %v2765 = vsub.s32 %v2762, %v2764
    %v2766 = vrot.slane %v2584, %v2765
    %v2767 = vcombine.high %v2766, %v2766
    %v2769 = vunpack.c.l.s4 1966171168
    %v2770 = vunpack.c.0.s8 %v2769
    %v2771 = vlaneseq
    %v2772 = vshrl.u32 %v2771, 7
    %v2773 = vsub.s32 %v2770, %v2772
    %v2774 = vrot.slane %v2767, %v2773
    %v2776 = vunpack.c.l.s4 1966171168
    %v2777 = vunpack.c.0.s8 %v2776
    %v2778 = vlaneseq
    %v2779 = vshrl.u32 %v2778, 7
    %v2780 = vsub.s32 %v2777, %v2779
    %v2781 = vrot.slane %v2585, %v2780
    %v2782 = vcombine.high %v2781, %v2781
    %v2784 = vunpack.c.l.s4 1966171168
    %v2785 = vunpack.c.0.s8 %v2784
    %v2786 = vlaneseq
    %v2787 = vshrl.u32 %v2786, 7
    %v2788 = vsub.s32 %v2785, %v2787
    %v2789 = vrot.slane %v2782, %v2788
    %v2791 = vunpack.c.l.s4 1966171168
    %v2792 = vunpack.c.0.s8 %v2791
    %v2793 = vlaneseq
    %v2794 = vshrl.u32 %v2793, 7
    %v2795 = vsub.s32 %v2792, %v2794
    %v2796 = vrot.slane %v2586, %v2795
    %v2797 = vcombine.high %v2796, %v2796
    %v2799 = vunpack.c.l.s4 1966171168
    %v2800 = vunpack.c.0.s8 %v2799
    %v2801 = vlaneseq
    %v2802 = vshrl.u32 %v2801, 7
    %v2803 = vsub.s32 %v2800, %v2802
    %v2804 = vrot.slane %v2797, %v2803
    %v2806 = vunpack.c.l.s4 1966171168
    %v2807 = vunpack.c.0.s8 %v2806
    %v2808 = vlaneseq
    %v2809 = vshrl.u32 %v2808, 7
    %v2810 = vsub.s32 %v2807, %v2809
    %v2811 = vrot.slane %v2587, %v2810
    %v2812 = vcombine.high %v2811, %v2811
    %v2814 = vunpack.c.l.s4 1966171168
    %v2815 = vunpack.c.0.s8 %v2814
    %v2816 = vlaneseq
    %v2817 = vshrl.u32 %v2816, 7
    %v2818 = vsub.s32 %v2815, %v2817
    %v2819 = vrot.slane %v2812, %v2818
    %v2821 = vunpack.c.l.s4 1966171168
    %v2822 = vunpack.c.0.s8 %v2821
    %v2823 = vlaneseq
    %v2824 = vshrl.u32 %v2823, 7
    %v2825 = vsub.s32 %v2822, %v2824
    %v2826 = vrot.slane %v2588, %v2825
    %v2827 = vcombine.high %v2826, %v2826
    %v2829 = vunpack.c.l.s4 1966171168
    %v2830 = vunpack.c.0.s8 %v2829
    %v2831 = vlaneseq
    %v2832 = vshrl.u32 %v2831, 7
    %v2833 = vsub.s32 %v2830, %v2832
    %v2834 = vrot.slane %v2827, %v2833
    %v2836 = vunpack.c.l.s4 1966171168
    %v2837 = vunpack.c.0.s8 %v2836
    %v2838 = vlaneseq
    %v2839 = vshrl.u32 %v2838, 7
    %v2840 = vsub.s32 %v2837, %v2839
    %v2841 = vrot.slane %v2589, %v2840
    %v2842 = vcombine.high %v2841, %v2841
    %v2844 = vunpack.c.l.s4 1966171168
    %v2845 = vunpack.c.0.s8 %v2844
    %v2846 = vlaneseq
    %v2847 = vshrl.u32 %v2846, 7
    %v2848 = vsub.s32 %v2845, %v2847
    %v2849 = vrot.slane %v2842, %v2848
    %v2851 = vunpack.c.l.s4 1966171168
    %v2852 = vunpack.c.0.s8 %v2851
    %v2853 = vlaneseq
    %v2854 = vshrl.u32 %v2853, 7
    %v2855 = vsub.s32 %v2852, %v2854
    %v2856 = vrot.slane %v2590, %v2855
    %v2857 = vcombine.high %v2856, %v2856
    %v2859 = vunpack.c.l.s4 1966171168
    %v2860 = vunpack.c.0.s8 %v2859
    %v2861 = vlaneseq
    %v2862 = vshrl.u32 %v2861, 7
    %v2863 = vsub.s32 %v2860, %v2862
    %v2864 = vrot.slane %v2857, %v2863
    %v2866 = vunpack.c.l.s4 1966171168
    %v2867 = vunpack.c.0.s8 %v2866
    %v2868 = vlaneseq
    %v2869 = vshrl.u32 %v2868, 7
    %v2870 = vsub.s32 %v2867, %v2869
    %v2871 = vrot.slane %v2591, %v2870
    %v2872 = vcombine.high %v2871, %v2871
    %v2874 = vunpack.c.l.s4 1966171168
    %v2875 = vunpack.c.0.s8 %v2874
    %v2876 = vlaneseq
    %v2877 = vshrl.u32 %v2876, 7
    %v2878 = vsub.s32 %v2875, %v2877
    %v2879 = vrot.slane %v2872, %v2878
    %v2881 = vunpack.c.l.s4 1966171168
    %v2882 = vunpack.c.0.s8 %v2881
    %v2883 = vlaneseq
    %v2884 = vshrl.u32 %v2883, 7
    %v2885 = vsub.s32 %v2882, %v2884
    %v2886 = vrot.slane %v2592, %v2885
    %v2887 = vcombine.high %v2886, %v2886
    %v2889 = vunpack.c.l.s4 1966171168
    %v2890 = vunpack.c.0.s8 %v2889
    %v2891 = vlaneseq
    %v2892 = vshrl.u32 %v2891, 7
    %v2893 = vsub.s32 %v2890, %v2892
    %v2894 = vrot.slane %v2887, %v2893
    %v2896 = vunpack.c.l.s4 1966171168
    %v2897 = vunpack.c.0.s8 %v2896
    %v2898 = vlaneseq
    %v2899 = vshrl.u32 %v2898, 7
    %v2900 = vsub.s32 %v2897, %v2899
    %v2901 = vrot.slane %v2593, %v2900
    %v2902 = vcombine.high %v2901, %v2901
    %v2904 = vunpack.c.l.s4 1966171168
    %v2905 = vunpack.c.0.s8 %v2904
    %v2906 = vlaneseq
    %v2907 = vshrl.u32 %v2906, 7
    %v2908 = vsub.s32 %v2905, %v2907
    %v2909 = vrot.slane %v2902, %v2908
    %v2911 = vunpack.c.l.s4 1966171168
    %v2912 = vunpack.c.0.s8 %v2911
    %v2913 = vlaneseq
    %v2914 = vshrl.u32 %v2913, 7
    %v2915 = vsub.s32 %v2912, %v2914
    %v2916 = vrot.slane %v2594, %v2915
    %v2917 = vcombine.high %v2916, %v2916
    %v2919 = vunpack.c.l.s4 1966171168
    %v2920 = vunpack.c.0.s8 %v2919
    %v2921 = vlaneseq
    %v2922 = vshrl.u32 %v2921, 7
    %v2923 = vsub.s32 %v2920, %v2922
    %v2924 = vrot.slane %v2917, %v2923
    %v2926 = vunpack.c.l.s4 1966171168
    %v2927 = vunpack.c.0.s8 %v2926
    %v2928 = vlaneseq
    %v2929 = vshrl.u32 %v2928, 7
    %v2930 = vsub.s32 %v2927, %v2929
    %v2931 = vrot.slane %v2595, %v2930
    %v2932 = vcombine.high %v2931, %v2931
    %v2934 = vunpack.c.l.s4 1966171168
    %v2935 = vunpack.c.0.s8 %v2934
    %v2936 = vlaneseq
    %v2937 = vshrl.u32 %v2936, 7
    %v2938 = vsub.s32 %v2935, %v2937
    %v2939 = vrot.slane %v2932, %v2938
    %v2941 = vunpack.c.l.s4 1966171168
    %v2942 = vunpack.c.0.s8 %v2941
    %v2943 = vlaneseq
    %v2944 = vshrl.u32 %v2943, 7
    %v2945 = vsub.s32 %v2942, %v2944
    %v2946 = vrot.slane %v2596, %v2945
    %v2947 = vcombine.high %v2946, %v2946
    %v2949 = vunpack.c.l.s4 1966171168
    %v2950 = vunpack.c.0.s8 %v2949
    %v2951 = vlaneseq
    %v2952 = vshrl.u32 %v2951, 7
    %v2953 = vsub.s32 %v2950, %v2952
    %v2954 = vrot.slane %v2947, %v2953
    %v2956 = vunpack.c.l.s4 1966171168
    %v2957 = vunpack.c.0.s8 %v2956
    %v2958 = vlaneseq
    %v2959 = vshrl.u32 %v2958, 7
    %v2960 = vsub.s32 %v2957, %v2959
    %v2961 = vrot.slane %v2597, %v2960
    %v2962 = vcombine.high %v2961, %v2961
    %v2964 = vunpack.c.l.s4 1966171168
    %v2965 = vunpack.c.0.s8 %v2964
    %v2966 = vlaneseq
    %v2967 = vshrl.u32 %v2966, 7
    %v2968 = vsub.s32 %v2965, %v2967
    %v2969 = vrot.slane %v2962, %v2968
    %v2971 = vunpack.c.l.s4 1966171168
    %v2972 = vunpack.c.0.s8 %v2971
    %v2973 = vlaneseq
    %v2974 = vshrl.u32 %v2973, 7
    %v2975 = vsub.s32 %v2972, %v2974
    %v2976 = vrot.slane %v2598, %v2975
    %v2977 = vcombine.high %v2976, %v2976
    %v2979 = vunpack.c.l.s4 1966171168
    %v2980 = vunpack.c.0.s8 %v2979
    %v2981 = vlaneseq
    %v2982 = vshrl.u32 %v2981, 7
    %v2983 = vsub.s32 %v2980, %v2982
    %v2984 = vrot.slane %v2977, %v2983
    %v2986 = vunpack.c.l.s4 1966171168
    %v2987 = vunpack.c.0.s8 %v2986
    %v2988 = vlaneseq
    %v2989 = vshrl.u32 %v2988, 7
    %v2990 = vsub.s32 %v2987, %v2989
    %v2991 = vrot.slane %v2599, %v2990
    %v2992 = vcombine.high %v2991, %v2991
    %v2994 = vunpack.c.l.s4 1966171168
    %v2995 = vunpack.c.0.s8 %v2994
    %v2996 = vlaneseq
    %v2997 = vshrl.u32 %v2996, 7
    %v2998 = vsub.s32 %v2995, %v2997
    %v2999 = vrot.slane %v2992, %v2998
    %v3001 = vunpack.c.l.s4 1966171168
    %v3002 = vunpack.c.0.s8 %v3001
    %v3003 = vlaneseq
    %v3004 = vshrl.u32 %v3003, 7
    %v3005 = vsub.s32 %v3002, %v3004
    %v3006 = vrot.slane %v2600, %v3005
    %v3007 = vcombine.high %v3006, %v3006
    %v3009 = vunpack.c.l.s4 1966171168
    %v3010 = vunpack.c.0.s8 %v3009
    %v3011 = vlaneseq
    %v3012 = vshrl.u32 %v3011, 7
    %v3013 = vsub.s32 %v3010, %v3012
    %v3014 = vrot.slane %v3007, %v3013
    %v3016 = vunpack.c.l.s4 1966171168
    %v3017 = vunpack.c.0.s8 %v3016
    %v3018 = vlaneseq
    %v3019 = vshrl.u32 %v3018, 7
    %v3020 = vsub.s32 %v3017, %v3019
    %v3021 = vrot.slane %v2601, %v3020
    %v3022 = vcombine.high %v3021, %v3021
    %v3024 = vunpack.c.l.s4 1966171168
    %v3025 = vunpack.c.0.s8 %v3024
    %v3026 = vlaneseq
    %v3027 = vshrl.u32 %v3026, 7
    %v3028 = vsub.s32 %v3025, %v3027
    %v3029 = vrot.slane %v3022, %v3028
    %v3031 = vunpack.c.l.s4 1966171168
    %v3032 = vunpack.c.0.s8 %v3031
    %v3033 = vlaneseq
    %v3034 = vshrl.u32 %v3033, 7
    %v3035 = vsub.s32 %v3032, %v3034
    %v3036 = vrot.slane %v2602, %v3035
    %v3037 = vcombine.high %v3036, %v3036
    %v3039 = vunpack.c.l.s4 1966171168
    %v3040 = vunpack.c.0.s8 %v3039
    %v3041 = vlaneseq
    %v3042 = vshrl.u32 %v3041, 7
    %v3043 = vsub.s32 %v3040, %v3042
    %v3044 = vrot.slane %v3037, %v3043
    %v3046 = vunpack.c.l.s4 1966171168
    %v3047 = vunpack.c.0.s8 %v3046
    %v3048 = vlaneseq
    %v3049 = vshrl.u32 %v3048, 7
    %v3050 = vsub.s32 %v3047, %v3049
    %v3051 = vrot.slane %v2603, %v3050
    %v3052 = vcombine.high %v3051, %v3051
    %v3054 = vunpack.c.l.s4 1966171168
    %v3055 = vunpack.c.0.s8 %v3054
    %v3056 = vlaneseq
    %v3057 = vshrl.u32 %v3056, 7
    %v3058 = vsub.s32 %v3055, %v3057
    %v3059 = vrot.slane %v3052, %v3058
    %v3061 = vunpack.c.l.s4 1966171168
    %v3062 = vunpack.c.0.s8 %v3061
    %v3063 = vlaneseq
    %v3064 = vshrl.u32 %v3063, 7
    %v3065 = vsub.s32 %v3062, %v3064
    %v3066 = vrot.slane %v2604, %v3065
    %v3067 = vcombine.high %v3066, %v3066
    %v3069 = vunpack.c.l.s4 1966171168
    %v3070 = vunpack.c.0.s8 %v3069
    %v3071 = vlaneseq
    %v3072 = vshrl.u32 %v3071, 7
    %v3073 = vsub.s32 %v3070, %v3072
    %v3074 = vrot.slane %v3067, %v3073
    %v3076 = vunpack.c.l.s4 1966171168
    %v3077 = vunpack.c.0.s8 %v3076
    %v3078 = vlaneseq
    %v3079 = vshrl.u32 %v3078, 7
    %v3080 = vsub.s32 %v3077, %v3079
    %v3081 = vrot.slane %v2605, %v3080
    %v3082 = vcombine.high %v3081, %v3081
    %v3084 = vunpack.c.l.s4 1966171168
    %v3085 = vunpack.c.0.s8 %v3084
    %v3086 = vlaneseq
    %v3087 = vshrl.u32 %v3086, 7
    %v3088 = vsub.s32 %v3085, %v3087
    %v3089 = vrot.slane %v3082, %v3088
    %v3091 = vunpack.c.l.s4 1966171168
    %v3092 = vunpack.c.0.s8 %v3091
    %v3093 = vlaneseq
    %v3094 = vshrl.u32 %v3093, 7
    %v3095 = vsub.s32 %v3092, %v3094
    %v3096 = vrot.slane %v2606, %v3095
    %v3097 = vcombine.high %v3096, %v3096
    %v3099 = vunpack.c.l.s4 1966171168
    %v3100 = vunpack.c.0.s8 %v3099
    %v3101 = vlaneseq
    %v3102 = vshrl.u32 %v3101, 7
    %v3103 = vsub.s32 %v3100, %v3102
    %v3104 = vrot.slane %v3097, %v3103
    %v3106 = vunpack.c.l.s4 1966171168
    %v3107 = vunpack.c.0.s8 %v3106
    %v3108 = vlaneseq
    %v3109 = vshrl.u32 %v3108, 7
    %v3110 = vsub.s32 %v3107, %v3109
    %v3111 = vrot.slane %v2607, %v3110
    %v3112 = vcombine.high %v3111, %v3111
    %v3114 = vunpack.c.l.s4 1966171168
    %v3115 = vunpack.c.0.s8 %v3114
    %v3116 = vlaneseq
    %v3117 = vshrl.u32 %v3116, 7
    %v3118 = vsub.s32 %v3115, %v3117
    %v3119 = vrot.slane %v3112, %v3118
    %v3152 = vadd.f32 %v2416, %v2654
    %v3153 = vadd.f32 %v2417, %v2669
    %v3154 = vadd.f32 %v2418, %v2684
    %v3155 = vadd.f32 %v2419, %v2699
    %v3156 = vadd.f32 %v2420, %v2714
    %v3157 = vadd.f32 %v2421, %v2729
    %v3158 = vadd.f32 %v2422, %v2744
    %v3159 = vadd.f32 %v2423, %v2759
    %v3160 = vadd.f32 %v2424, %v2774
    %v3161 = vadd.f32 %v2425, %v2789
    %v3162 = vadd.f32 %v2426, %v2804
    %v3163 = vadd.f32 %v2427, %v2819
    %v3164 = vadd.f32 %v2428, %v2834
    %v3165 = vadd.f32 %v2429, %v2849
    %v3166 = vadd.f32 %v2430, %v2864
    %v3167 = vadd.f32 %v2431, %v2879
    %v3168 = vadd.f32 %v2432, %v2894
    %v3169 = vadd.f32 %v2433, %v2909
    %v3170 = vadd.f32 %v2434, %v2924
    %v3171 = vadd.f32 %v2435, %v2939
    %v3172 = vadd.f32 %v2436, %v2954
    %v3173 = vadd.f32 %v2437, %v2969
    %v3174 = vadd.f32 %v2438, %v2984
    %v3175 = vadd.f32 %v2439, %v2999
    %v3176 = vadd.f32 %v2440, %v3014
    %v3177 = vadd.f32 %v2441, %v3029
    %v3178 = vadd.f32 %v2442, %v3044
    %v3179 = vadd.f32 %v2443, %v3059
    %v3180 = vadd.f32 %v2444, %v3074
    %v3181 = vadd.f32 %v2445, %v3089
    %v3182 = vadd.f32 %v2446, %v3104
    %v3183 = vadd.f32 %v2447, %v3119
    %3184 = vset.pattern.permute.xlu0 2
    %3185 = vperm.xlu0 %3184, %v1042
    %v3186 = vpop.permute.xlu0 %3185
    %3188 = vset.pattern.permute.xlu0 2
    %3189 = vperm.xlu0 %3188, %v1049
    %v3190 = vpop.permute.xlu0 %3189
    %3192 = vset.pattern.permute.xlu0 2
    %3193 = vperm.xlu0 %3192, %v1056
    %v3194 = vpop.permute.xlu0 %3193
    %3196 = vset.pattern.permute.xlu0 2
    %3197 = vperm.xlu0 %3196, %v1063
    %v3198 = vpop.permute.xlu0 %3197
    %3200 = vset.pattern.permute.xlu0 2
    %3201 = vperm.xlu0 %3200, %v1070
    %v3202 = vpop.permute.xlu0 %3201
    %3204 = vset.pattern.permute.xlu0 2
    %3205 = vperm.xlu0 %3204, %v1077
    %v3206 = vpop.permute.xlu0 %3205
    %3208 = vset.pattern.permute.xlu0 2
    %3209 = vperm.xlu0 %3208, %v1084
    %v3210 = vpop.permute.xlu0 %3209
    %3212 = vset.pattern.permute.xlu0 2
    %3213 = vperm.xlu0 %3212, %v1091
    %v3214 = vpop.permute.xlu0 %3213
    %3216 = vset.pattern.permute.xlu0 2
    %3217 = vperm.xlu0 %3216, %v1098
    %v3218 = vpop.permute.xlu0 %3217
    %3220 = vset.pattern.permute.xlu0 2
    %3221 = vperm.xlu0 %3220, %v1105
    %v3222 = vpop.permute.xlu0 %3221
    %3224 = vset.pattern.permute.xlu0 2
    %3225 = vperm.xlu0 %3224, %v1112
    %v3226 = vpop.permute.xlu0 %3225
    %3228 = vset.pattern.permute.xlu0 2
    %3229 = vperm.xlu0 %3228, %v1119
    %v3230 = vpop.permute.xlu0 %3229
    %3232 = vset.pattern.permute.xlu0 2
    %3233 = vperm.xlu0 %3232, %v1126
    %v3234 = vpop.permute.xlu0 %3233
    %3236 = vset.pattern.permute.xlu0 2
    %3237 = vperm.xlu0 %3236, %v1133
    %v3238 = vpop.permute.xlu0 %3237
    %3240 = vset.pattern.permute.xlu0 2
    %3241 = vperm.xlu0 %3240, %v1140
    %v3242 = vpop.permute.xlu0 %3241
    %3244 = vset.pattern.permute.xlu0 2
    %3245 = vperm.xlu0 %3244, %v1147
    %v3246 = vpop.permute.xlu0 %3245
    %3248 = vset.pattern.permute.xlu0 2
    %3249 = vperm.xlu0 %3248, %v1154
    %v3250 = vpop.permute.xlu0 %3249
    %3252 = vset.pattern.permute.xlu0 2
    %3253 = vperm.xlu0 %3252, %v1161
    %v3254 = vpop.permute.xlu0 %3253
    %3256 = vset.pattern.permute.xlu0 2
    %3257 = vperm.xlu0 %3256, %v1168
    %v3258 = vpop.permute.xlu0 %3257
    %3260 = vset.pattern.permute.xlu0 2
    %3261 = vperm.xlu0 %3260, %v1175
    %v3262 = vpop.permute.xlu0 %3261
    %3264 = vset.pattern.permute.xlu0 2
    %3265 = vperm.xlu0 %3264, %v1182
    %v3266 = vpop.permute.xlu0 %3265
    %3268 = vset.pattern.permute.xlu0 2
    %3269 = vperm.xlu0 %3268, %v1189
    %v3270 = vpop.permute.xlu0 %3269
    %3272 = vset.pattern.permute.xlu0 2
    %3273 = vperm.xlu0 %3272, %v1196
    %v3274 = vpop.permute.xlu0 %3273
    %3276 = vset.pattern.permute.xlu0 2
    %3277 = vperm.xlu0 %3276, %v1203
    %v3278 = vpop.permute.xlu0 %3277
    %3280 = vset.pattern.permute.xlu0 2
    %3281 = vperm.xlu0 %3280, %v1210
    %v3282 = vpop.permute.xlu0 %3281
    %3284 = vset.pattern.permute.xlu0 2
    %3285 = vperm.xlu0 %3284, %v1217
    %v3286 = vpop.permute.xlu0 %3285
    %3288 = vset.pattern.permute.xlu0 2
    %3289 = vperm.xlu0 %3288, %v1224
    %v3290 = vpop.permute.xlu0 %3289
    %3292 = vset.pattern.permute.xlu0 2
    %3293 = vperm.xlu0 %3292, %v1231
    %v3294 = vpop.permute.xlu0 %3293
    %3296 = vset.pattern.permute.xlu0 2
    %3297 = vperm.xlu0 %3296, %v1238
    %v3298 = vpop.permute.xlu0 %3297
    %3300 = vset.pattern.permute.xlu0 2
    %3301 = vperm.xlu0 %3300, %v1245
    %v3302 = vpop.permute.xlu0 %3301
    %3304 = vset.pattern.permute.xlu0 2
    %3305 = vperm.xlu0 %3304, %v1252
    %v3306 = vpop.permute.xlu0 %3305
    %3308 = vset.pattern.permute.xlu0 2
    %3309 = vperm.xlu0 %3308, %v1259
    %v3310 = vpop.permute.xlu0 %3309
    %v3312 = vmul.f32 %v3186, %v1261
    %v3313 = vmul.f32 %v3190, %v1261
    %v3314 = vmul.f32 %v3194, %v1261
    %v3315 = vmul.f32 %v3198, %v1261
    %v3316 = vmul.f32 %v3202, %v1261
    %v3317 = vmul.f32 %v3206, %v1261
    %v3318 = vmul.f32 %v3210, %v1261
    %v3319 = vmul.f32 %v3214, %v1261
    %v3320 = vmul.f32 %v3218, %v1261
    %v3321 = vmul.f32 %v3222, %v1261
    %v3322 = vmul.f32 %v3226, %v1261
    %v3323 = vmul.f32 %v3230, %v1261
    %v3324 = vmul.f32 %v3234, %v1261
    %v3325 = vmul.f32 %v3238, %v1261
    %v3326 = vmul.f32 %v3242, %v1261
    %v3327 = vmul.f32 %v3246, %v1261
    %v3328 = vmul.f32 %v3250, %v1261
    %v3329 = vmul.f32 %v3254, %v1261
    %v3330 = vmul.f32 %v3258, %v1261
    %v3331 = vmul.f32 %v3262, %v1261
    %v3332 = vmul.f32 %v3266, %v1261
    %v3333 = vmul.f32 %v3270, %v1261
    %v3334 = vmul.f32 %v3274, %v1261
    %v3335 = vmul.f32 %v3278, %v1261
    %v3336 = vmul.f32 %v3282, %v1261
    %v3337 = vmul.f32 %v3286, %v1261
    %v3338 = vmul.f32 %v3290, %v1261
    %v3339 = vmul.f32 %v3294, %v1261
    %v3340 = vmul.f32 %v3298, %v1261
    %v3341 = vmul.f32 %v3302, %v1261
    %v3342 = vmul.f32 %v3306, %v1261
    %v3343 = vmul.f32 %v3310, %v1261
    %v3377 = vunpack.c.l.s4 1966171168
    %v3378 = vunpack.c.0.s8 %v3377
    %v3379 = vlaneseq
    %v3380 = vshrl.u32 %v3379, 7
    %v3381 = vsub.s32 %v3378, %v3380
    %v3382 = vrot.slane %v3312, %v3381
    %v3384 = vunpack.c.l.s4 1966171168
    %v3385 = vunpack.c.0.s8 %v3384
    %v3386 = vlaneseq
    %v3387 = vshrl.u32 %v3386, 7
    %v3388 = vsub.s32 %v3385, %v3387
    %v3389 = vrot.slane %v3382, %v3388
    %v3390 = vcombine.high %v3389, %v3389
    %v3392 = vunpack.c.l.s4 1966171168
    %v3393 = vunpack.c.0.s8 %v3392
    %v3394 = vlaneseq
    %v3395 = vshrl.u32 %v3394, 7
    %v3396 = vsub.s32 %v3393, %v3395
    %v3397 = vrot.slane %v3313, %v3396
    %v3399 = vunpack.c.l.s4 1966171168
    %v3400 = vunpack.c.0.s8 %v3399
    %v3401 = vlaneseq
    %v3402 = vshrl.u32 %v3401, 7
    %v3403 = vsub.s32 %v3400, %v3402
    %v3404 = vrot.slane %v3397, %v3403
    %v3405 = vcombine.high %v3404, %v3404
    %v3407 = vunpack.c.l.s4 1966171168
    %v3408 = vunpack.c.0.s8 %v3407
    %v3409 = vlaneseq
    %v3410 = vshrl.u32 %v3409, 7
    %v3411 = vsub.s32 %v3408, %v3410
    %v3412 = vrot.slane %v3314, %v3411
    %v3414 = vunpack.c.l.s4 1966171168
    %v3415 = vunpack.c.0.s8 %v3414
    %v3416 = vlaneseq
    %v3417 = vshrl.u32 %v3416, 7
    %v3418 = vsub.s32 %v3415, %v3417
    %v3419 = vrot.slane %v3412, %v3418
    %v3420 = vcombine.high %v3419, %v3419
    %v3422 = vunpack.c.l.s4 1966171168
    %v3423 = vunpack.c.0.s8 %v3422
    %v3424 = vlaneseq
    %v3425 = vshrl.u32 %v3424, 7
    %v3426 = vsub.s32 %v3423, %v3425
    %v3427 = vrot.slane %v3315, %v3426
    %v3429 = vunpack.c.l.s4 1966171168
    %v3430 = vunpack.c.0.s8 %v3429
    %v3431 = vlaneseq
    %v3432 = vshrl.u32 %v3431, 7
    %v3433 = vsub.s32 %v3430, %v3432
    %v3434 = vrot.slane %v3427, %v3433
    %v3435 = vcombine.high %v3434, %v3434
    %v3437 = vunpack.c.l.s4 1966171168
    %v3438 = vunpack.c.0.s8 %v3437
    %v3439 = vlaneseq
    %v3440 = vshrl.u32 %v3439, 7
    %v3441 = vsub.s32 %v3438, %v3440
    %v3442 = vrot.slane %v3316, %v3441
    %v3444 = vunpack.c.l.s4 1966171168
    %v3445 = vunpack.c.0.s8 %v3444
    %v3446 = vlaneseq
    %v3447 = vshrl.u32 %v3446, 7
    %v3448 = vsub.s32 %v3445, %v3447
    %v3449 = vrot.slane %v3442, %v3448
    %v3450 = vcombine.high %v3449, %v3449
    %v3452 = vunpack.c.l.s4 1966171168
    %v3453 = vunpack.c.0.s8 %v3452
    %v3454 = vlaneseq
    %v3455 = vshrl.u32 %v3454, 7
    %v3456 = vsub.s32 %v3453, %v3455
    %v3457 = vrot.slane %v3317, %v3456
    %v3459 = vunpack.c.l.s4 1966171168
    %v3460 = vunpack.c.0.s8 %v3459
    %v3461 = vlaneseq
    %v3462 = vshrl.u32 %v3461, 7
    %v3463 = vsub.s32 %v3460, %v3462
    %v3464 = vrot.slane %v3457, %v3463
    %v3465 = vcombine.high %v3464, %v3464
    %v3467 = vunpack.c.l.s4 1966171168
    %v3468 = vunpack.c.0.s8 %v3467
    %v3469 = vlaneseq
    %v3470 = vshrl.u32 %v3469, 7
    %v3471 = vsub.s32 %v3468, %v3470
    %v3472 = vrot.slane %v3318, %v3471
    %v3474 = vunpack.c.l.s4 1966171168
    %v3475 = vunpack.c.0.s8 %v3474
    %v3476 = vlaneseq
    %v3477 = vshrl.u32 %v3476, 7
    %v3478 = vsub.s32 %v3475, %v3477
    %v3479 = vrot.slane %v3472, %v3478
    %v3480 = vcombine.high %v3479, %v3479
    %v3482 = vunpack.c.l.s4 1966171168
    %v3483 = vunpack.c.0.s8 %v3482
    %v3484 = vlaneseq
    %v3485 = vshrl.u32 %v3484, 7
    %v3486 = vsub.s32 %v3483, %v3485
    %v3487 = vrot.slane %v3319, %v3486
    %v3489 = vunpack.c.l.s4 1966171168
    %v3490 = vunpack.c.0.s8 %v3489
    %v3491 = vlaneseq
    %v3492 = vshrl.u32 %v3491, 7
    %v3493 = vsub.s32 %v3490, %v3492
    %v3494 = vrot.slane %v3487, %v3493
    %v3495 = vcombine.high %v3494, %v3494
    %v3497 = vunpack.c.l.s4 1966171168
    %v3498 = vunpack.c.0.s8 %v3497
    %v3499 = vlaneseq
    %v3500 = vshrl.u32 %v3499, 7
    %v3501 = vsub.s32 %v3498, %v3500
    %v3502 = vrot.slane %v3320, %v3501
    %v3504 = vunpack.c.l.s4 1966171168
    %v3505 = vunpack.c.0.s8 %v3504
    %v3506 = vlaneseq
    %v3507 = vshrl.u32 %v3506, 7
    %v3508 = vsub.s32 %v3505, %v3507
    %v3509 = vrot.slane %v3502, %v3508
    %v3510 = vcombine.high %v3509, %v3509
    %v3512 = vunpack.c.l.s4 1966171168
    %v3513 = vunpack.c.0.s8 %v3512
    %v3514 = vlaneseq
    %v3515 = vshrl.u32 %v3514, 7
    %v3516 = vsub.s32 %v3513, %v3515
    %v3517 = vrot.slane %v3321, %v3516
    %v3519 = vunpack.c.l.s4 1966171168
    %v3520 = vunpack.c.0.s8 %v3519
    %v3521 = vlaneseq
    %v3522 = vshrl.u32 %v3521, 7
    %v3523 = vsub.s32 %v3520, %v3522
    %v3524 = vrot.slane %v3517, %v3523
    %v3525 = vcombine.high %v3524, %v3524
    %v3527 = vunpack.c.l.s4 1966171168
    %v3528 = vunpack.c.0.s8 %v3527
    %v3529 = vlaneseq
    %v3530 = vshrl.u32 %v3529, 7
    %v3531 = vsub.s32 %v3528, %v3530
    %v3532 = vrot.slane %v3322, %v3531
    %v3534 = vunpack.c.l.s4 1966171168
    %v3535 = vunpack.c.0.s8 %v3534
    %v3536 = vlaneseq
    %v3537 = vshrl.u32 %v3536, 7
    %v3538 = vsub.s32 %v3535, %v3537
    %v3539 = vrot.slane %v3532, %v3538
    %v3540 = vcombine.high %v3539, %v3539
    %v3542 = vunpack.c.l.s4 1966171168
    %v3543 = vunpack.c.0.s8 %v3542
    %v3544 = vlaneseq
    %v3545 = vshrl.u32 %v3544, 7
    %v3546 = vsub.s32 %v3543, %v3545
    %v3547 = vrot.slane %v3323, %v3546
    %v3549 = vunpack.c.l.s4 1966171168
    %v3550 = vunpack.c.0.s8 %v3549
    %v3551 = vlaneseq
    %v3552 = vshrl.u32 %v3551, 7
    %v3553 = vsub.s32 %v3550, %v3552
    %v3554 = vrot.slane %v3547, %v3553
    %v3555 = vcombine.high %v3554, %v3554
    %v3557 = vunpack.c.l.s4 1966171168
    %v3558 = vunpack.c.0.s8 %v3557
    %v3559 = vlaneseq
    %v3560 = vshrl.u32 %v3559, 7
    %v3561 = vsub.s32 %v3558, %v3560
    %v3562 = vrot.slane %v3324, %v3561
    %v3564 = vunpack.c.l.s4 1966171168
    %v3565 = vunpack.c.0.s8 %v3564
    %v3566 = vlaneseq
    %v3567 = vshrl.u32 %v3566, 7
    %v3568 = vsub.s32 %v3565, %v3567
    %v3569 = vrot.slane %v3562, %v3568
    %v3570 = vcombine.high %v3569, %v3569
    %v3572 = vunpack.c.l.s4 1966171168
    %v3573 = vunpack.c.0.s8 %v3572
    %v3574 = vlaneseq
    %v3575 = vshrl.u32 %v3574, 7
    %v3576 = vsub.s32 %v3573, %v3575
    %v3577 = vrot.slane %v3325, %v3576
    %v3579 = vunpack.c.l.s4 1966171168
    %v3580 = vunpack.c.0.s8 %v3579
    %v3581 = vlaneseq
    %v3582 = vshrl.u32 %v3581, 7
    %v3583 = vsub.s32 %v3580, %v3582
    %v3584 = vrot.slane %v3577, %v3583
    %v3585 = vcombine.high %v3584, %v3584
    %v3587 = vunpack.c.l.s4 1966171168
    %v3588 = vunpack.c.0.s8 %v3587
    %v3589 = vlaneseq
    %v3590 = vshrl.u32 %v3589, 7
    %v3591 = vsub.s32 %v3588, %v3590
    %v3592 = vrot.slane %v3326, %v3591
    %v3594 = vunpack.c.l.s4 1966171168
    %v3595 = vunpack.c.0.s8 %v3594
    %v3596 = vlaneseq
    %v3597 = vshrl.u32 %v3596, 7
    %v3598 = vsub.s32 %v3595, %v3597
    %v3599 = vrot.slane %v3592, %v3598
    %v3600 = vcombine.high %v3599, %v3599
    %v3602 = vunpack.c.l.s4 1966171168
    %v3603 = vunpack.c.0.s8 %v3602
    %v3604 = vlaneseq
    %v3605 = vshrl.u32 %v3604, 7
    %v3606 = vsub.s32 %v3603, %v3605
    %v3607 = vrot.slane %v3327, %v3606
    %v3609 = vunpack.c.l.s4 1966171168
    %v3610 = vunpack.c.0.s8 %v3609
    %v3611 = vlaneseq
    %v3612 = vshrl.u32 %v3611, 7
    %v3613 = vsub.s32 %v3610, %v3612
    %v3614 = vrot.slane %v3607, %v3613
    %v3615 = vcombine.high %v3614, %v3614
    %v3617 = vunpack.c.l.s4 1966171168
    %v3618 = vunpack.c.0.s8 %v3617
    %v3619 = vlaneseq
    %v3620 = vshrl.u32 %v3619, 7
    %v3621 = vsub.s32 %v3618, %v3620
    %v3622 = vrot.slane %v3328, %v3621
    %v3624 = vunpack.c.l.s4 1966171168
    %v3625 = vunpack.c.0.s8 %v3624
    %v3626 = vlaneseq
    %v3627 = vshrl.u32 %v3626, 7
    %v3628 = vsub.s32 %v3625, %v3627
    %v3629 = vrot.slane %v3622, %v3628
    %v3630 = vcombine.high %v3629, %v3629
    %v3632 = vunpack.c.l.s4 1966171168
    %v3633 = vunpack.c.0.s8 %v3632
    %v3634 = vlaneseq
    %v3635 = vshrl.u32 %v3634, 7
    %v3636 = vsub.s32 %v3633, %v3635
    %v3637 = vrot.slane %v3329, %v3636
    %v3639 = vunpack.c.l.s4 1966171168
    %v3640 = vunpack.c.0.s8 %v3639
    %v3641 = vlaneseq
    %v3642 = vshrl.u32 %v3641, 7
    %v3643 = vsub.s32 %v3640, %v3642
    %v3644 = vrot.slane %v3637, %v3643
    %v3645 = vcombine.high %v3644, %v3644
    %v3647 = vunpack.c.l.s4 1966171168
    %v3648 = vunpack.c.0.s8 %v3647
    %v3649 = vlaneseq
    %v3650 = vshrl.u32 %v3649, 7
    %v3651 = vsub.s32 %v3648, %v3650
    %v3652 = vrot.slane %v3330, %v3651
    %v3654 = vunpack.c.l.s4 1966171168
    %v3655 = vunpack.c.0.s8 %v3654
    %v3656 = vlaneseq
    %v3657 = vshrl.u32 %v3656, 7
    %v3658 = vsub.s32 %v3655, %v3657
    %v3659 = vrot.slane %v3652, %v3658
    %v3660 = vcombine.high %v3659, %v3659
    %v3662 = vunpack.c.l.s4 1966171168
    %v3663 = vunpack.c.0.s8 %v3662
    %v3664 = vlaneseq
    %v3665 = vshrl.u32 %v3664, 7
    %v3666 = vsub.s32 %v3663, %v3665
    %v3667 = vrot.slane %v3331, %v3666
    %v3669 = vunpack.c.l.s4 1966171168
    %v3670 = vunpack.c.0.s8 %v3669
    %v3671 = vlaneseq
    %v3672 = vshrl.u32 %v3671, 7
    %v3673 = vsub.s32 %v3670, %v3672
    %v3674 = vrot.slane %v3667, %v3673
    %v3675 = vcombine.high %v3674, %v3674
    %v3677 = vunpack.c.l.s4 1966171168
    %v3678 = vunpack.c.0.s8 %v3677
    %v3679 = vlaneseq
    %v3680 = vshrl.u32 %v3679, 7
    %v3681 = vsub.s32 %v3678, %v3680
    %v3682 = vrot.slane %v3332, %v3681
    %v3684 = vunpack.c.l.s4 1966171168
    %v3685 = vunpack.c.0.s8 %v3684
    %v3686 = vlaneseq
    %v3687 = vshrl.u32 %v3686, 7
    %v3688 = vsub.s32 %v3685, %v3687
    %v3689 = vrot.slane %v3682, %v3688
    %v3690 = vcombine.high %v3689, %v3689
    %v3692 = vunpack.c.l.s4 1966171168
    %v3693 = vunpack.c.0.s8 %v3692
    %v3694 = vlaneseq
    %v3695 = vshrl.u32 %v3694, 7
    %v3696 = vsub.s32 %v3693, %v3695
    %v3697 = vrot.slane %v3333, %v3696
    %v3699 = vunpack.c.l.s4 1966171168
    %v3700 = vunpack.c.0.s8 %v3699
    %v3701 = vlaneseq
    %v3702 = vshrl.u32 %v3701, 7
    %v3703 = vsub.s32 %v3700, %v3702
    %v3704 = vrot.slane %v3697, %v3703
    %v3705 = vcombine.high %v3704, %v3704
    %v3707 = vunpack.c.l.s4 1966171168
    %v3708 = vunpack.c.0.s8 %v3707
    %v3709 = vlaneseq
    %v3710 = vshrl.u32 %v3709, 7
    %v3711 = vsub.s32 %v3708, %v3710
    %v3712 = vrot.slane %v3334, %v3711
    %v3714 = vunpack.c.l.s4 1966171168
    %v3715 = vunpack.c.0.s8 %v3714
    %v3716 = vlaneseq
    %v3717 = vshrl.u32 %v3716, 7
    %v3718 = vsub.s32 %v3715, %v3717
    %v3719 = vrot.slane %v3712, %v3718
    %v3720 = vcombine.high %v3719, %v3719
    %v3722 = vunpack.c.l.s4 1966171168
    %v3723 = vunpack.c.0.s8 %v3722
    %v3724 = vlaneseq
    %v3725 = vshrl.u32 %v3724, 7
    %v3726 = vsub.s32 %v3723, %v3725
    %v3727 = vrot.slane %v3335, %v3726
    %v3729 = vunpack.c.l.s4 1966171168
    %v3730 = vunpack.c.0.s8 %v3729
    %v3731 = vlaneseq
    %v3732 = vshrl.u32 %v3731, 7
    %v3733 = vsub.s32 %v3730, %v3732
    %v3734 = vrot.slane %v3727, %v3733
    %v3735 = vcombine.high %v3734, %v3734
    %v3737 = vunpack.c.l.s4 1966171168
    %v3738 = vunpack.c.0.s8 %v3737
    %v3739 = vlaneseq
    %v3740 = vshrl.u32 %v3739, 7
    %v3741 = vsub.s32 %v3738, %v3740
    %v3742 = vrot.slane %v3336, %v3741
    %v3744 = vunpack.c.l.s4 1966171168
    %v3745 = vunpack.c.0.s8 %v3744
    %v3746 = vlaneseq
    %v3747 = vshrl.u32 %v3746, 7
    %v3748 = vsub.s32 %v3745, %v3747
    %v3749 = vrot.slane %v3742, %v3748
    %v3750 = vcombine.high %v3749, %v3749
    %v3752 = vunpack.c.l.s4 1966171168
    %v3753 = vunpack.c.0.s8 %v3752
    %v3754 = vlaneseq
    %v3755 = vshrl.u32 %v3754, 7
    %v3756 = vsub.s32 %v3753, %v3755
    %v3757 = vrot.slane %v3337, %v3756
    %v3759 = vunpack.c.l.s4 1966171168
    %v3760 = vunpack.c.0.s8 %v3759
    %v3761 = vlaneseq
    %v3762 = vshrl.u32 %v3761, 7
    %v3763 = vsub.s32 %v3760, %v3762
    %v3764 = vrot.slane %v3757, %v3763
    %v3765 = vcombine.high %v3764, %v3764
    %v3767 = vunpack.c.l.s4 1966171168
    %v3768 = vunpack.c.0.s8 %v3767
    %v3769 = vlaneseq
    %v3770 = vshrl.u32 %v3769, 7
    %v3771 = vsub.s32 %v3768, %v3770
    %v3772 = vrot.slane %v3338, %v3771
    %v3774 = vunpack.c.l.s4 1966171168
    %v3775 = vunpack.c.0.s8 %v3774
    %v3776 = vlaneseq
    %v3777 = vshrl.u32 %v3776, 7
    %v3778 = vsub.s32 %v3775, %v3777
    %v3779 = vrot.slane %v3772, %v3778
    %v3780 = vcombine.high %v3779, %v3779
    %v3782 = vunpack.c.l.s4 1966171168
    %v3783 = vunpack.c.0.s8 %v3782
    %v3784 = vlaneseq
    %v3785 = vshrl.u32 %v3784, 7
    %v3786 = vsub.s32 %v3783, %v3785
    %v3787 = vrot.slane %v3339, %v3786
    %v3789 = vunpack.c.l.s4 1966171168
    %v3790 = vunpack.c.0.s8 %v3789
    %v3791 = vlaneseq
    %v3792 = vshrl.u32 %v3791, 7
    %v3793 = vsub.s32 %v3790, %v3792
    %v3794 = vrot.slane %v3787, %v3793
    %v3795 = vcombine.high %v3794, %v3794
    %v3797 = vunpack.c.l.s4 1966171168
    %v3798 = vunpack.c.0.s8 %v3797
    %v3799 = vlaneseq
    %v3800 = vshrl.u32 %v3799, 7
    %v3801 = vsub.s32 %v3798, %v3800
    %v3802 = vrot.slane %v3340, %v3801
    %v3804 = vunpack.c.l.s4 1966171168
    %v3805 = vunpack.c.0.s8 %v3804
    %v3806 = vlaneseq
    %v3807 = vshrl.u32 %v3806, 7
    %v3808 = vsub.s32 %v3805, %v3807
    %v3809 = vrot.slane %v3802, %v3808
    %v3810 = vcombine.high %v3809, %v3809
    %v3812 = vunpack.c.l.s4 1966171168
    %v3813 = vunpack.c.0.s8 %v3812
    %v3814 = vlaneseq
    %v3815 = vshrl.u32 %v3814, 7
    %v3816 = vsub.s32 %v3813, %v3815
    %v3817 = vrot.slane %v3341, %v3816
    %v3819 = vunpack.c.l.s4 1966171168
    %v3820 = vunpack.c.0.s8 %v3819
    %v3821 = vlaneseq
    %v3822 = vshrl.u32 %v3821, 7
    %v3823 = vsub.s32 %v3820, %v3822
    %v3824 = vrot.slane %v3817, %v3823
    %v3825 = vcombine.high %v3824, %v3824
    %v3827 = vunpack.c.l.s4 1966171168
    %v3828 = vunpack.c.0.s8 %v3827
    %v3829 = vlaneseq
    %v3830 = vshrl.u32 %v3829, 7
    %v3831 = vsub.s32 %v3828, %v3830
    %v3832 = vrot.slane %v3342, %v3831
    %v3834 = vunpack.c.l.s4 1966171168
    %v3835 = vunpack.c.0.s8 %v3834
    %v3836 = vlaneseq
    %v3837 = vshrl.u32 %v3836, 7
    %v3838 = vsub.s32 %v3835, %v3837
    %v3839 = vrot.slane %v3832, %v3838
    %v3840 = vcombine.high %v3839, %v3839
    %v3842 = vunpack.c.l.s4 1966171168
    %v3843 = vunpack.c.0.s8 %v3842
    %v3844 = vlaneseq
    %v3845 = vshrl.u32 %v3844, 7
    %v3846 = vsub.s32 %v3843, %v3845
    %v3847 = vrot.slane %v3343, %v3846
    %v3849 = vunpack.c.l.s4 1966171168
    %v3850 = vunpack.c.0.s8 %v3849
    %v3851 = vlaneseq
    %v3852 = vshrl.u32 %v3851, 7
    %v3853 = vsub.s32 %v3850, %v3852
    %v3854 = vrot.slane %v3847, %v3853
    %v3855 = vcombine.high %v3854, %v3854
    %v3888 = vadd.f32 %v3152, %v3390
    %v3889 = vadd.f32 %v3153, %v3405
    %v3890 = vadd.f32 %v3154, %v3420
    %v3891 = vadd.f32 %v3155, %v3435
    %v3892 = vadd.f32 %v3156, %v3450
    %v3893 = vadd.f32 %v3157, %v3465
    %v3894 = vadd.f32 %v3158, %v3480
    %v3895 = vadd.f32 %v3159, %v3495
    %v3896 = vadd.f32 %v3160, %v3510
    %v3897 = vadd.f32 %v3161, %v3525
    %v3898 = vadd.f32 %v3162, %v3540
    %v3899 = vadd.f32 %v3163, %v3555
    %v3900 = vadd.f32 %v3164, %v3570
    %v3901 = vadd.f32 %v3165, %v3585
    %v3902 = vadd.f32 %v3166, %v3600
    %v3903 = vadd.f32 %v3167, %v3615
    %v3904 = vadd.f32 %v3168, %v3630
    %v3905 = vadd.f32 %v3169, %v3645
    %v3906 = vadd.f32 %v3170, %v3660
    %v3907 = vadd.f32 %v3171, %v3675
    %v3908 = vadd.f32 %v3172, %v3690
    %v3909 = vadd.f32 %v3173, %v3705
    %v3910 = vadd.f32 %v3174, %v3720
    %v3911 = vadd.f32 %v3175, %v3735
    %v3912 = vadd.f32 %v3176, %v3750
    %v3913 = vadd.f32 %v3177, %v3765
    %v3914 = vadd.f32 %v3178, %v3780
    %v3915 = vadd.f32 %v3179, %v3795
    %v3916 = vadd.f32 %v3180, %v3810
    %v3917 = vadd.f32 %v3181, %v3825
    %v3918 = vadd.f32 %v3182, %v3840
    %v3919 = vadd.f32 %v3183, %v3855
    %3920 = vset.pattern.permute.xlu0 2
    %3921 = vperm.xlu0 %3920, %v684
    %v3922 = vpop.permute.xlu0 %3921
    %3924 = vset.pattern.permute.xlu0 2
    %3925 = vperm.xlu0 %3924, %v685
    %v3926 = vpop.permute.xlu0 %3925
    %3928 = vset.pattern.permute.xlu0 2
    %3929 = vperm.xlu0 %3928, %v686
    %v3930 = vpop.permute.xlu0 %3929
    %3932 = vset.pattern.permute.xlu0 2
    %3933 = vperm.xlu0 %3932, %v687
    %v3934 = vpop.permute.xlu0 %3933
    %3936 = vset.pattern.permute.xlu0 2
    %3937 = vperm.xlu0 %3936, %v688
    %v3938 = vpop.permute.xlu0 %3937
    %3940 = vset.pattern.permute.xlu0 2
    %3941 = vperm.xlu0 %3940, %v689
    %v3942 = vpop.permute.xlu0 %3941
    %3944 = vset.pattern.permute.xlu0 2
    %3945 = vperm.xlu0 %3944, %v690
    %v3946 = vpop.permute.xlu0 %3945
    %3948 = vset.pattern.permute.xlu0 2
    %3949 = vperm.xlu0 %3948, %v691
    %v3950 = vpop.permute.xlu0 %3949
    %3952 = vset.pattern.permute.xlu0 2
    %3953 = vperm.xlu0 %3952, %v692
    %v3954 = vpop.permute.xlu0 %3953
    %3956 = vset.pattern.permute.xlu0 2
    %3957 = vperm.xlu0 %3956, %v693
    %v3958 = vpop.permute.xlu0 %3957
    %3960 = vset.pattern.permute.xlu0 2
    %3961 = vperm.xlu0 %3960, %v694
    %v3962 = vpop.permute.xlu0 %3961
    %3964 = vset.pattern.permute.xlu0 2
    %3965 = vperm.xlu0 %3964, %v695
    %v3966 = vpop.permute.xlu0 %3965
    %3968 = vset.pattern.permute.xlu0 2
    %3969 = vperm.xlu0 %3968, %v696
    %v3970 = vpop.permute.xlu0 %3969
    %3972 = vset.pattern.permute.xlu0 2
    %3973 = vperm.xlu0 %3972, %v697
    %v3974 = vpop.permute.xlu0 %3973
    %3976 = vset.pattern.permute.xlu0 2
    %3977 = vperm.xlu0 %3976, %v698
    %v3978 = vpop.permute.xlu0 %3977
    %3980 = vset.pattern.permute.xlu0 2
    %3981 = vperm.xlu0 %3980, %v699
    %v3982 = vpop.permute.xlu0 %3981
    %3984 = vset.pattern.permute.xlu0 2
    %3985 = vperm.xlu0 %3984, %v700
    %v3986 = vpop.permute.xlu0 %3985
    %3988 = vset.pattern.permute.xlu0 2
    %3989 = vperm.xlu0 %3988, %v701
    %v3990 = vpop.permute.xlu0 %3989
    %3992 = vset.pattern.permute.xlu0 2
    %3993 = vperm.xlu0 %3992, %v702
    %v3994 = vpop.permute.xlu0 %3993
    %3996 = vset.pattern.permute.xlu0 2
    %3997 = vperm.xlu0 %3996, %v703
    %v3998 = vpop.permute.xlu0 %3997
    %4000 = vset.pattern.permute.xlu0 2
    %4001 = vperm.xlu0 %4000, %v704
    %v4002 = vpop.permute.xlu0 %4001
    %4004 = vset.pattern.permute.xlu0 2
    %4005 = vperm.xlu0 %4004, %v705
    %v4006 = vpop.permute.xlu0 %4005
    %4008 = vset.pattern.permute.xlu0 2
    %4009 = vperm.xlu0 %4008, %v706
    %v4010 = vpop.permute.xlu0 %4009
    %4012 = vset.pattern.permute.xlu0 2
    %4013 = vperm.xlu0 %4012, %v707
    %v4014 = vpop.permute.xlu0 %4013
    %4016 = vset.pattern.permute.xlu0 2
    %4017 = vperm.xlu0 %4016, %v708
    %v4018 = vpop.permute.xlu0 %4017
    %4020 = vset.pattern.permute.xlu0 2
    %4021 = vperm.xlu0 %4020, %v709
    %v4022 = vpop.permute.xlu0 %4021
    %4024 = vset.pattern.permute.xlu0 2
    %4025 = vperm.xlu0 %4024, %v710
    %v4026 = vpop.permute.xlu0 %4025
    %4028 = vset.pattern.permute.xlu0 2
    %4029 = vperm.xlu0 %4028, %v711
    %v4030 = vpop.permute.xlu0 %4029
    %4032 = vset.pattern.permute.xlu0 2
    %4033 = vperm.xlu0 %4032, %v712
    %v4034 = vpop.permute.xlu0 %4033
    %4036 = vset.pattern.permute.xlu0 2
    %4037 = vperm.xlu0 %4036, %v713
    %v4038 = vpop.permute.xlu0 %4037
    %4040 = vset.pattern.permute.xlu0 2
    %4041 = vperm.xlu0 %4040, %v714
    %v4042 = vpop.permute.xlu0 %4041
    %4044 = vset.pattern.permute.xlu0 2
    %4045 = vperm.xlu0 %4044, %v715
    %v4046 = vpop.permute.xlu0 %4045
    %v4048 = vmul.f32 %v3922, %v1262
    %v4049 = vmul.f32 %v3926, %v1262
    %v4050 = vmul.f32 %v3930, %v1262
    %v4051 = vmul.f32 %v3934, %v1262
    %v4052 = vmul.f32 %v3938, %v1262
    %v4053 = vmul.f32 %v3942, %v1262
    %v4054 = vmul.f32 %v3946, %v1262
    %v4055 = vmul.f32 %v3950, %v1262
    %v4056 = vmul.f32 %v3954, %v1262
    %v4057 = vmul.f32 %v3958, %v1262
    %v4058 = vmul.f32 %v3962, %v1262
    %v4059 = vmul.f32 %v3966, %v1262
    %v4060 = vmul.f32 %v3970, %v1262
    %v4061 = vmul.f32 %v3974, %v1262
    %v4062 = vmul.f32 %v3978, %v1262
    %v4063 = vmul.f32 %v3982, %v1262
    %v4064 = vmul.f32 %v3986, %v1262
    %v4065 = vmul.f32 %v3990, %v1262
    %v4066 = vmul.f32 %v3994, %v1262
    %v4067 = vmul.f32 %v3998, %v1262
    %v4068 = vmul.f32 %v4002, %v1262
    %v4069 = vmul.f32 %v4006, %v1262
    %v4070 = vmul.f32 %v4010, %v1262
    %v4071 = vmul.f32 %v4014, %v1262
    %v4072 = vmul.f32 %v4018, %v1262
    %v4073 = vmul.f32 %v4022, %v1262
    %v4074 = vmul.f32 %v4026, %v1262
    %v4075 = vmul.f32 %v4030, %v1262
    %v4076 = vmul.f32 %v4034, %v1262
    %v4077 = vmul.f32 %v4038, %v1262
    %v4078 = vmul.f32 %v4042, %v1262
    %v4079 = vmul.f32 %v4046, %v1262
    %v4113 = vunpack.c.l.s4 1966171168
    %v4114 = vunpack.c.0.s8 %v4113
    %v4115 = vlaneseq
    %v4116 = vshrl.u32 %v4115, 7
    %v4117 = vsub.s32 %v4114, %v4116
    %v4118 = vrot.slane %v4048, %v4117
    %v4120 = vunpack.c.l.s4 1966171168
    %v4121 = vunpack.c.0.s8 %v4120
    %v4122 = vlaneseq
    %v4123 = vshrl.u32 %v4122, 7
    %v4124 = vsub.s32 %v4121, %v4123
    %v4125 = vrot.slane %v4118, %v4124
    %v4126 = vcombine.high %v4125, %v4125
    %v4128 = vunpack.c.l.s4 1966171168
    %v4129 = vunpack.c.0.s8 %v4128
    %v4130 = vlaneseq
    %v4131 = vshrl.u32 %v4130, 7
    %v4132 = vsub.s32 %v4129, %v4131
    %v4133 = vrot.slane %v4049, %v4132
    %v4135 = vunpack.c.l.s4 1966171168
    %v4136 = vunpack.c.0.s8 %v4135
    %v4137 = vlaneseq
    %v4138 = vshrl.u32 %v4137, 7
    %v4139 = vsub.s32 %v4136, %v4138
    %v4140 = vrot.slane %v4133, %v4139
    %v4141 = vcombine.high %v4140, %v4140
    %v4143 = vunpack.c.l.s4 1966171168
    %v4144 = vunpack.c.0.s8 %v4143
    %v4145 = vlaneseq
    %v4146 = vshrl.u32 %v4145, 7
    %v4147 = vsub.s32 %v4144, %v4146
    %v4148 = vrot.slane %v4050, %v4147
    %v4150 = vunpack.c.l.s4 1966171168
    %v4151 = vunpack.c.0.s8 %v4150
    %v4152 = vlaneseq
    %v4153 = vshrl.u32 %v4152, 7
    %v4154 = vsub.s32 %v4151, %v4153
    %v4155 = vrot.slane %v4148, %v4154
    %v4156 = vcombine.high %v4155, %v4155
    %v4158 = vunpack.c.l.s4 1966171168
    %v4159 = vunpack.c.0.s8 %v4158
    %v4160 = vlaneseq
    %v4161 = vshrl.u32 %v4160, 7
    %v4162 = vsub.s32 %v4159, %v4161
    %v4163 = vrot.slane %v4051, %v4162
    %v4165 = vunpack.c.l.s4 1966171168
    %v4166 = vunpack.c.0.s8 %v4165
    %v4167 = vlaneseq
    %v4168 = vshrl.u32 %v4167, 7
    %v4169 = vsub.s32 %v4166, %v4168
    %v4170 = vrot.slane %v4163, %v4169
    %v4171 = vcombine.high %v4170, %v4170
    %v4173 = vunpack.c.l.s4 1966171168
    %v4174 = vunpack.c.0.s8 %v4173
    %v4175 = vlaneseq
    %v4176 = vshrl.u32 %v4175, 7
    %v4177 = vsub.s32 %v4174, %v4176
    %v4178 = vrot.slane %v4052, %v4177
    %v4180 = vunpack.c.l.s4 1966171168
    %v4181 = vunpack.c.0.s8 %v4180
    %v4182 = vlaneseq
    %v4183 = vshrl.u32 %v4182, 7
    %v4184 = vsub.s32 %v4181, %v4183
    %v4185 = vrot.slane %v4178, %v4184
    %v4186 = vcombine.high %v4185, %v4185
    %v4188 = vunpack.c.l.s4 1966171168
    %v4189 = vunpack.c.0.s8 %v4188
    %v4190 = vlaneseq
    %v4191 = vshrl.u32 %v4190, 7
    %v4192 = vsub.s32 %v4189, %v4191
    %v4193 = vrot.slane %v4053, %v4192
    %v4195 = vunpack.c.l.s4 1966171168
    %v4196 = vunpack.c.0.s8 %v4195
    %v4197 = vlaneseq
    %v4198 = vshrl.u32 %v4197, 7
    %v4199 = vsub.s32 %v4196, %v4198
    %v4200 = vrot.slane %v4193, %v4199
    %v4201 = vcombine.high %v4200, %v4200
    %v4203 = vunpack.c.l.s4 1966171168
    %v4204 = vunpack.c.0.s8 %v4203
    %v4205 = vlaneseq
    %v4206 = vshrl.u32 %v4205, 7
    %v4207 = vsub.s32 %v4204, %v4206
    %v4208 = vrot.slane %v4054, %v4207
    %v4210 = vunpack.c.l.s4 1966171168
    %v4211 = vunpack.c.0.s8 %v4210
    %v4212 = vlaneseq
    %v4213 = vshrl.u32 %v4212, 7
    %v4214 = vsub.s32 %v4211, %v4213
    %v4215 = vrot.slane %v4208, %v4214
    %v4216 = vcombine.high %v4215, %v4215
    %v4218 = vunpack.c.l.s4 1966171168
    %v4219 = vunpack.c.0.s8 %v4218
    %v4220 = vlaneseq
    %v4221 = vshrl.u32 %v4220, 7
    %v4222 = vsub.s32 %v4219, %v4221
    %v4223 = vrot.slane %v4055, %v4222
    %v4225 = vunpack.c.l.s4 1966171168
    %v4226 = vunpack.c.0.s8 %v4225
    %v4227 = vlaneseq
    %v4228 = vshrl.u32 %v4227, 7
    %v4229 = vsub.s32 %v4226, %v4228
    %v4230 = vrot.slane %v4223, %v4229
    %v4231 = vcombine.high %v4230, %v4230
    %v4233 = vunpack.c.l.s4 1966171168
    %v4234 = vunpack.c.0.s8 %v4233
    %v4235 = vlaneseq
    %v4236 = vshrl.u32 %v4235, 7
    %v4237 = vsub.s32 %v4234, %v4236
    %v4238 = vrot.slane %v4056, %v4237
    %v4240 = vunpack.c.l.s4 1966171168
    %v4241 = vunpack.c.0.s8 %v4240
    %v4242 = vlaneseq
    %v4243 = vshrl.u32 %v4242, 7
    %v4244 = vsub.s32 %v4241, %v4243
    %v4245 = vrot.slane %v4238, %v4244
    %v4246 = vcombine.high %v4245, %v4245
    %v4248 = vunpack.c.l.s4 1966171168
    %v4249 = vunpack.c.0.s8 %v4248
    %v4250 = vlaneseq
    %v4251 = vshrl.u32 %v4250, 7
    %v4252 = vsub.s32 %v4249, %v4251
    %v4253 = vrot.slane %v4057, %v4252
    %v4255 = vunpack.c.l.s4 1966171168
    %v4256 = vunpack.c.0.s8 %v4255
    %v4257 = vlaneseq
    %v4258 = vshrl.u32 %v4257, 7
    %v4259 = vsub.s32 %v4256, %v4258
    %v4260 = vrot.slane %v4253, %v4259
    %v4261 = vcombine.high %v4260, %v4260
    %v4263 = vunpack.c.l.s4 1966171168
    %v4264 = vunpack.c.0.s8 %v4263
    %v4265 = vlaneseq
    %v4266 = vshrl.u32 %v4265, 7
    %v4267 = vsub.s32 %v4264, %v4266
    %v4268 = vrot.slane %v4058, %v4267
    %v4270 = vunpack.c.l.s4 1966171168
    %v4271 = vunpack.c.0.s8 %v4270
    %v4272 = vlaneseq
    %v4273 = vshrl.u32 %v4272, 7
    %v4274 = vsub.s32 %v4271, %v4273
    %v4275 = vrot.slane %v4268, %v4274
    %v4276 = vcombine.high %v4275, %v4275
    %v4278 = vunpack.c.l.s4 1966171168
    %v4279 = vunpack.c.0.s8 %v4278
    %v4280 = vlaneseq
    %v4281 = vshrl.u32 %v4280, 7
    %v4282 = vsub.s32 %v4279, %v4281
    %v4283 = vrot.slane %v4059, %v4282
    %v4285 = vunpack.c.l.s4 1966171168
    %v4286 = vunpack.c.0.s8 %v4285
    %v4287 = vlaneseq
    %v4288 = vshrl.u32 %v4287, 7
    %v4289 = vsub.s32 %v4286, %v4288
    %v4290 = vrot.slane %v4283, %v4289
    %v4291 = vcombine.high %v4290, %v4290
    %v4293 = vunpack.c.l.s4 1966171168
    %v4294 = vunpack.c.0.s8 %v4293
    %v4295 = vlaneseq
    %v4296 = vshrl.u32 %v4295, 7
    %v4297 = vsub.s32 %v4294, %v4296
    %v4298 = vrot.slane %v4060, %v4297
    %v4300 = vunpack.c.l.s4 1966171168
    %v4301 = vunpack.c.0.s8 %v4300
    %v4302 = vlaneseq
    %v4303 = vshrl.u32 %v4302, 7
    %v4304 = vsub.s32 %v4301, %v4303
    %v4305 = vrot.slane %v4298, %v4304
    %v4306 = vcombine.high %v4305, %v4305
    %v4308 = vunpack.c.l.s4 1966171168
    %v4309 = vunpack.c.0.s8 %v4308
    %v4310 = vlaneseq
    %v4311 = vshrl.u32 %v4310, 7
    %v4312 = vsub.s32 %v4309, %v4311
    %v4313 = vrot.slane %v4061, %v4312
    %v4315 = vunpack.c.l.s4 1966171168
    %v4316 = vunpack.c.0.s8 %v4315
    %v4317 = vlaneseq
    %v4318 = vshrl.u32 %v4317, 7
    %v4319 = vsub.s32 %v4316, %v4318
    %v4320 = vrot.slane %v4313, %v4319
    %v4321 = vcombine.high %v4320, %v4320
    %v4323 = vunpack.c.l.s4 1966171168
    %v4324 = vunpack.c.0.s8 %v4323
    %v4325 = vlaneseq
    %v4326 = vshrl.u32 %v4325, 7
    %v4327 = vsub.s32 %v4324, %v4326
    %v4328 = vrot.slane %v4062, %v4327
    %v4330 = vunpack.c.l.s4 1966171168
    %v4331 = vunpack.c.0.s8 %v4330
    %v4332 = vlaneseq
    %v4333 = vshrl.u32 %v4332, 7
    %v4334 = vsub.s32 %v4331, %v4333
    %v4335 = vrot.slane %v4328, %v4334
    %v4336 = vcombine.high %v4335, %v4335
    %v4338 = vunpack.c.l.s4 1966171168
    %v4339 = vunpack.c.0.s8 %v4338
    %v4340 = vlaneseq
    %v4341 = vshrl.u32 %v4340, 7
    %v4342 = vsub.s32 %v4339, %v4341
    %v4343 = vrot.slane %v4063, %v4342
    %v4345 = vunpack.c.l.s4 1966171168
    %v4346 = vunpack.c.0.s8 %v4345
    %v4347 = vlaneseq
    %v4348 = vshrl.u32 %v4347, 7
    %v4349 = vsub.s32 %v4346, %v4348
    %v4350 = vrot.slane %v4343, %v4349
    %v4351 = vcombine.high %v4350, %v4350
    %v4353 = vunpack.c.l.s4 1966171168
    %v4354 = vunpack.c.0.s8 %v4353
    %v4355 = vlaneseq
    %v4356 = vshrl.u32 %v4355, 7
    %v4357 = vsub.s32 %v4354, %v4356
    %v4358 = vrot.slane %v4064, %v4357
    %v4360 = vunpack.c.l.s4 1966171168
    %v4361 = vunpack.c.0.s8 %v4360
    %v4362 = vlaneseq
    %v4363 = vshrl.u32 %v4362, 7
    %v4364 = vsub.s32 %v4361, %v4363
    %v4365 = vrot.slane %v4358, %v4364
    %v4366 = vcombine.high %v4365, %v4365
    %v4368 = vunpack.c.l.s4 1966171168
    %v4369 = vunpack.c.0.s8 %v4368
    %v4370 = vlaneseq
    %v4371 = vshrl.u32 %v4370, 7
    %v4372 = vsub.s32 %v4369, %v4371
    %v4373 = vrot.slane %v4065, %v4372
    %v4375 = vunpack.c.l.s4 1966171168
    %v4376 = vunpack.c.0.s8 %v4375
    %v4377 = vlaneseq
    %v4378 = vshrl.u32 %v4377, 7
    %v4379 = vsub.s32 %v4376, %v4378
    %v4380 = vrot.slane %v4373, %v4379
    %v4381 = vcombine.high %v4380, %v4380
    %v4383 = vunpack.c.l.s4 1966171168
    %v4384 = vunpack.c.0.s8 %v4383
    %v4385 = vlaneseq
    %v4386 = vshrl.u32 %v4385, 7
    %v4387 = vsub.s32 %v4384, %v4386
    %v4388 = vrot.slane %v4066, %v4387
    %v4390 = vunpack.c.l.s4 1966171168
    %v4391 = vunpack.c.0.s8 %v4390
    %v4392 = vlaneseq
    %v4393 = vshrl.u32 %v4392, 7
    %v4394 = vsub.s32 %v4391, %v4393
    %v4395 = vrot.slane %v4388, %v4394
    %v4396 = vcombine.high %v4395, %v4395
    %v4398 = vunpack.c.l.s4 1966171168
    %v4399 = vunpack.c.0.s8 %v4398
    %v4400 = vlaneseq
    %v4401 = vshrl.u32 %v4400, 7
    %v4402 = vsub.s32 %v4399, %v4401
    %v4403 = vrot.slane %v4067, %v4402
    %v4405 = vunpack.c.l.s4 1966171168
    %v4406 = vunpack.c.0.s8 %v4405
    %v4407 = vlaneseq
    %v4408 = vshrl.u32 %v4407, 7
    %v4409 = vsub.s32 %v4406, %v4408
    %v4410 = vrot.slane %v4403, %v4409
    %v4411 = vcombine.high %v4410, %v4410
    %v4413 = vunpack.c.l.s4 1966171168
    %v4414 = vunpack.c.0.s8 %v4413
    %v4415 = vlaneseq
    %v4416 = vshrl.u32 %v4415, 7
    %v4417 = vsub.s32 %v4414, %v4416
    %v4418 = vrot.slane %v4068, %v4417
    %v4420 = vunpack.c.l.s4 1966171168
    %v4421 = vunpack.c.0.s8 %v4420
    %v4422 = vlaneseq
    %v4423 = vshrl.u32 %v4422, 7
    %v4424 = vsub.s32 %v4421, %v4423
    %v4425 = vrot.slane %v4418, %v4424
    %v4426 = vcombine.high %v4425, %v4425
    %v4428 = vunpack.c.l.s4 1966171168
    %v4429 = vunpack.c.0.s8 %v4428
    %v4430 = vlaneseq
    %v4431 = vshrl.u32 %v4430, 7
    %v4432 = vsub.s32 %v4429, %v4431
    %v4433 = vrot.slane %v4069, %v4432
    %v4435 = vunpack.c.l.s4 1966171168
    %v4436 = vunpack.c.0.s8 %v4435
    %v4437 = vlaneseq
    %v4438 = vshrl.u32 %v4437, 7
    %v4439 = vsub.s32 %v4436, %v4438
    %v4440 = vrot.slane %v4433, %v4439
    %v4441 = vcombine.high %v4440, %v4440
    %v4443 = vunpack.c.l.s4 1966171168
    %v4444 = vunpack.c.0.s8 %v4443
    %v4445 = vlaneseq
    %v4446 = vshrl.u32 %v4445, 7
    %v4447 = vsub.s32 %v4444, %v4446
    %v4448 = vrot.slane %v4070, %v4447
    %v4450 = vunpack.c.l.s4 1966171168
    %v4451 = vunpack.c.0.s8 %v4450
    %v4452 = vlaneseq
    %v4453 = vshrl.u32 %v4452, 7
    %v4454 = vsub.s32 %v4451, %v4453
    %v4455 = vrot.slane %v4448, %v4454
    %v4456 = vcombine.high %v4455, %v4455
    %v4458 = vunpack.c.l.s4 1966171168
    %v4459 = vunpack.c.0.s8 %v4458
    %v4460 = vlaneseq
    %v4461 = vshrl.u32 %v4460, 7
    %v4462 = vsub.s32 %v4459, %v4461
    %v4463 = vrot.slane %v4071, %v4462
    %v4465 = vunpack.c.l.s4 1966171168
    %v4466 = vunpack.c.0.s8 %v4465
    %v4467 = vlaneseq
    %v4468 = vshrl.u32 %v4467, 7
    %v4469 = vsub.s32 %v4466, %v4468
    %v4470 = vrot.slane %v4463, %v4469
    %v4471 = vcombine.high %v4470, %v4470
    %v4473 = vunpack.c.l.s4 1966171168
    %v4474 = vunpack.c.0.s8 %v4473
    %v4475 = vlaneseq
    %v4476 = vshrl.u32 %v4475, 7
    %v4477 = vsub.s32 %v4474, %v4476
    %v4478 = vrot.slane %v4072, %v4477
    %v4480 = vunpack.c.l.s4 1966171168
    %v4481 = vunpack.c.0.s8 %v4480
    %v4482 = vlaneseq
    %v4483 = vshrl.u32 %v4482, 7
    %v4484 = vsub.s32 %v4481, %v4483
    %v4485 = vrot.slane %v4478, %v4484
    %v4486 = vcombine.high %v4485, %v4485
    %v4488 = vunpack.c.l.s4 1966171168
    %v4489 = vunpack.c.0.s8 %v4488
    %v4490 = vlaneseq
    %v4491 = vshrl.u32 %v4490, 7
    %v4492 = vsub.s32 %v4489, %v4491
    %v4493 = vrot.slane %v4073, %v4492
    %v4495 = vunpack.c.l.s4 1966171168
    %v4496 = vunpack.c.0.s8 %v4495
    %v4497 = vlaneseq
    %v4498 = vshrl.u32 %v4497, 7
    %v4499 = vsub.s32 %v4496, %v4498
    %v4500 = vrot.slane %v4493, %v4499
    %v4501 = vcombine.high %v4500, %v4500
    %v4503 = vunpack.c.l.s4 1966171168
    %v4504 = vunpack.c.0.s8 %v4503
    %v4505 = vlaneseq
    %v4506 = vshrl.u32 %v4505, 7
    %v4507 = vsub.s32 %v4504, %v4506
    %v4508 = vrot.slane %v4074, %v4507
    %v4510 = vunpack.c.l.s4 1966171168
    %v4511 = vunpack.c.0.s8 %v4510
    %v4512 = vlaneseq
    %v4513 = vshrl.u32 %v4512, 7
    %v4514 = vsub.s32 %v4511, %v4513
    %v4515 = vrot.slane %v4508, %v4514
    %v4516 = vcombine.high %v4515, %v4515
    %v4518 = vunpack.c.l.s4 1966171168
    %v4519 = vunpack.c.0.s8 %v4518
    %v4520 = vlaneseq
    %v4521 = vshrl.u32 %v4520, 7
    %v4522 = vsub.s32 %v4519, %v4521
    %v4523 = vrot.slane %v4075, %v4522
    %v4525 = vunpack.c.l.s4 1966171168
    %v4526 = vunpack.c.0.s8 %v4525
    %v4527 = vlaneseq
    %v4528 = vshrl.u32 %v4527, 7
    %v4529 = vsub.s32 %v4526, %v4528
    %v4530 = vrot.slane %v4523, %v4529
    %v4531 = vcombine.high %v4530, %v4530
    %v4533 = vunpack.c.l.s4 1966171168
    %v4534 = vunpack.c.0.s8 %v4533
    %v4535 = vlaneseq
    %v4536 = vshrl.u32 %v4535, 7
    %v4537 = vsub.s32 %v4534, %v4536
    %v4538 = vrot.slane %v4076, %v4537
    %v4540 = vunpack.c.l.s4 1966171168
    %v4541 = vunpack.c.0.s8 %v4540
    %v4542 = vlaneseq
    %v4543 = vshrl.u32 %v4542, 7
    %v4544 = vsub.s32 %v4541, %v4543
    %v4545 = vrot.slane %v4538, %v4544
    %v4546 = vcombine.high %v4545, %v4545
    %v4548 = vunpack.c.l.s4 1966171168
    %v4549 = vunpack.c.0.s8 %v4548
    %v4550 = vlaneseq
    %v4551 = vshrl.u32 %v4550, 7
    %v4552 = vsub.s32 %v4549, %v4551
    %v4553 = vrot.slane %v4077, %v4552
    %v4555 = vunpack.c.l.s4 1966171168
    %v4556 = vunpack.c.0.s8 %v4555
    %v4557 = vlaneseq
    %v4558 = vshrl.u32 %v4557, 7
    %v4559 = vsub.s32 %v4556, %v4558
    %v4560 = vrot.slane %v4553, %v4559
    %v4561 = vcombine.high %v4560, %v4560
    %v4563 = vunpack.c.l.s4 1966171168
    %v4564 = vunpack.c.0.s8 %v4563
    %v4565 = vlaneseq
    %v4566 = vshrl.u32 %v4565, 7
    %v4567 = vsub.s32 %v4564, %v4566
    %v4568 = vrot.slane %v4078, %v4567
    %v4570 = vunpack.c.l.s4 1966171168
    %v4571 = vunpack.c.0.s8 %v4570
    %v4572 = vlaneseq
    %v4573 = vshrl.u32 %v4572, 7
    %v4574 = vsub.s32 %v4571, %v4573
    %v4575 = vrot.slane %v4568, %v4574
    %v4576 = vcombine.high %v4575, %v4575
    %v4578 = vunpack.c.l.s4 1966171168
    %v4579 = vunpack.c.0.s8 %v4578
    %v4580 = vlaneseq
    %v4581 = vshrl.u32 %v4580, 7
    %v4582 = vsub.s32 %v4579, %v4581
    %v4583 = vrot.slane %v4079, %v4582
    %v4585 = vunpack.c.l.s4 1966171168
    %v4586 = vunpack.c.0.s8 %v4585
    %v4587 = vlaneseq
    %v4588 = vshrl.u32 %v4587, 7
    %v4589 = vsub.s32 %v4586, %v4588
    %v4590 = vrot.slane %v4583, %v4589
    %v4591 = vcombine.high %v4590, %v4590
    %v4624 = vadd.f32 %v3888, %v4126
    %v4625 = vadd.f32 %v3889, %v4141
    %v4626 = vadd.f32 %v3890, %v4156
    %v4627 = vadd.f32 %v3891, %v4171
    %v4628 = vadd.f32 %v3892, %v4186
    %v4629 = vadd.f32 %v3893, %v4201
    %v4630 = vadd.f32 %v3894, %v4216
    %v4631 = vadd.f32 %v3895, %v4231
    %v4632 = vadd.f32 %v3896, %v4246
    %v4633 = vadd.f32 %v3897, %v4261
    %v4634 = vadd.f32 %v3898, %v4276
    %v4635 = vadd.f32 %v3899, %v4291
    %v4636 = vadd.f32 %v3900, %v4306
    %v4637 = vadd.f32 %v3901, %v4321
    %v4638 = vadd.f32 %v3902, %v4336
    %v4639 = vadd.f32 %v3903, %v4351
    %v4640 = vadd.f32 %v3904, %v4366
    %v4641 = vadd.f32 %v3905, %v4381
    %v4642 = vadd.f32 %v3906, %v4396
    %v4643 = vadd.f32 %v3907, %v4411
    %v4644 = vadd.f32 %v3908, %v4426
    %v4645 = vadd.f32 %v3909, %v4441
    %v4646 = vadd.f32 %v3910, %v4456
    %v4647 = vadd.f32 %v3911, %v4471
    %v4648 = vadd.f32 %v3912, %v4486
    %v4649 = vadd.f32 %v3913, %v4501
    %v4650 = vadd.f32 %v3914, %v4516
    %v4651 = vadd.f32 %v3915, %v4531
    %v4652 = vadd.f32 %v3916, %v4546
    %v4653 = vadd.f32 %v3917, %v4561
    %v4654 = vadd.f32 %v3918, %v4576
    %v4655 = vadd.f32 %v3919, %v4591
    %4657 = vset.pattern.permute.xlu0 0
    %4658 = vperm.xlu0 %4657, %v426
    %v4659 = vpop.permute.xlu0 %4658
    %4662 = vset.pattern.permute.xlu0 0
    %4663 = vperm.xlu0 %4662, %v427
    %v4664 = vpop.permute.xlu0 %4663
    %4667 = vset.pattern.permute.xlu0 0
    %4668 = vperm.xlu0 %4667, %v428
    %v4669 = vpop.permute.xlu0 %4668
    %4672 = vset.pattern.permute.xlu0 0
    %4673 = vperm.xlu0 %4672, %v429
    %v4674 = vpop.permute.xlu0 %4673
    %4677 = vset.pattern.permute.xlu0 0
    %4678 = vperm.xlu0 %4677, %v430
    %v4679 = vpop.permute.xlu0 %4678
    %4682 = vset.pattern.permute.xlu0 0
    %4683 = vperm.xlu0 %4682, %v431
    %v4684 = vpop.permute.xlu0 %4683
    %4687 = vset.pattern.permute.xlu0 0
    %4688 = vperm.xlu0 %4687, %v432
    %v4689 = vpop.permute.xlu0 %4688
    %4692 = vset.pattern.permute.xlu0 0
    %4693 = vperm.xlu0 %4692, %v433
    %v4694 = vpop.permute.xlu0 %4693
    %4697 = vset.pattern.permute.xlu0 0
    %4698 = vperm.xlu0 %4697, %v434
    %v4699 = vpop.permute.xlu0 %4698
    %4702 = vset.pattern.permute.xlu0 0
    %4703 = vperm.xlu0 %4702, %v435
    %v4704 = vpop.permute.xlu0 %4703
    %4707 = vset.pattern.permute.xlu0 0
    %4708 = vperm.xlu0 %4707, %v436
    %v4709 = vpop.permute.xlu0 %4708
    %4712 = vset.pattern.permute.xlu0 0
    %4713 = vperm.xlu0 %4712, %v437
    %v4714 = vpop.permute.xlu0 %4713
    %4717 = vset.pattern.permute.xlu0 0
    %4718 = vperm.xlu0 %4717, %v438
    %v4719 = vpop.permute.xlu0 %4718
    %4722 = vset.pattern.permute.xlu0 0
    %4723 = vperm.xlu0 %4722, %v439
    %v4724 = vpop.permute.xlu0 %4723
    %4727 = vset.pattern.permute.xlu0 0
    %4728 = vperm.xlu0 %4727, %v440
    %v4729 = vpop.permute.xlu0 %4728
    %4732 = vset.pattern.permute.xlu0 0
    %4733 = vperm.xlu0 %4732, %v441
    %v4734 = vpop.permute.xlu0 %4733
    %4737 = vset.pattern.permute.xlu0 0
    %4738 = vperm.xlu0 %4737, %v442
    %v4739 = vpop.permute.xlu0 %4738
    %4742 = vset.pattern.permute.xlu0 0
    %4743 = vperm.xlu0 %4742, %v443
    %v4744 = vpop.permute.xlu0 %4743
    %4747 = vset.pattern.permute.xlu0 0
    %4748 = vperm.xlu0 %4747, %v444
    %v4749 = vpop.permute.xlu0 %4748
    %4752 = vset.pattern.permute.xlu0 0
    %4753 = vperm.xlu0 %4752, %v445
    %v4754 = vpop.permute.xlu0 %4753
    %4757 = vset.pattern.permute.xlu0 0
    %4758 = vperm.xlu0 %4757, %v446
    %v4759 = vpop.permute.xlu0 %4758
    %4762 = vset.pattern.permute.xlu0 0
    %4763 = vperm.xlu0 %4762, %v447
    %v4764 = vpop.permute.xlu0 %4763
    %4767 = vset.pattern.permute.xlu0 0
    %4768 = vperm.xlu0 %4767, %v448
    %v4769 = vpop.permute.xlu0 %4768
    %4772 = vset.pattern.permute.xlu0 0
    %4773 = vperm.xlu0 %4772, %v449
    %v4774 = vpop.permute.xlu0 %4773
    %4777 = vset.pattern.permute.xlu0 0
    %4778 = vperm.xlu0 %4777, %v450
    %v4779 = vpop.permute.xlu0 %4778
    %4782 = vset.pattern.permute.xlu0 0
    %4783 = vperm.xlu0 %4782, %v451
    %v4784 = vpop.permute.xlu0 %4783
    %4787 = vset.pattern.permute.xlu0 0
    %4788 = vperm.xlu0 %4787, %v452
    %v4789 = vpop.permute.xlu0 %4788
    %4792 = vset.pattern.permute.xlu0 0
    %4793 = vperm.xlu0 %4792, %v453
    %v4794 = vpop.permute.xlu0 %4793
    %4797 = vset.pattern.permute.xlu0 0
    %4798 = vperm.xlu0 %4797, %v454
    %v4799 = vpop.permute.xlu0 %4798
    %4802 = vset.pattern.permute.xlu0 0
    %4803 = vperm.xlu0 %4802, %v455
    %v4804 = vpop.permute.xlu0 %4803
    %4807 = vset.pattern.permute.xlu0 0
    %4808 = vperm.xlu0 %4807, %v456
    %v4809 = vpop.permute.xlu0 %4808
    %4812 = vset.pattern.permute.xlu0 0
    %4813 = vperm.xlu0 %4812, %v457
    %v4814 = vpop.permute.xlu0 %4813
    %v4816 = vlaneseq
    %v4817 = vshrl.u32 %v4816, 7
    %v4818 = vsub.s32 0, %v4817
    %v4819 = vrot.slane %v1260, %v4818
    %v4820 = vmul.f32 %v4659, %v4819
    %v4821 = vmul.f32 %v4664, %v4819
    %v4822 = vmul.f32 %v4669, %v4819
    %v4823 = vmul.f32 %v4674, %v4819
    %v4824 = vmul.f32 %v4679, %v4819
    %v4825 = vmul.f32 %v4684, %v4819
    %v4826 = vmul.f32 %v4689, %v4819
    %v4827 = vmul.f32 %v4694, %v4819
    %v4828 = vmul.f32 %v4699, %v4819
    %v4829 = vmul.f32 %v4704, %v4819
    %v4830 = vmul.f32 %v4709, %v4819
    %v4831 = vmul.f32 %v4714, %v4819
    %v4832 = vmul.f32 %v4719, %v4819
    %v4833 = vmul.f32 %v4724, %v4819
    %v4834 = vmul.f32 %v4729, %v4819
    %v4835 = vmul.f32 %v4734, %v4819
    %v4836 = vmul.f32 %v4739, %v4819
    %v4837 = vmul.f32 %v4744, %v4819
    %v4838 = vmul.f32 %v4749, %v4819
    %v4839 = vmul.f32 %v4754, %v4819
    %v4840 = vmul.f32 %v4759, %v4819
    %v4841 = vmul.f32 %v4764, %v4819
    %v4842 = vmul.f32 %v4769, %v4819
    %v4843 = vmul.f32 %v4774, %v4819
    %v4844 = vmul.f32 %v4779, %v4819
    %v4845 = vmul.f32 %v4784, %v4819
    %v4846 = vmul.f32 %v4789, %v4819
    %v4847 = vmul.f32 %v4794, %v4819
    %v4848 = vmul.f32 %v4799, %v4819
    %v4849 = vmul.f32 %v4804, %v4819
    %v4850 = vmul.f32 %v4809, %v4819
    %v4851 = vmul.f32 %v4814, %v4819
    %v4884 = vlaneseq
    %v4885 = vshrl.u32 %v4884, 7
    %v4886 = vsub.s32 0, %v4885
    %v4887 = vrot.slane %v4624, %v4886
    %v4888 = vlaneseq
    %v4889 = vshrl.u32 %v4888, 7
    %v4890 = vsub.s32 0, %v4889
    %v4891 = vrot.slane %v4625, %v4890
    %v4892 = vlaneseq
    %v4893 = vshrl.u32 %v4892, 7
    %v4894 = vsub.s32 0, %v4893
    %v4895 = vrot.slane %v4626, %v4894
    %v4896 = vlaneseq
    %v4897 = vshrl.u32 %v4896, 7
    %v4898 = vsub.s32 0, %v4897
    %v4899 = vrot.slane %v4627, %v4898
    %v4900 = vlaneseq
    %v4901 = vshrl.u32 %v4900, 7
    %v4902 = vsub.s32 0, %v4901
    %v4903 = vrot.slane %v4628, %v4902
    %v4904 = vlaneseq
    %v4905 = vshrl.u32 %v4904, 7
    %v4906 = vsub.s32 0, %v4905
    %v4907 = vrot.slane %v4629, %v4906
    %v4908 = vlaneseq
    %v4909 = vshrl.u32 %v4908, 7
    %v4910 = vsub.s32 0, %v4909
    %v4911 = vrot.slane %v4630, %v4910
    %v4912 = vlaneseq
    %v4913 = vshrl.u32 %v4912, 7
    %v4914 = vsub.s32 0, %v4913
    %v4915 = vrot.slane %v4631, %v4914
    %v4916 = vlaneseq
    %v4917 = vshrl.u32 %v4916, 7
    %v4918 = vsub.s32 0, %v4917
    %v4919 = vrot.slane %v4632, %v4918
    %v4920 = vlaneseq
    %v4921 = vshrl.u32 %v4920, 7
    %v4922 = vsub.s32 0, %v4921
    %v4923 = vrot.slane %v4633, %v4922
    %v4924 = vlaneseq
    %v4925 = vshrl.u32 %v4924, 7
    %v4926 = vsub.s32 0, %v4925
    %v4927 = vrot.slane %v4634, %v4926
    %v4928 = vlaneseq
    %v4929 = vshrl.u32 %v4928, 7
    %v4930 = vsub.s32 0, %v4929
    %v4931 = vrot.slane %v4635, %v4930
    %v4932 = vlaneseq
    %v4933 = vshrl.u32 %v4932, 7
    %v4934 = vsub.s32 0, %v4933
    %v4935 = vrot.slane %v4636, %v4934
    %v4936 = vlaneseq
    %v4937 = vshrl.u32 %v4936, 7
    %v4938 = vsub.s32 0, %v4937
    %v4939 = vrot.slane %v4637, %v4938
    %v4940 = vlaneseq
    %v4941 = vshrl.u32 %v4940, 7
    %v4942 = vsub.s32 0, %v4941
    %v4943 = vrot.slane %v4638, %v4942
    %v4944 = vlaneseq
    %v4945 = vshrl.u32 %v4944, 7
    %v4946 = vsub.s32 0, %v4945
    %v4947 = vrot.slane %v4639, %v4946
    %v4948 = vlaneseq
    %v4949 = vshrl.u32 %v4948, 7
    %v4950 = vsub.s32 0, %v4949
    %v4951 = vrot.slane %v4640, %v4950
    %v4952 = vlaneseq
    %v4953 = vshrl.u32 %v4952, 7
    %v4954 = vsub.s32 0, %v4953
    %v4955 = vrot.slane %v4641, %v4954
    %v4956 = vlaneseq
    %v4957 = vshrl.u32 %v4956, 7
    %v4958 = vsub.s32 0, %v4957
    %v4959 = vrot.slane %v4642, %v4958
    %v4960 = vlaneseq
    %v4961 = vshrl.u32 %v4960, 7
    %v4962 = vsub.s32 0, %v4961
    %v4963 = vrot.slane %v4643, %v4962
    %v4964 = vlaneseq
    %v4965 = vshrl.u32 %v4964, 7
    %v4966 = vsub.s32 0, %v4965
    %v4967 = vrot.slane %v4644, %v4966
    %v4968 = vlaneseq
    %v4969 = vshrl.u32 %v4968, 7
    %v4970 = vsub.s32 0, %v4969
    %v4971 = vrot.slane %v4645, %v4970
    %v4972 = vlaneseq
    %v4973 = vshrl.u32 %v4972, 7
    %v4974 = vsub.s32 0, %v4973
    %v4975 = vrot.slane %v4646, %v4974
    %v4976 = vlaneseq
    %v4977 = vshrl.u32 %v4976, 7
    %v4978 = vsub.s32 0, %v4977
    %v4979 = vrot.slane %v4647, %v4978
    %v4980 = vlaneseq
    %v4981 = vshrl.u32 %v4980, 7
    %v4982 = vsub.s32 0, %v4981
    %v4983 = vrot.slane %v4648, %v4982
    %v4984 = vlaneseq
    %v4985 = vshrl.u32 %v4984, 7
    %v4986 = vsub.s32 0, %v4985
    %v4987 = vrot.slane %v4649, %v4986
    %v4988 = vlaneseq
    %v4989 = vshrl.u32 %v4988, 7
    %v4990 = vsub.s32 0, %v4989
    %v4991 = vrot.slane %v4650, %v4990
    %v4992 = vlaneseq
    %v4993 = vshrl.u32 %v4992, 7
    %v4994 = vsub.s32 0, %v4993
    %v4995 = vrot.slane %v4651, %v4994
    %v4996 = vlaneseq
    %v4997 = vshrl.u32 %v4996, 7
    %v4998 = vsub.s32 0, %v4997
    %v4999 = vrot.slane %v4652, %v4998
    %v5000 = vlaneseq
    %v5001 = vshrl.u32 %v5000, 7
    %v5002 = vsub.s32 0, %v5001
    %v5003 = vrot.slane %v4653, %v5002
    %v5004 = vlaneseq
    %v5005 = vshrl.u32 %v5004, 7
    %v5006 = vsub.s32 0, %v5005
    %v5007 = vrot.slane %v4654, %v5006
    %v5008 = vlaneseq
    %v5009 = vshrl.u32 %v5008, 7
    %v5010 = vsub.s32 0, %v5009
    %v5011 = vrot.slane %v4655, %v5010
    %v5044 = vadd.f32 %v4887, %v4820
    %v5045 = vadd.f32 %v4891, %v4821
    %v5046 = vadd.f32 %v4895, %v4822
    %v5047 = vadd.f32 %v4899, %v4823
    %v5048 = vadd.f32 %v4903, %v4824
    %v5049 = vadd.f32 %v4907, %v4825
    %v5050 = vadd.f32 %v4911, %v4826
    %v5051 = vadd.f32 %v4915, %v4827
    %v5052 = vadd.f32 %v4919, %v4828
    %v5053 = vadd.f32 %v4923, %v4829
    %v5054 = vadd.f32 %v4927, %v4830
    %v5055 = vadd.f32 %v4931, %v4831
    %v5056 = vadd.f32 %v4935, %v4832
    %v5057 = vadd.f32 %v4939, %v4833
    %v5058 = vadd.f32 %v4943, %v4834
    %v5059 = vadd.f32 %v4947, %v4835
    %v5060 = vadd.f32 %v4951, %v4836
    %v5061 = vadd.f32 %v4955, %v4837
    %v5062 = vadd.f32 %v4959, %v4838
    %v5063 = vadd.f32 %v4963, %v4839
    %v5064 = vadd.f32 %v4967, %v4840
    %v5065 = vadd.f32 %v4971, %v4841
    %v5066 = vadd.f32 %v4975, %v4842
    %v5067 = vadd.f32 %v4979, %v4843
    %v5068 = vadd.f32 %v4983, %v4844
    %v5069 = vadd.f32 %v4987, %v4845
    %v5070 = vadd.f32 %v4991, %v4846
    %v5071 = vadd.f32 %v4995, %v4847
    %v5072 = vadd.f32 %v4999, %v4848
    %v5073 = vadd.f32 %v5003, %v4849
    %v5074 = vadd.f32 %v5007, %v4850
    %v5075 = vadd.f32 %v5011, %v4851
    %5076 = vset.pattern.permute.xlu0 1
    %5077 = vperm.xlu0 %5076, %v426
    %v5078 = vpop.permute.xlu0 %5077
    %5080 = vset.pattern.permute.xlu0 1
    %5081 = vperm.xlu0 %5080, %v427
    %v5082 = vpop.permute.xlu0 %5081
    %5084 = vset.pattern.permute.xlu0 1
    %5085 = vperm.xlu0 %5084, %v428
    %v5086 = vpop.permute.xlu0 %5085
    %5088 = vset.pattern.permute.xlu0 1
    %5089 = vperm.xlu0 %5088, %v429
    %v5090 = vpop.permute.xlu0 %5089
    %5092 = vset.pattern.permute.xlu0 1
    %5093 = vperm.xlu0 %5092, %v430
    %v5094 = vpop.permute.xlu0 %5093
    %5096 = vset.pattern.permute.xlu0 1
    %5097 = vperm.xlu0 %5096, %v431
    %v5098 = vpop.permute.xlu0 %5097
    %5100 = vset.pattern.permute.xlu0 1
    %5101 = vperm.xlu0 %5100, %v432
    %v5102 = vpop.permute.xlu0 %5101
    %5104 = vset.pattern.permute.xlu0 1
    %5105 = vperm.xlu0 %5104, %v433
    %v5106 = vpop.permute.xlu0 %5105
    %5108 = vset.pattern.permute.xlu0 1
    %5109 = vperm.xlu0 %5108, %v434
    %v5110 = vpop.permute.xlu0 %5109
    %5112 = vset.pattern.permute.xlu0 1
    %5113 = vperm.xlu0 %5112, %v435
    %v5114 = vpop.permute.xlu0 %5113
    %5116 = vset.pattern.permute.xlu0 1
    %5117 = vperm.xlu0 %5116, %v436
    %v5118 = vpop.permute.xlu0 %5117
    %5120 = vset.pattern.permute.xlu0 1
    %5121 = vperm.xlu0 %5120, %v437
    %v5122 = vpop.permute.xlu0 %5121
    %5124 = vset.pattern.permute.xlu0 1
    %5125 = vperm.xlu0 %5124, %v438
    %v5126 = vpop.permute.xlu0 %5125
    %5128 = vset.pattern.permute.xlu0 1
    %5129 = vperm.xlu0 %5128, %v439
    %v5130 = vpop.permute.xlu0 %5129
    %5132 = vset.pattern.permute.xlu0 1
    %5133 = vperm.xlu0 %5132, %v440
    %v5134 = vpop.permute.xlu0 %5133
    %5136 = vset.pattern.permute.xlu0 1
    %5137 = vperm.xlu0 %5136, %v441
    %v5138 = vpop.permute.xlu0 %5137
    %5140 = vset.pattern.permute.xlu0 1
    %5141 = vperm.xlu0 %5140, %v442
    %v5142 = vpop.permute.xlu0 %5141
    %5144 = vset.pattern.permute.xlu0 1
    %5145 = vperm.xlu0 %5144, %v443
    %v5146 = vpop.permute.xlu0 %5145
    %5148 = vset.pattern.permute.xlu0 1
    %5149 = vperm.xlu0 %5148, %v444
    %v5150 = vpop.permute.xlu0 %5149
    %5152 = vset.pattern.permute.xlu0 1
    %5153 = vperm.xlu0 %5152, %v445
    %v5154 = vpop.permute.xlu0 %5153
    %5156 = vset.pattern.permute.xlu0 1
    %5157 = vperm.xlu0 %5156, %v446
    %v5158 = vpop.permute.xlu0 %5157
    %5160 = vset.pattern.permute.xlu0 1
    %5161 = vperm.xlu0 %5160, %v447
    %v5162 = vpop.permute.xlu0 %5161
    %5164 = vset.pattern.permute.xlu0 1
    %5165 = vperm.xlu0 %5164, %v448
    %v5166 = vpop.permute.xlu0 %5165
    %5168 = vset.pattern.permute.xlu0 1
    %5169 = vperm.xlu0 %5168, %v449
    %v5170 = vpop.permute.xlu0 %5169
    %5172 = vset.pattern.permute.xlu0 1
    %5173 = vperm.xlu0 %5172, %v450
    %v5174 = vpop.permute.xlu0 %5173
    %5176 = vset.pattern.permute.xlu0 1
    %5177 = vperm.xlu0 %5176, %v451
    %v5178 = vpop.permute.xlu0 %5177
    %5180 = vset.pattern.permute.xlu0 1
    %5181 = vperm.xlu0 %5180, %v452
    %v5182 = vpop.permute.xlu0 %5181
    %5184 = vset.pattern.permute.xlu0 1
    %5185 = vperm.xlu0 %5184, %v453
    %v5186 = vpop.permute.xlu0 %5185
    %5188 = vset.pattern.permute.xlu0 1
    %5189 = vperm.xlu0 %5188, %v454
    %v5190 = vpop.permute.xlu0 %5189
    %5192 = vset.pattern.permute.xlu0 1
    %5193 = vperm.xlu0 %5192, %v455
    %v5194 = vpop.permute.xlu0 %5193
    %5196 = vset.pattern.permute.xlu0 1
    %5197 = vperm.xlu0 %5196, %v456
    %v5198 = vpop.permute.xlu0 %5197
    %5200 = vset.pattern.permute.xlu0 1
    %5201 = vperm.xlu0 %5200, %v457
    %v5202 = vpop.permute.xlu0 %5201
    %v5204 = vlaneseq
    %v5205 = vshrl.u32 %v5204, 7
    %v5206 = vsub.s32 1, %v5205
    %v5207 = vrot.slane %v1260, %v5206
    %v5208 = vmul.f32 %v5078, %v5207
    %v5209 = vmul.f32 %v5082, %v5207
    %v5210 = vmul.f32 %v5086, %v5207
    %v5211 = vmul.f32 %v5090, %v5207
    %v5212 = vmul.f32 %v5094, %v5207
    %v5213 = vmul.f32 %v5098, %v5207
    %v5214 = vmul.f32 %v5102, %v5207
    %v5215 = vmul.f32 %v5106, %v5207
    %v5216 = vmul.f32 %v5110, %v5207
    %v5217 = vmul.f32 %v5114, %v5207
    %v5218 = vmul.f32 %v5118, %v5207
    %v5219 = vmul.f32 %v5122, %v5207
    %v5220 = vmul.f32 %v5126, %v5207
    %v5221 = vmul.f32 %v5130, %v5207
    %v5222 = vmul.f32 %v5134, %v5207
    %v5223 = vmul.f32 %v5138, %v5207
    %v5224 = vmul.f32 %v5142, %v5207
    %v5225 = vmul.f32 %v5146, %v5207
    %v5226 = vmul.f32 %v5150, %v5207
    %v5227 = vmul.f32 %v5154, %v5207
    %v5228 = vmul.f32 %v5158, %v5207
    %v5229 = vmul.f32 %v5162, %v5207
    %v5230 = vmul.f32 %v5166, %v5207
    %v5231 = vmul.f32 %v5170, %v5207
    %v5232 = vmul.f32 %v5174, %v5207
    %v5233 = vmul.f32 %v5178, %v5207
    %v5234 = vmul.f32 %v5182, %v5207
    %v5235 = vmul.f32 %v5186, %v5207
    %v5236 = vmul.f32 %v5190, %v5207
    %v5237 = vmul.f32 %v5194, %v5207
    %v5238 = vmul.f32 %v5198, %v5207
    %v5239 = vmul.f32 %v5202, %v5207
    %v5240 = vadd.f32 %v5044, %v5208
    %v5241 = vadd.f32 %v5045, %v5209
    %v5242 = vadd.f32 %v5046, %v5210
    %v5243 = vadd.f32 %v5047, %v5211
    %v5244 = vadd.f32 %v5048, %v5212
    %v5245 = vadd.f32 %v5049, %v5213
    %v5246 = vadd.f32 %v5050, %v5214
    %v5247 = vadd.f32 %v5051, %v5215
    %v5248 = vadd.f32 %v5052, %v5216
    %v5249 = vadd.f32 %v5053, %v5217
    %v5250 = vadd.f32 %v5054, %v5218
    %v5251 = vadd.f32 %v5055, %v5219
    %v5252 = vadd.f32 %v5056, %v5220
    %v5253 = vadd.f32 %v5057, %v5221
    %v5254 = vadd.f32 %v5058, %v5222
    %v5255 = vadd.f32 %v5059, %v5223
    %v5256 = vadd.f32 %v5060, %v5224
    %v5257 = vadd.f32 %v5061, %v5225
    %v5258 = vadd.f32 %v5062, %v5226
    %v5259 = vadd.f32 %v5063, %v5227
    %v5260 = vadd.f32 %v5064, %v5228
    %v5261 = vadd.f32 %v5065, %v5229
    %v5262 = vadd.f32 %v5066, %v5230
    %v5263 = vadd.f32 %v5067, %v5231
    %v5264 = vadd.f32 %v5068, %v5232
    %v5265 = vadd.f32 %v5069, %v5233
    %v5266 = vadd.f32 %v5070, %v5234
    %v5267 = vadd.f32 %v5071, %v5235
    %v5268 = vadd.f32 %v5072, %v5236
    %v5269 = vadd.f32 %v5073, %v5237
    %v5270 = vadd.f32 %v5074, %v5238
    %v5271 = vadd.f32 %v5075, %v5239
    %5272 = vset.pattern.permute.xlu0 2
    %5273 = vperm.xlu0 %5272, %v426
    %v5274 = vpop.permute.xlu0 %5273
    %5276 = vset.pattern.permute.xlu0 2
    %5277 = vperm.xlu0 %5276, %v427
    %v5278 = vpop.permute.xlu0 %5277
    %5280 = vset.pattern.permute.xlu0 2
    %5281 = vperm.xlu0 %5280, %v428
    %v5282 = vpop.permute.xlu0 %5281
    %5284 = vset.pattern.permute.xlu0 2
    %5285 = vperm.xlu0 %5284, %v429
    %v5286 = vpop.permute.xlu0 %5285
    %5288 = vset.pattern.permute.xlu0 2
    %5289 = vperm.xlu0 %5288, %v430
    %v5290 = vpop.permute.xlu0 %5289
    %5292 = vset.pattern.permute.xlu0 2
    %5293 = vperm.xlu0 %5292, %v431
    %v5294 = vpop.permute.xlu0 %5293
    %5296 = vset.pattern.permute.xlu0 2
    %5297 = vperm.xlu0 %5296, %v432
    %v5298 = vpop.permute.xlu0 %5297
    %5300 = vset.pattern.permute.xlu0 2
    %5301 = vperm.xlu0 %5300, %v433
    %v5302 = vpop.permute.xlu0 %5301
    %5304 = vset.pattern.permute.xlu0 2
    %5305 = vperm.xlu0 %5304, %v434
    %v5306 = vpop.permute.xlu0 %5305
    %5308 = vset.pattern.permute.xlu0 2
    %5309 = vperm.xlu0 %5308, %v435
    %v5310 = vpop.permute.xlu0 %5309
    %5312 = vset.pattern.permute.xlu0 2
    %5313 = vperm.xlu0 %5312, %v436
    %v5314 = vpop.permute.xlu0 %5313
    %5316 = vset.pattern.permute.xlu0 2
    %5317 = vperm.xlu0 %5316, %v437
    %v5318 = vpop.permute.xlu0 %5317
    %5320 = vset.pattern.permute.xlu0 2
    %5321 = vperm.xlu0 %5320, %v438
    %v5322 = vpop.permute.xlu0 %5321
    %5324 = vset.pattern.permute.xlu0 2
    %5325 = vperm.xlu0 %5324, %v439
    %v5326 = vpop.permute.xlu0 %5325
    %5328 = vset.pattern.permute.xlu0 2
    %5329 = vperm.xlu0 %5328, %v440
    %v5330 = vpop.permute.xlu0 %5329
    %5332 = vset.pattern.permute.xlu0 2
    %5333 = vperm.xlu0 %5332, %v441
    %v5334 = vpop.permute.xlu0 %5333
    %5336 = vset.pattern.permute.xlu0 2
    %5337 = vperm.xlu0 %5336, %v442
    %v5338 = vpop.permute.xlu0 %5337
    %5340 = vset.pattern.permute.xlu0 2
    %5341 = vperm.xlu0 %5340, %v443
    %v5342 = vpop.permute.xlu0 %5341
    %5344 = vset.pattern.permute.xlu0 2
    %5345 = vperm.xlu0 %5344, %v444
    %v5346 = vpop.permute.xlu0 %5345
    %5348 = vset.pattern.permute.xlu0 2
    %5349 = vperm.xlu0 %5348, %v445
    %v5350 = vpop.permute.xlu0 %5349
    %5352 = vset.pattern.permute.xlu0 2
    %5353 = vperm.xlu0 %5352, %v446
    %v5354 = vpop.permute.xlu0 %5353
    %5356 = vset.pattern.permute.xlu0 2
    %5357 = vperm.xlu0 %5356, %v447
    %v5358 = vpop.permute.xlu0 %5357
    %5360 = vset.pattern.permute.xlu0 2
    %5361 = vperm.xlu0 %5360, %v448
    %v5362 = vpop.permute.xlu0 %5361
    %5364 = vset.pattern.permute.xlu0 2
    %5365 = vperm.xlu0 %5364, %v449
    %v5366 = vpop.permute.xlu0 %5365
    %5368 = vset.pattern.permute.xlu0 2
    %5369 = vperm.xlu0 %5368, %v450
    %v5370 = vpop.permute.xlu0 %5369
    %5372 = vset.pattern.permute.xlu0 2
    %5373 = vperm.xlu0 %5372, %v451
    %v5374 = vpop.permute.xlu0 %5373
    %5376 = vset.pattern.permute.xlu0 2
    %5377 = vperm.xlu0 %5376, %v452
    %v5378 = vpop.permute.xlu0 %5377
    %5380 = vset.pattern.permute.xlu0 2
    %5381 = vperm.xlu0 %5380, %v453
    %v5382 = vpop.permute.xlu0 %5381
    %5384 = vset.pattern.permute.xlu0 2
    %5385 = vperm.xlu0 %5384, %v454
    %v5386 = vpop.permute.xlu0 %5385
    %5388 = vset.pattern.permute.xlu0 2
    %5389 = vperm.xlu0 %5388, %v455
    %v5390 = vpop.permute.xlu0 %5389
    %5392 = vset.pattern.permute.xlu0 2
    %5393 = vperm.xlu0 %5392, %v456
    %v5394 = vpop.permute.xlu0 %5393
    %5396 = vset.pattern.permute.xlu0 2
    %5397 = vperm.xlu0 %5396, %v457
    %v5398 = vpop.permute.xlu0 %5397
    %v5400 = vlaneseq
    %v5401 = vshrl.u32 %v5400, 7
    %v5402 = vsub.s32 2, %v5401
    %v5403 = vrot.slane %v1260, %v5402
    %v5404 = vmul.f32 %v5274, %v5403
    %v5405 = vmul.f32 %v5278, %v5403
    %v5406 = vmul.f32 %v5282, %v5403
    %v5407 = vmul.f32 %v5286, %v5403
    %v5408 = vmul.f32 %v5290, %v5403
    %v5409 = vmul.f32 %v5294, %v5403
    %v5410 = vmul.f32 %v5298, %v5403
    %v5411 = vmul.f32 %v5302, %v5403
    %v5412 = vmul.f32 %v5306, %v5403
    %v5413 = vmul.f32 %v5310, %v5403
    %v5414 = vmul.f32 %v5314, %v5403
    %v5415 = vmul.f32 %v5318, %v5403
    %v5416 = vmul.f32 %v5322, %v5403
    %v5417 = vmul.f32 %v5326, %v5403
    %v5418 = vmul.f32 %v5330, %v5403
    %v5419 = vmul.f32 %v5334, %v5403
    %v5420 = vmul.f32 %v5338, %v5403
    %v5421 = vmul.f32 %v5342, %v5403
    %v5422 = vmul.f32 %v5346, %v5403
    %v5423 = vmul.f32 %v5350, %v5403
    %v5424 = vmul.f32 %v5354, %v5403
    %v5425 = vmul.f32 %v5358, %v5403
    %v5426 = vmul.f32 %v5362, %v5403
    %v5427 = vmul.f32 %v5366, %v5403
    %v5428 = vmul.f32 %v5370, %v5403
    %v5429 = vmul.f32 %v5374, %v5403
    %v5430 = vmul.f32 %v5378, %v5403
    %v5431 = vmul.f32 %v5382, %v5403
    %v5432 = vmul.f32 %v5386, %v5403
    %v5433 = vmul.f32 %v5390, %v5403
    %v5434 = vmul.f32 %v5394, %v5403
    %v5435 = vmul.f32 %v5398, %v5403
    %v5436 = vadd.f32 %v5240, %v5404
    %v5437 = vadd.f32 %v5241, %v5405
    %v5438 = vadd.f32 %v5242, %v5406
    %v5439 = vadd.f32 %v5243, %v5407
    %v5440 = vadd.f32 %v5244, %v5408
    %v5441 = vadd.f32 %v5245, %v5409
    %v5442 = vadd.f32 %v5246, %v5410
    %v5443 = vadd.f32 %v5247, %v5411
    %v5444 = vadd.f32 %v5248, %v5412
    %v5445 = vadd.f32 %v5249, %v5413
    %v5446 = vadd.f32 %v5250, %v5414
    %v5447 = vadd.f32 %v5251, %v5415
    %v5448 = vadd.f32 %v5252, %v5416
    %v5449 = vadd.f32 %v5253, %v5417
    %v5450 = vadd.f32 %v5254, %v5418
    %v5451 = vadd.f32 %v5255, %v5419
    %v5452 = vadd.f32 %v5256, %v5420
    %v5453 = vadd.f32 %v5257, %v5421
    %v5454 = vadd.f32 %v5258, %v5422
    %v5455 = vadd.f32 %v5259, %v5423
    %v5456 = vadd.f32 %v5260, %v5424
    %v5457 = vadd.f32 %v5261, %v5425
    %v5458 = vadd.f32 %v5262, %v5426
    %v5459 = vadd.f32 %v5263, %v5427
    %v5460 = vadd.f32 %v5264, %v5428
    %v5461 = vadd.f32 %v5265, %v5429
    %v5462 = vadd.f32 %v5266, %v5430
    %v5463 = vadd.f32 %v5267, %v5431
    %v5464 = vadd.f32 %v5268, %v5432
    %v5465 = vadd.f32 %v5269, %v5433
    %v5466 = vadd.f32 %v5270, %v5434
    %v5467 = vadd.f32 %v5271, %v5435
    %v5468 = vmul.f32 %v5436, 0.01
    %v5469 = vmul.f32 %v5437, 0.01
    %v5470 = vmul.f32 %v5438, 0.01
    %v5471 = vmul.f32 %v5439, 0.01
    %v5472 = vmul.f32 %v5440, 0.01
    %v5473 = vmul.f32 %v5441, 0.01
    %v5474 = vmul.f32 %v5442, 0.01
    %v5475 = vmul.f32 %v5443, 0.01
    %v5476 = vmul.f32 %v5444, 0.01
    %v5477 = vmul.f32 %v5445, 0.01
    %v5478 = vmul.f32 %v5446, 0.01
    %v5479 = vmul.f32 %v5447, 0.01
    %v5480 = vmul.f32 %v5448, 0.01
    %v5481 = vmul.f32 %v5449, 0.01
    %v5482 = vmul.f32 %v5450, 0.01
    %v5483 = vmul.f32 %v5451, 0.01
    %v5484 = vmul.f32 %v5452, 0.01
    %v5485 = vmul.f32 %v5453, 0.01
    %v5486 = vmul.f32 %v5454, 0.01
    %v5487 = vmul.f32 %v5455, 0.01
    %v5488 = vmul.f32 %v5456, 0.01
    %v5489 = vmul.f32 %v5457, 0.01
    %v5490 = vmul.f32 %v5458, 0.01
    %v5491 = vmul.f32 %v5459, 0.01
    %v5492 = vmul.f32 %v5460, 0.01
    %v5493 = vmul.f32 %v5461, 0.01
    %v5494 = vmul.f32 %v5462, 0.01
    %v5495 = vmul.f32 %v5463, 0.01
    %v5496 = vmul.f32 %v5464, 0.01
    %v5497 = vmul.f32 %v5465, 0.01
    %v5498 = vmul.f32 %v5466, 0.01
    %v5499 = vmul.f32 %v5467, 0.01
    %v5500 = vmax.f32 %v5436, %v5468
    %v5501 = vmax.f32 %v5437, %v5469
    %v5502 = vmax.f32 %v5438, %v5470
    %v5503 = vmax.f32 %v5439, %v5471
    %v5504 = vmax.f32 %v5440, %v5472
    %v5505 = vmax.f32 %v5441, %v5473
    %v5506 = vmax.f32 %v5442, %v5474
    %v5507 = vmax.f32 %v5443, %v5475
    %v5508 = vmax.f32 %v5444, %v5476
    %v5509 = vmax.f32 %v5445, %v5477
    %v5510 = vmax.f32 %v5446, %v5478
    %v5511 = vmax.f32 %v5447, %v5479
    %v5512 = vmax.f32 %v5448, %v5480
    %v5513 = vmax.f32 %v5449, %v5481
    %v5514 = vmax.f32 %v5450, %v5482
    %v5515 = vmax.f32 %v5451, %v5483
    %v5516 = vmax.f32 %v5452, %v5484
    %v5517 = vmax.f32 %v5453, %v5485
    %v5518 = vmax.f32 %v5454, %v5486
    %v5519 = vmax.f32 %v5455, %v5487
    %v5520 = vmax.f32 %v5456, %v5488
    %v5521 = vmax.f32 %v5457, %v5489
    %v5522 = vmax.f32 %v5458, %v5490
    %v5523 = vmax.f32 %v5459, %v5491
    %v5524 = vmax.f32 %v5460, %v5492
    %v5525 = vmax.f32 %v5461, %v5493
    %v5526 = vmax.f32 %v5462, %v5494
    %v5527 = vmax.f32 %v5463, %v5495
    %v5528 = vmax.f32 %v5464, %v5496
    %v5529 = vmax.f32 %v5465, %v5497
    %v5530 = vmax.f32 %v5466, %v5498
    %v5531 = vmax.f32 %v5467, %v5499
    %v5532 = vld [vmem:[%s6] sm:$0xff]
    %v5533 = vld [vmem:[%s6 + $0x8] sm:$0xff]
    %v5534 = vld [vmem:[%s6 + $0x10] sm:$0xff]
    %v5535 = vld [vmem:[%s6 + $0x18] sm:$0xff]
    %v5536 = vld [vmem:[%s7] sm:$0x1]
    %v5538 = vlaneseq
    %v5539 = vshrl.u32 %v5538, 7
    %v5540 = vsub.s32 0, %v5539
    %v5541 = vrot.slane %v5536, %v5540
    %vm5543 = vcmask 261120
    %v5545 = vsel %vm5543, %v5500, 0
    %v5548 = vsel %vm5543, %v5501, 0
    %v5551 = vsel %vm5543, %v5502, 0
    %v5554 = vsel %vm5543, %v5503, 0
    %v5557 = vsel %vm5543, %v5504, 0
    %v5560 = vsel %vm5543, %v5505, 0
    %v5563 = vsel %vm5543, %v5506, 0
    %v5566 = vsel %vm5543, %v5507, 0
    %v5569 = vsel %vm5543, %v5508, 0
    %v5572 = vsel %vm5543, %v5509, 0
    %v5575 = vsel %vm5543, %v5510, 0
    %v5578 = vsel %vm5543, %v5511, 0
    %v5581 = vsel %vm5543, %v5512, 0
    %v5584 = vsel %vm5543, %v5513, 0
    %v5587 = vsel %vm5543, %v5514, 0
    %v5590 = vsel %vm5543, %v5515, 0
    %v5593 = vsel %vm5543, %v5516, 0
    %v5596 = vsel %vm5543, %v5517, 0
    %v5599 = vsel %vm5543, %v5518, 0
    %v5602 = vsel %vm5543, %v5519, 0
    %v5605 = vsel %vm5543, %v5520, 0
    %v5608 = vsel %vm5543, %v5521, 0
    %v5611 = vsel %vm5543, %v5522, 0
    %v5614 = vsel %vm5543, %v5523, 0
    %v5617 = vsel %vm5543, %v5524, 0
    %v5620 = vsel %vm5543, %v5525, 0
    %v5623 = vsel %vm5543, %v5526, 0
    %v5626 = vsel %vm5543, %v5527, 0
    %v5629 = vsel %vm5543, %v5528, 0
    %v5632 = vsel %vm5543, %v5529, 0
    %v5635 = vsel %vm5543, %v5530, 0
    %v5638 = vsel %vm5543, %v5531, 0
    %5640 = vmatprep.subr.mxu0 0.0
    %5641 = vmatpush1.msra.mxu0 0.0
    %5642 = vmatprep.subr.mxu0 0.0
    %5643 = vmatpush1.msra.mxu0 0.0
    %5644 = vmatprep.subr.mxu0 0.0
    %5645 = vmatpush1.msra.mxu0 0.0
    %5646 = vmatprep.subr.mxu0 0.0
    %5647 = vmatpush1.msra.mxu0 0.0
    %5648 = vmatprep.subr.mxu0 0.0
    %5649 = vmatpush1.msra.mxu0 0.0
    %5650 = vmatprep.subr.mxu0 0.0
    %5651 = vmatpush1.msra.mxu0 0.0
    %5652 = vmatprep.subr.mxu0 0.0
    %5653 = vmatpush1.msra.mxu0 0.0
    %5654 = vmatprep.subr.mxu0 0.0
    %5655 = vmatpush1.msra.mxu0 0.0
    %5656 = vmatprep.subr.mxu0 0.0
    %5657 = vmatpush1.msra.mxu0 0.0
    %5658 = vmatprep.subr.mxu0 0.0
    %5659 = vmatpush1.msra.mxu0 0.0
    %5660 = vmatprep.subr.mxu0 0.0
    %5661 = vmatpush1.msra.mxu0 0.0
    %5662 = vmatprep.subr.mxu0 0.0
    %5663 = vmatpush1.msra.mxu0 0.0
    %5664 = vmatprep.subr.mxu0 0.0
    %5665 = vmatpush1.msra.mxu0 %v5535
    %5666 = vmatprep.subr.mxu0 0.0
    %5667 = vmatpush1.msra.mxu0 %v5534
    %5668 = vmatprep.subr.mxu0 0.0
    %5669 = vmatpush1.msra.mxu0 %v5533
    %5670 = vmatprep.subr.mxu0 0.0
    %5671 = vmatpush1.msra.mxu0 %v5532
    %5672 = vmatprep.subr.mxu0 0.0
    %5673 = vmatpush2.msra.mxu0 0.0
    %5674 = vmatprep.subr.mxu0 0.0
    %5675 = vmatpush2.msra.mxu0 0.0
    %5676 = vmatprep.subr.mxu0 0.0
    %5677 = vmatpush2.msra.mxu0 0.0
    %5678 = vmatprep.subr.mxu0 0.0
    %5679 = vmatpush2.msra.mxu0 0.0
    %5680 = vmatprep.subr.mxu0 0.0
    %5681 = vmatpush2.msra.mxu0 0.0
    %5682 = vmatprep.subr.mxu0 0.0
    %5683 = vmatpush2.msra.mxu0 0.0
    %5684 = vmatprep.subr.mxu0 0.0
    %5685 = vmatpush2.msra.mxu0 0.0
    %5686 = vmatprep.subr.mxu0 0.0
    %5687 = vmatpush2.msra.mxu0 0.0
    %5688 = vmatprep.subr.mxu0 0.0
    %5689 = vmatpush2.msra.mxu0 0.0
    %5690 = vmatprep.subr.mxu0 0.0
    %5691 = vmatpush2.msra.mxu0 0.0
    %5692 = vmatprep.subr.mxu0 0.0
    %5693 = vmatpush2.msra.mxu0 0.0
    %5694 = vmatprep.subr.mxu0 0.0
    %5695 = vmatpush2.msra.mxu0 0.0
    %5696 = vmatprep.subr.mxu0 0.0
    %5697 = vmatpush2.msra.mxu0 0.0
    %5698 = vmatprep.subr.mxu0 0.0
    %5699 = vmatpush2.msra.mxu0 0.0
    %5700 = vmatprep.subr.mxu0 0.0
    %5701 = vmatpush2.msra.mxu0 0.0
    %5702 = vmatprep.subr.mxu0 0.0
    %5703 = vmatpush2.msra.mxu0 0.0
    %5704 = vmatprep.mubr.f32.mxu0 0.0
    %5705 = vmatmul.mubr.f32.gmra.mxu0 %v5545
    %v5706 = vpop.f32.mrf.mxu0
    %v5707 = vadd.f32 %v5541, %v5706
    %v5708 = vpop.f32.mrf.mxu0
    %5709 = vmatprep.mubr.f32.mxu0 0.0
    %5710 = vmatmul.mubr.f32.gmra.mxu0 %v5548
    %v5711 = vpop.f32.mrf.mxu0
    %v5712 = vadd.f32 %v5541, %v5711
    %v5713 = vpop.f32.mrf.mxu0
    %5714 = vmatprep.mubr.f32.mxu0 0.0
    %5715 = vmatmul.mubr.f32.gmra.mxu0 %v5551
    %v5716 = vpop.f32.mrf.mxu0
    %v5717 = vadd.f32 %v5541, %v5716
    %v5718 = vpop.f32.mrf.mxu0
    %5719 = vmatprep.mubr.f32.mxu0 0.0
    %5720 = vmatmul.mubr.f32.gmra.mxu0 %v5554
    %v5721 = vpop.f32.mrf.mxu0
    %v5722 = vadd.f32 %v5541, %v5721
    %v5723 = vpop.f32.mrf.mxu0
    %5724 = vmatprep.mubr.f32.mxu0 0.0
    %5725 = vmatmul.mubr.f32.gmra.mxu0 %v5557
    %v5726 = vpop.f32.mrf.mxu0
    %v5727 = vadd.f32 %v5541, %v5726
    %v5728 = vpop.f32.mrf.mxu0
    %5729 = vmatprep.mubr.f32.mxu0 0.0
    %5730 = vmatmul.mubr.f32.gmra.mxu0 %v5560
    %v5731 = vpop.f32.mrf.mxu0
    %v5732 = vadd.f32 %v5541, %v5731
    %v5733 = vpop.f32.mrf.mxu0
    %5734 = vmatprep.mubr.f32.mxu0 0.0
    %5735 = vmatmul.mubr.f32.gmra.mxu0 %v5563
    %v5736 = vpop.f32.mrf.mxu0
    %v5737 = vadd.f32 %v5541, %v5736
    %v5738 = vpop.f32.mrf.mxu0
    %5739 = vmatprep.mubr.f32.mxu0 0.0
    %5740 = vmatmul.mubr.f32.gmra.mxu0 %v5566
    %v5741 = vpop.f32.mrf.mxu0
    %v5742 = vadd.f32 %v5541, %v5741
    %v5743 = vpop.f32.mrf.mxu0
    %5744 = vmatprep.mubr.f32.mxu0 0.0
    %5745 = vmatmul.mubr.f32.gmra.mxu0 %v5569
    %v5746 = vpop.f32.mrf.mxu0
    %v5747 = vadd.f32 %v5541, %v5746
    %v5748 = vpop.f32.mrf.mxu0
    %5749 = vmatprep.mubr.f32.mxu0 0.0
    %5750 = vmatmul.mubr.f32.gmra.mxu0 %v5572
    %v5751 = vpop.f32.mrf.mxu0
    %v5752 = vadd.f32 %v5541, %v5751
    %v5753 = vpop.f32.mrf.mxu0
    %5754 = vmatprep.mubr.f32.mxu0 0.0
    %5755 = vmatmul.mubr.f32.gmra.mxu0 %v5575
    %v5756 = vpop.f32.mrf.mxu0
    %v5757 = vadd.f32 %v5541, %v5756
    %v5758 = vpop.f32.mrf.mxu0
    %5759 = vmatprep.mubr.f32.mxu0 0.0
    %5760 = vmatmul.mubr.f32.gmra.mxu0 %v5578
    %v5761 = vpop.f32.mrf.mxu0
    %v5762 = vadd.f32 %v5541, %v5761
    %v5763 = vpop.f32.mrf.mxu0
    %5764 = vmatprep.mubr.f32.mxu0 0.0
    %5765 = vmatmul.mubr.f32.gmra.mxu0 %v5581
    %v5766 = vpop.f32.mrf.mxu0
    %v5767 = vadd.f32 %v5541, %v5766
    %v5768 = vpop.f32.mrf.mxu0
    %5769 = vmatprep.mubr.f32.mxu0 0.0
    %5770 = vmatmul.mubr.f32.gmra.mxu0 %v5584
    %v5771 = vpop.f32.mrf.mxu0
    %v5772 = vadd.f32 %v5541, %v5771
    %v5773 = vpop.f32.mrf.mxu0
    %5774 = vmatprep.mubr.f32.mxu0 0.0
    %5775 = vmatmul.mubr.f32.gmra.mxu0 %v5587
    %v5776 = vpop.f32.mrf.mxu0
    %v5777 = vadd.f32 %v5541, %v5776
    %v5778 = vpop.f32.mrf.mxu0
    %5779 = vmatprep.mubr.f32.mxu0 0.0
    %5780 = vmatmul.mubr.f32.gmra.mxu0 %v5590
    %v5781 = vpop.f32.mrf.mxu0
    %v5782 = vadd.f32 %v5541, %v5781
    %v5783 = vpop.f32.mrf.mxu0
    %5784 = vmatprep.mubr.f32.mxu0 0.0
    %5785 = vmatmul.mubr.f32.gmra.mxu0 %v5593
    %v5786 = vpop.f32.mrf.mxu0
    %v5787 = vadd.f32 %v5541, %v5786
    %v5788 = vpop.f32.mrf.mxu0
    %5789 = vmatprep.mubr.f32.mxu0 0.0
    %5790 = vmatmul.mubr.f32.gmra.mxu0 %v5596
    %v5791 = vpop.f32.mrf.mxu0
    %v5792 = vadd.f32 %v5541, %v5791
    %v5793 = vpop.f32.mrf.mxu0
    %5794 = vmatprep.mubr.f32.mxu0 0.0
    %5795 = vmatmul.mubr.f32.gmra.mxu0 %v5599
    %v5796 = vpop.f32.mrf.mxu0
    %v5797 = vadd.f32 %v5541, %v5796
    %v5798 = vpop.f32.mrf.mxu0
    %5799 = vmatprep.mubr.f32.mxu0 0.0
    %5800 = vmatmul.mubr.f32.gmra.mxu0 %v5602
    %v5801 = vpop.f32.mrf.mxu0
    %v5802 = vadd.f32 %v5541, %v5801
    %v5803 = vpop.f32.mrf.mxu0
    %5804 = vmatprep.mubr.f32.mxu0 0.0
    %5805 = vmatmul.mubr.f32.gmra.mxu0 %v5605
    %v5806 = vpop.f32.mrf.mxu0
    %v5807 = vadd.f32 %v5541, %v5806
    %v5808 = vpop.f32.mrf.mxu0
    %5809 = vmatprep.mubr.f32.mxu0 0.0
    %5810 = vmatmul.mubr.f32.gmra.mxu0 %v5608
    %v5811 = vpop.f32.mrf.mxu0
    %v5812 = vadd.f32 %v5541, %v5811
    %v5813 = vpop.f32.mrf.mxu0
    %5814 = vmatprep.mubr.f32.mxu0 0.0
    %5815 = vmatmul.mubr.f32.gmra.mxu0 %v5611
    %v5816 = vpop.f32.mrf.mxu0
    %v5817 = vadd.f32 %v5541, %v5816
    %v5818 = vpop.f32.mrf.mxu0
    %5819 = vmatprep.mubr.f32.mxu0 0.0
    %5820 = vmatmul.mubr.f32.gmra.mxu0 %v5614
    %v5821 = vpop.f32.mrf.mxu0
    %v5822 = vadd.f32 %v5541, %v5821
    %v5823 = vpop.f32.mrf.mxu0
    %5824 = vmatprep.mubr.f32.mxu0 0.0
    %5825 = vmatmul.mubr.f32.gmra.mxu0 %v5617
    %v5826 = vpop.f32.mrf.mxu0
    %v5827 = vadd.f32 %v5541, %v5826
    %v5828 = vpop.f32.mrf.mxu0
    %5829 = vmatprep.mubr.f32.mxu0 0.0
    %5830 = vmatmul.mubr.f32.gmra.mxu0 %v5620
    %v5831 = vpop.f32.mrf.mxu0
    %v5832 = vadd.f32 %v5541, %v5831
    %v5833 = vpop.f32.mrf.mxu0
    %5834 = vmatprep.mubr.f32.mxu0 0.0
    %5835 = vmatmul.mubr.f32.gmra.mxu0 %v5623
    %v5836 = vpop.f32.mrf.mxu0
    %v5837 = vadd.f32 %v5541, %v5836
    %v5838 = vpop.f32.mrf.mxu0
    %5839 = vmatprep.mubr.f32.mxu0 0.0
    %5840 = vmatmul.mubr.f32.gmra.mxu0 %v5626
    %v5841 = vpop.f32.mrf.mxu0
    %v5842 = vadd.f32 %v5541, %v5841
    %v5843 = vpop.f32.mrf.mxu0
    %5844 = vmatprep.mubr.f32.mxu0 0.0
    %5845 = vmatmul.mubr.f32.gmra.mxu0 %v5629
    %v5846 = vpop.f32.mrf.mxu0
    %v5847 = vadd.f32 %v5541, %v5846
    %v5848 = vpop.f32.mrf.mxu0
    %5849 = vmatprep.mubr.f32.mxu0 0.0
    %5850 = vmatmul.mubr.f32.gmra.mxu0 %v5632
    %v5851 = vpop.f32.mrf.mxu0
    %v5852 = vadd.f32 %v5541, %v5851
    %v5853 = vpop.f32.mrf.mxu0
    %5854 = vmatprep.mubr.f32.mxu0 0.0
    %5855 = vmatmul.mubr.f32.gmra.mxu0 %v5635
    %v5856 = vpop.f32.mrf.mxu0
    %v5857 = vadd.f32 %v5541, %v5856
    %v5858 = vpop.f32.mrf.mxu0
    %5859 = vmatprep.mubr.f32.mxu0 0.0
    %5860 = vmatmul.mubr.f32.gmra.mxu0 %v5638
    %v5861 = vpop.f32.mrf.mxu0
    %v5862 = vadd.f32 %v5541, %v5861
    %v5863 = vpop.f32.mrf.mxu0
    %5864 = vdwg.mxu0
    %5865 = vst [vmem:[#allocation2] sm:$0xff] %v5707
    %5866 = vst [vmem:[#allocation2 + $0x8] sm:$0xff] %v5712
    %5867 = vst [vmem:[#allocation2 + $0x10] sm:$0xff] %v5717
    %5868 = vst [vmem:[#allocation2 + $0x18] sm:$0xff] %v5722
    %5869 = vst [vmem:[#allocation2 + $0x20] sm:$0xff] %v5727
    %5870 = vst [vmem:[#allocation2 + $0x28] sm:$0xff] %v5732
    %5871 = vst [vmem:[#allocation2 + $0x30] sm:$0xff] %v5737
    %5872 = vst [vmem:[#allocation2 + $0x38] sm:$0xff] %v5742
    %5873 = vst [vmem:[#allocation2 + $0x40] sm:$0xff] %v5747
    %5874 = vst [vmem:[#allocation2 + $0x48] sm:$0xff] %v5752
    %5875 = vst [vmem:[#allocation2 + $0x50] sm:$0xff] %v5757
    %5876 = vst [vmem:[#allocation2 + $0x58] sm:$0xff] %v5762
    %5877 = vst [vmem:[#allocation2 + $0x60] sm:$0xff] %v5767
    %5878 = vst [vmem:[#allocation2 + $0x68] sm:$0xff] %v5772
    %5879 = vst [vmem:[#allocation2 + $0x70] sm:$0xff] %v5777
    %5880 = vst [vmem:[#allocation2 + $0x78] sm:$0xff] %v5782
    %5881 = vst [vmem:[#allocation2 + $0x80] sm:$0xff] %v5787
    %5882 = vst [vmem:[#allocation2 + $0x88] sm:$0xff] %v5792
    %5883 = vst [vmem:[#allocation2 + $0x90] sm:$0xff] %v5797
    %5884 = vst [vmem:[#allocation2 + $0x98] sm:$0xff] %v5802
    %5885 = vst [vmem:[#allocation2 + $0xa0] sm:$0xff] %v5807
    %5886 = vst [vmem:[#allocation2 + $0xa8] sm:$0xff] %v5812
    %5887 = vst [vmem:[#allocation2 + $0xb0] sm:$0xff] %v5817
    %5888 = vst [vmem:[#allocation2 + $0xb8] sm:$0xff] %v5822
    %5889 = vst [vmem:[#allocation2 + $0xc0] sm:$0xff] %v5827
    %5890 = vst [vmem:[#allocation2 + $0xc8] sm:$0xff] %v5832
    %5891 = vst [vmem:[#allocation2 + $0xd0] sm:$0xff] %v5837
    %5892 = vst [vmem:[#allocation2 + $0xd8] sm:$0xff] %v5842
    %5893 = vst [vmem:[#allocation2 + $0xe0] sm:$0xff] %v5847
    %5894 = vst [vmem:[#allocation2 + $0xe8] sm:$0xff] %v5852
    %5895 = vst [vmem:[#allocation2 + $0xf0] sm:$0xff] %v5857
    %5896 = vst [vmem:[#allocation2 + $0xf8] sm:$0xff] %v5862
    // Predicated region
    $region34: #{tpu_custom_call.1} parent=1 // pred_check
      _
    $region35: #{tpu_custom_call.1} parent=1 // pred_check_branch
      %5898 = sbr.rel (0) target = $region37
    $region36: #{tpu_custom_call.1} parent=1 // pred_region
      %s5900 = ssub.s32 4096, 4096
      %5901 = vsyncadd [#allocation3], %s5900
      %s5902 = sshll.u32 [#allocation2], 4
      %s5903 = int_to_ptr.vmem [resolvable:$true] %s5902
      %5908 = dma.vmem_to_hbm [thread:$0]  %s5903, 4096, %s8, [#allocation3], 128, 128, 8
    $region37: #{tpu_custom_call.1} parent=1 // pred_fallthru
      _
    // Predicated region
    $region38: #{tpu_custom_call.1} parent=1 // pred_check
      _
    $region39: #{tpu_custom_call.1} parent=1 // pred_check_branch
      %5910 = sbr.rel (0) target = $region41
    $region40: #{tpu_custom_call.1} parent=1 // pred_region
      %5911 = dma.done [#allocation3], 4096
    $region41: #{tpu_custom_call.1} parent=1 // pred_fallthru
      _
    %5912 = vsyncpa [#allocation3], 1

</llo_original>
